<compile_context>
chip_gen: v7x
topology: tpu7x:2x2x1
jax: 0.10.0
libtpu: 0.0.40
codegen_flags: <defaults>
</compile_context>

<pallas_src>
import functools

import jax
import jax.numpy as jnp
from jax.experimental import pallas as pl
from jax.experimental.pallas import tpu as pltpu


# ----------------------------- model configuration -----------------------------
DIM       = 2
NUNKNOWN  = 1
NHIDDEN   = 32
NLAYERS   = 3
EPS       = 0.5
ALPHA     = 1.0
BETA      = 1.0
USE_DIFF  = True

NIN  = DIM * 3 if USE_DIFF else DIM * 2
NOUT = NUNKNOWN
ALPHA_EPS = EPS ** ALPHA
BETA_EPS  = 1.0 / (EPS ** BETA)

# Feature dims are tiny (<=32), so full-f32 MXU passes are free; keeps the
# Pallas result within ~1e-6 of the f32 reference.
_MM_PREC = jax.lax.Precision.HIGHEST


# ------------------------------- Pallas kernel ----------------------------------
def gpinns_mlp_kernel(nlayers, x_ref, *refs):
    """Fused MLP in transposed (features, batch) layout.

    x_ref:   (2*DIM, batch_tile)   -- batch on the 128-lane axis
    refs:    (w0, b0, w1, b1, ..., w_nlayers, b_nlayers, out_ref)
             wi: (out_feat, in_feat) [torch layout, eps scales pre-folded]
             bi: (out_feat, 1)
    out_ref: (NOUT, batch_tile)    -- lane-dense stores
    """
    out_ref = refs[-1]
    p = refs[:-1]

    h = x_ref[...]                                             # (2*DIM, tile)

    # Hidden layers 0 .. nlayers-1.  use_diff and eps**(-beta) are already folded
    # into (w0, b0) on the host, so every hidden layer is a plain tanh(W @ h + b).
    for i in range(nlayers):
        w = p[2 * i][...]
        b = p[2 * i + 1][...]
        h = jnp.tanh(
            jnp.dot(w, h, preferred_element_type=jnp.float32, precision=_MM_PREC)
            + b)

    # Output layer (eps**alpha folded into its weight), no activation.
    w = p[2 * nlayers][...]
    b = p[2 * nlayers + 1][...]
    y = jnp.dot(w, h, preferred_element_type=jnp.float32, precision=_MM_PREC) + b
    out_ref[...] = y.astype(out_ref.dtype)                     # (NOUT, tile)


# ----------------------------- host-side param folding --------------------------
def fold_params(params):
    """One-time transform of torch-layout params:
       * fold the use_diff concat into an effective (NHIDDEN, 2*DIM) first weight,
       * fold eps**(-beta) into (W0, b0) and eps**alpha into W_last.
    Input params[i] = (W, b) with W: (out, in), b: (out, 1)."""
    w0, b0 = params[0]
    if USE_DIFF:
        wa = w0[:, 0:DIM]        + w0[:, 2 * DIM:3 * DIM]
        wb = w0[:, DIM:2 * DIM]  - w0[:, 2 * DIM:3 * DIM]
        w0 = jnp.concatenate([wa, wb], axis=1)                 # (NHIDDEN, 2*DIM)
    folded = [(w0 * BETA_EPS, b0 * BETA_EPS)]
    for i in range(1, NLAYERS):
        folded.append(params[i])
    wl, bl = params[NLAYERS]
    folded.append((wl * ALPHA_EPS, bl))                        # bias NOT scaled
    return folded


# --------------------------------- forward wrapper -------------------------------
def gpinns_forward(x, folded_params, *, batch_tile=None):
    """x: (N, 2*DIM) float32 raw coordinates (diff columns folded into W0).
    folded_params: output of fold_params()."""
    N = x.shape[0]
    assert x.shape[1] == 2 * DIM, "expected raw (N, 2*dim) input"

    # Tile choice: single grid step for small N (per-step overhead dominates);
    # large lane-aligned tiles for big N.  VMEM stays far below the limit.
    if batch_tile is None:
        batch_tile = N if N <= 2048 else 2048
    if batch_tile >= N:
        batch_tile = N                        # one grid step, full-extent block
        n_pad = N
    else:
        batch_tile = max(128, (batch_tile // 128) * 128)   # lane-aligned
        n_pad = pl.cdiv(N, batch_tile) * batch_tile

    # Batch goes on the 128-lane axis; zero-pad the lane axis for remainder tiles.
    xT = x.T.astype(jnp.float32)                               # (2*DIM, N)
    if n_pad != N:
        xT = jnp.pad(xT, ((0, 0), (0, n_pad - N)))

    flat_params, param_specs = [], []
    for (w, b) in folded_params:
        flat_params.extend([w, b])
        # Full-array blocks with constant index_map: fetched once, never re-copied.
        param_specs.append(pl.BlockSpec(w.shape, lambda i: (0, 0)))
        param_specs.append(pl.BlockSpec(b.shape, lambda i: (0, 0)))

    x_spec   = pl.BlockSpec((2 * DIM, batch_tile), lambda i: (0, i))
    out_spec = pl.BlockSpec((NOUT, batch_tile), lambda i: (0, i))

    kernel = functools.partial(gpinns_mlp_kernel, NLAYERS)

    yT = pl.pallas_call(
        kernel,
        out_shape=jax.ShapeDtypeStruct((NOUT, n_pad), jnp.float32),
        grid_spec=pltpu.PrefetchScalarGridSpec(
            num_scalar_prefetch=0,
            grid=(n_pad // batch_tile,),
            in_specs=[x_spec] + param_specs,
            out_specs=out_spec,
        ),
        compiler_params=pltpu.CompilerParams(
            # Batch tiles are independent; on v7x (2 TCs) a grid >= 2 gets sharded.
            dimension_semantics=("parallel",),
        ),
    )(xT, *flat_params)

    return yT[:, :N].T                                         # (N, NOUT)


# --------------------------- deterministic parameter init ------------------------
def init_params(key):
    """Xavier-normal weights (zero biases), matching the 'xavier' init branch.
    Weights stored in torch layout (out_features, in_features); biases (out, 1)."""
    sizes = [(NHIDDEN, NIN)] + [(NHIDDEN, NHIDDEN)] * (NLAYERS - 1) + [(NOUT, NHIDDEN)]
    params = []
    for (fan_out, fan_in) in sizes:
        key, sub = jax.random.split(key)
        std = (2.0 / (fan_in + fan_out)) ** 0.5
        w = std * jax.random.normal(sub, (fan_out, fan_in), dtype=jnp.float32)
        b = jnp.zeros((fan_out, 1), dtype=jnp.float32)
        params.append((w, b))
    return params


def reference_forward(x, params):
    """Pure-JAX reference with the ORIGINAL (unfolded) parameters — also checks
    that the host-side folding is numerically correct."""
    if USE_DIFF:
        x = jnp.concatenate([x, x[:, 0:DIM] - x[:, DIM:2 * DIM]], axis=1)
    w0, b0 = params[0]
    h = jnp.tanh((jnp.dot(x, w0.T, precision=_MM_PREC) + b0.T) * BETA_EPS)
    for i in range(1, NLAYERS):
        w, b = params[i]
        h = jnp.tanh(jnp.dot(h, w.T, precision=_MM_PREC) + b.T)
    w, b = params[NLAYERS]
    return jnp.dot(h * ALPHA_EPS, w.T, precision=_MM_PREC) + b.T


# -------------------------------------- main -------------------------------------
if __name__ == "__main__":
    key = jax.random.PRNGKey(0)
    key_x, key_p = jax.random.split(key)

    # Raw input has dim*2 columns; diff columns are folded into the first weight.
    N = 512
    x = jax.random.normal(key_x, (N, DIM * 2), dtype=jnp.float32)

    params = init_params(key_p)
    folded = fold_params(params)

    # Default tiling -> single grid step at this size (best on v5e/v6e).
    # On v7x, benchmark batch_tile=256 (2 tiles, one per TensorCore) vs this.
    out = gpinns_forward(x, folded)
    out = jax.block_until_ready(out)

    ref = reference_forward(x, params)
    assert out.shape == (N, NOUT)
    assert jnp.max(jnp.abs(out - ref)) < 1e-4, "Pallas kernel mismatch vs JAX reference"

    print("KERNEL_OK")
</pallas_src>

<mosaic_0001>
module attributes {stable_mosaic.version = 11 : i64} {
  func.func @gpinns_mlp_kernel(%arg0: i32, %arg1: memref<4x512xf32, #tpu.memory_space<vmem>>, %arg2: memref<32x4xf32, #tpu.memory_space<vmem>>, %arg3: memref<32x1xf32, #tpu.memory_space<vmem>>, %arg4: memref<32x32xf32, #tpu.memory_space<vmem>>, %arg5: memref<32x1xf32, #tpu.memory_space<vmem>>, %arg6: memref<32x32xf32, #tpu.memory_space<vmem>>, %arg7: memref<32x1xf32, #tpu.memory_space<vmem>>, %arg8: memref<1x32xf32, #tpu.memory_space<vmem>>, %arg9: memref<1x1xf32, #tpu.memory_space<vmem>>, %arg10: memref<1x512xf32, #tpu.memory_space<vmem>>) attributes {dimension_semantics = [#tpu.dimension_semantics<parallel>], iteration_bounds = array<i64: 1>, scalar_prefetch = 0 : i64, scratch_operands = 0 : i64, tpu.core_type = #tpu.core_type<tc>, window_params = [{transform_indices = @transform_0, window_bounds = array<i64: 4, 512>}, {pipeline_mode = #tpu.pipeline_mode<synchronous>, transform_indices = @transform_1, window_bounds = array<i64: 32, 4>}, {pipeline_mode = #tpu.pipeline_mode<synchronous>, transform_indices = @transform_2, window_bounds = array<i64: 32, 1>}, {pipeline_mode = #tpu.pipeline_mode<synchronous>, transform_indices = @transform_3, window_bounds = array<i64: 32, 32>}, {pipeline_mode = #tpu.pipeline_mode<synchronous>, transform_indices = @transform_4, window_bounds = array<i64: 32, 1>}, {pipeline_mode = #tpu.pipeline_mode<synchronous>, transform_indices = @transform_5, window_bounds = array<i64: 32, 32>}, {pipeline_mode = #tpu.pipeline_mode<synchronous>, transform_indices = @transform_6, window_bounds = array<i64: 32, 1>}, {pipeline_mode = #tpu.pipeline_mode<synchronous>, transform_indices = @transform_7, window_bounds = array<i64: 1, 32>}, {pipeline_mode = #tpu.pipeline_mode<synchronous>, transform_indices = @transform_8, window_bounds = array<i64: 1, 1>}, {transform_indices = @transform_9, window_bounds = array<i64: 1, 512>}]} {
    %c0 = arith.constant 0 : index
    %c0_0 = arith.constant 0 : index
    %0 = vector.load %arg1[%c0, %c0_0] : memref<4x512xf32, #tpu.memory_space<vmem>>, vector<4x512xf32>
    %c0_1 = arith.constant 0 : index
    %c0_2 = arith.constant 0 : index
    %1 = vector.load %arg2[%c0_1, %c0_2] : memref<32x4xf32, #tpu.memory_space<vmem>>, vector<32x4xf32>
    %c0_3 = arith.constant 0 : index
    %c0_4 = arith.constant 0 : index
    %2 = vector.load %arg3[%c0_3, %c0_4] : memref<32x1xf32, #tpu.memory_space<vmem>>, vector<32x1xf32>
    %cst = arith.constant dense<0.000000e+00> : vector<32x512xf32>
    %3 = tpu.matmul %1, %0, %cst {dimension_numbers = #tpu.dot_dimension_numbers<[1], [0], [0], [1], [0, 0, 1, 1], [], []>, precision = #tpu.contract_precision<fp32>} : vector<32x4xf32>, vector<4x512xf32>, vector<32x512xf32> -> vector<32x512xf32>
    %4 = vector.broadcast %2 : vector<32x1xf32> to vector<32x512xf32>
    %5 = arith.addf %3, %4 : vector<32x512xf32>
    %6 = math.tanh %5 : vector<32x512xf32>
    %c0_5 = arith.constant 0 : index
    %c0_6 = arith.constant 0 : index
    %7 = vector.load %arg4[%c0_5, %c0_6] : memref<32x32xf32, #tpu.memory_space<vmem>>, vector<32x32xf32>
    %c0_7 = arith.constant 0 : index
    %c0_8 = arith.constant 0 : index
    %8 = vector.load %arg5[%c0_7, %c0_8] : memref<32x1xf32, #tpu.memory_space<vmem>>, vector<32x1xf32>
    %cst_9 = arith.constant dense<0.000000e+00> : vector<32x512xf32>
    %9 = tpu.matmul %7, %6, %cst_9 {dimension_numbers = #tpu.dot_dimension_numbers<[1], [0], [0], [1], [0, 0, 1, 1], [], []>, precision = #tpu.contract_precision<fp32>} : vector<32x32xf32>, vector<32x512xf32>, vector<32x512xf32> -> vector<32x512xf32>
    %10 = vector.broadcast %8 : vector<32x1xf32> to vector<32x512xf32>
    %11 = arith.addf %9, %10 : vector<32x512xf32>
    %12 = math.tanh %11 : vector<32x512xf32>
    %c0_10 = arith.constant 0 : index
    %c0_11 = arith.constant 0 : index
    %13 = vector.load %arg6[%c0_10, %c0_11] : memref<32x32xf32, #tpu.memory_space<vmem>>, vector<32x32xf32>
    %c0_12 = arith.constant 0 : index
    %c0_13 = arith.constant 0 : index
    %14 = vector.load %arg7[%c0_12, %c0_13] : memref<32x1xf32, #tpu.memory_space<vmem>>, vector<32x1xf32>
    %cst_14 = arith.constant dense<0.000000e+00> : vector<32x512xf32>
    %15 = tpu.matmul %13, %12, %cst_14 {dimension_numbers = #tpu.dot_dimension_numbers<[1], [0], [0], [1], [0, 0, 1, 1], [], []>, precision = #tpu.contract_precision<fp32>} : vector<32x32xf32>, vector<32x512xf32>, vector<32x512xf32> -> vector<32x512xf32>
    %16 = vector.broadcast %14 : vector<32x1xf32> to vector<32x512xf32>
    %17 = arith.addf %15, %16 : vector<32x512xf32>
    %18 = math.tanh %17 : vector<32x512xf32>
    %c0_15 = arith.constant 0 : index
    %c0_16 = arith.constant 0 : index
    %19 = vector.load %arg8[%c0_15, %c0_16] : memref<1x32xf32, #tpu.memory_space<vmem>>, vector<1x32xf32>
    %c0_17 = arith.constant 0 : index
    %c0_18 = arith.constant 0 : index
    %20 = vector.load %arg9[%c0_17, %c0_18] : memref<1x1xf32, #tpu.memory_space<vmem>>, vector<1x1xf32>
    %cst_19 = arith.constant dense<0.000000e+00> : vector<1x512xf32>
    %21 = tpu.matmul %19, %18, %cst_19 {dimension_numbers = #tpu.dot_dimension_numbers<[1], [0], [0], [1], [0, 0, 1, 1], [], []>, precision = #tpu.contract_precision<fp32>} : vector<1x32xf32>, vector<32x512xf32>, vector<1x512xf32> -> vector<1x512xf32>
    %22 = vector.broadcast %20 : vector<1x1xf32> to vector<1x512xf32>
    %23 = arith.addf %21, %22 : vector<1x512xf32>
    %c0_20 = arith.constant 0 : index
    %c0_21 = arith.constant 0 : index
    %24 = vector.load %arg10[%c0_20, %c0_21] : memref<1x512xf32, #tpu.memory_space<vmem>>, vector<1x512xf32>
    tpu.vector_store %arg10[%c0_20, %c0_21], %23 {strides = array<i32>} : memref<1x512xf32, #tpu.memory_space<vmem>>, vector<1x512xf32>,
    return
  }
  func.func @transform_0(%arg0: i32) -> (i32, i32) {
    %c0_i32 = arith.constant 0 : i32
    %c0_i32_0 = arith.constant 0 : i32
    return %c0_i32, %arg0 : i32, i32
  }
  func.func @transform_1(%arg0: i32) -> (i32, i32) {
    %c0_i32 = arith.constant 0 : i32
    %c0_i32_0 = arith.constant 0 : i32
    %c0_i32_1 = arith.constant 0 : i32
    return %c0_i32, %c0_i32_0 : i32, i32
  }
  func.func @transform_2(%arg0: i32) -> (i32, i32) {
    %c0_i32 = arith.constant 0 : i32
    %c0_i32_0 = arith.constant 0 : i32
    %c0_i32_1 = arith.constant 0 : i32
    return %c0_i32, %c0_i32_0 : i32, i32
  }
  func.func @transform_3(%arg0: i32) -> (i32, i32) {
    %c0_i32 = arith.constant 0 : i32
    %c0_i32_0 = arith.constant 0 : i32
    %c0_i32_1 = arith.constant 0 : i32
    return %c0_i32, %c0_i32_0 : i32, i32
  }
  func.func @transform_4(%arg0: i32) -> (i32, i32) {
    %c0_i32 = arith.constant 0 : i32
    %c0_i32_0 = arith.constant 0 : i32
    %c0_i32_1 = arith.constant 0 : i32
    return %c0_i32, %c0_i32_0 : i32, i32
  }
  func.func @transform_5(%arg0: i32) -> (i32, i32) {
    %c0_i32 = arith.constant 0 : i32
    %c0_i32_0 = arith.constant 0 : i32
    %c0_i32_1 = arith.constant 0 : i32
    return %c0_i32, %c0_i32_0 : i32, i32
  }
  func.func @transform_6(%arg0: i32) -> (i32, i32) {
    %c0_i32 = arith.constant 0 : i32
    %c0_i32_0 = arith.constant 0 : i32
    %c0_i32_1 = arith.constant 0 : i32
    return %c0_i32, %c0_i32_0 : i32, i32
  }
  func.func @transform_7(%arg0: i32) -> (i32, i32) {
    %c0_i32 = arith.constant 0 : i32
    %c0_i32_0 = arith.constant 0 : i32
    %c0_i32_1 = arith.constant 0 : i32
    return %c0_i32, %c0_i32_0 : i32, i32
  }
  func.func @transform_8(%arg0: i32) -> (i32, i32) {
    %c0_i32 = arith.constant 0 : i32
    %c0_i32_0 = arith.constant 0 : i32
    %c0_i32_1 = arith.constant 0 : i32
    return %c0_i32, %c0_i32_0 : i32, i32
  }
  func.func @transform_9(%arg0: i32) -> (i32, i32) {
    %c0_i32 = arith.constant 0 : i32
    %c0_i32_0 = arith.constant 0 : i32
    return %c0_i32, %arg0 : i32, i32
  }
}

</mosaic_0001>

<llo_original>
// kernel: tpu_custom_call.1
$region0: #{tpu_custom_call.1}
  #allocation0 [shape = 'u32[]', space=smem, size = 0x4, offset = 0x4, fixed_abs, tag = 'smem constant byte address 0x4 - core index']
  #allocation1 [shape = 'u32[144,128]{1,0:T(1,128)}', space=vmem, size = 0x12000, scoped, tag = 'internal scratch']
  #allocation2 [shape = 'f32[1,1]{1,0:T(1,128)S(1)}', space=vmem, size = 0x200, scoped, tag = 'scoped memory for tpu_custom_call.1']
  %s0 = inlined_call_operand.vmem [shape: f32[4,512], index: 0, kind: input, shape index: {}]
  %s1 = inlined_call_operand.vmem [shape: f32[32,4], index: 1, kind: input, shape index: {}]
  %s2 = inlined_call_operand.vmem [shape: f32[32,1], index: 2, kind: input, shape index: {}]
  %s3 = inlined_call_operand.vmem [shape: f32[32,32], index: 3, kind: input, shape index: {}]
  %s4 = inlined_call_operand.vmem [shape: f32[32,1], index: 4, kind: input, shape index: {}]
  %s5 = inlined_call_operand.vmem [shape: f32[32,32], index: 5, kind: input, shape index: {}]
  %s6 = inlined_call_operand.vmem [shape: f32[32,1], index: 6, kind: input, shape index: {}]
  %s7 = inlined_call_operand.vmem [shape: f32[1,32], index: 7, kind: input, shape index: {}]
  %s8 = inlined_call_operand.<no memory space> [shape: f32[1,1], index: 8, kind: input, shape index: {}]
  %s9 = inlined_call_operand.hbm [shape: f32[1,512], index: 9, kind: output, shape index: {}]
  %s10 = sld [smem:[#allocation0]]
  $region46: #{tpu_custom_call.1} parent=0
    _
  %s12 = ssub.s32 1, %s10
  %s13 = scalar_select 0, %s12, %s10
  %v14 = vstv %s8
  %15 = vst [vmem:[#allocation2] sm:$0x1] %v14
  $region1: #{tpu_custom_call.1} parent=0
    #allocation3 [shape = 'u8[2048]{0}', space=vmem, size = 0x800, scoped, tag = 'output window, operand 0, single buffered']
    #allocation4 [shape = 's32[1]{0}', space=sflag, size = 0x4, scoped, tag = 'scoped memory for tpu_custom_call.1']
    %16 = vsyncpa [#allocation4], 0
    // Predicated region
    $region2: #{tpu_custom_call.1} parent=1 // pred_check
      _
    $region3: #{tpu_custom_call.1} parent=1 // pred_check_branch
      %18 = sbr.rel (0) target = $region5
    $region4: #{tpu_custom_call.1} parent=1 // pred_region
      _
    $region5: #{tpu_custom_call.1} parent=1 // pred_fallthru
      _
    // Predicated region
    $region6: #{tpu_custom_call.1} parent=1 // pred_check
      _
    $region7: #{tpu_custom_call.1} parent=1 // pred_check_branch
      %20 = sbr.rel (0) target = $region9
    $region8: #{tpu_custom_call.1} parent=1 // pred_region
      _
    $region9: #{tpu_custom_call.1} parent=1 // pred_fallthru
      _
    // Predicated region
    $region10: #{tpu_custom_call.1} parent=1 // pred_check
      _
    $region11: #{tpu_custom_call.1} parent=1 // pred_check_branch
      %22 = sbr.rel (0) target = $region13
    $region12: #{tpu_custom_call.1} parent=1 // pred_region
      _
    $region13: #{tpu_custom_call.1} parent=1 // pred_fallthru
      _
    // Predicated region
    $region14: #{tpu_custom_call.1} parent=1 // pred_check
      _
    $region15: #{tpu_custom_call.1} parent=1 // pred_check_branch
      %24 = sbr.rel (0) target = $region17
    $region16: #{tpu_custom_call.1} parent=1 // pred_region
      _
    $region17: #{tpu_custom_call.1} parent=1 // pred_fallthru
      _
    // Predicated region
    $region18: #{tpu_custom_call.1} parent=1 // pred_check
      _
    $region19: #{tpu_custom_call.1} parent=1 // pred_check_branch
      %26 = sbr.rel (0) target = $region21
    $region20: #{tpu_custom_call.1} parent=1 // pred_region
      _
    $region21: #{tpu_custom_call.1} parent=1 // pred_fallthru
      _
    // Predicated region
    $region22: #{tpu_custom_call.1} parent=1 // pred_check
      _
    $region23: #{tpu_custom_call.1} parent=1 // pred_check_branch
      %28 = sbr.rel (0) target = $region25
    $region24: #{tpu_custom_call.1} parent=1 // pred_region
      _
    $region25: #{tpu_custom_call.1} parent=1 // pred_fallthru
      _
    // Predicated region
    $region26: #{tpu_custom_call.1} parent=1 // pred_check
      _
    $region27: #{tpu_custom_call.1} parent=1 // pred_check_branch
      %30 = sbr.rel (0) target = $region29
    $region28: #{tpu_custom_call.1} parent=1 // pred_region
      _
    $region29: #{tpu_custom_call.1} parent=1 // pred_fallthru
      _
    // Predicated region
    $region30: #{tpu_custom_call.1} parent=1 // pred_check
      _
    $region31: #{tpu_custom_call.1} parent=1 // pred_check_branch
      %32 = sbr.rel (0) target = $region33
    $region32: #{tpu_custom_call.1} parent=1 // pred_region
      _
    $region33: #{tpu_custom_call.1} parent=1 // pred_fallthru
      _
    // Predicated region
    $region34: #{tpu_custom_call.1} parent=1 // pred_check
      _
    $region35: #{tpu_custom_call.1} parent=1 // pred_check_branch
      %34 = sbr.rel (0) target = $region37
    $region36: #{tpu_custom_call.1} parent=1 // pred_region
      _
    $region37: #{tpu_custom_call.1} parent=1 // pred_fallthru
      _
    %v35 = vld [vmem:[%s0] sm:$0xff]
    %v36 = vld [vmem:[%s0 + $0x8] sm:$0xff]
    %v37 = vld [vmem:[%s1] sm:$0xff]
    %v38 = vld [vmem:[%s1 + $0x8] sm:$0xff]
    %v39 = vld [vmem:[%s1 + $0x10] sm:$0xff]
    %v40 = vld [vmem:[%s1 + $0x18] sm:$0xff]
    %v41 = vld [vmem:[%s2] sm:$0xff]
    %v42 = vld [vmem:[%s2 + $0x8] sm:$0xff]
    %v43 = vld [vmem:[%s2 + $0x10] sm:$0xff]
    %v44 = vld [vmem:[%s2 + $0x18] sm:$0xff]
    %46 = vset.pattern.permute.xlu0 0
    %47 = vperm.xlu0 %46, %v41
    %v48 = vpop.permute.xlu0 %47
    %51 = vset.pattern.permute.xlu0 0
    %52 = vperm.xlu0 %51, %v42
    %v53 = vpop.permute.xlu0 %52
    %56 = vset.pattern.permute.xlu0 0
    %57 = vperm.xlu0 %56, %v43
    %v58 = vpop.permute.xlu0 %57
    %61 = vset.pattern.permute.xlu0 0
    %62 = vperm.xlu0 %61, %v44
    %v63 = vpop.permute.xlu0 %62
    %v67 = vcombine.high %v35, %v35
    %v68 = vcombine.high %v36, %v36
    %vm69 = vcmask 31744
    %v71 = vsel %vm69, %v37, 0
    %v74 = vsel %vm69, %v38, 0
    %v77 = vsel %vm69, %v39, 0
    %v80 = vsel %vm69, %v40, 0
    %vm82 = vcmask 1043456
    %v83 = vsel %vm82, %v35, 0
    %v85 = vsel %vm82, %v67, 0
    %v87 = vsel %vm82, %v36, 0
    %v89 = vsel %vm82, %v68, 0
    %v91 = vand.u32 %v85, 4294901760
    %92 = vmatprep.subr.mxu0 %v91
    %v93 = vand.u32 %v83, 4294901760
    %94 = vmatpush1.msra.mxu0 %v93
    %95 = vmatprep.subr.mxu0 0.0
    %96 = vmatpush1.msra.mxu0 0.0
    %97 = vmatprep.subr.mxu0 0.0
    %98 = vmatpush1.msra.mxu0 0.0
    %99 = vmatprep.subr.mxu0 0.0
    %100 = vmatpush1.msra.mxu0 0.0
    %101 = vmatprep.subr.mxu0 0.0
    %102 = vmatpush1.msra.mxu0 0.0
    %103 = vmatprep.subr.mxu0 0.0
    %104 = vmatpush1.msra.mxu0 0.0
    %105 = vmatprep.subr.mxu0 0.0
    %106 = vmatpush1.msra.mxu0 0.0
    %107 = vmatprep.subr.mxu0 0.0
    %108 = vmatpush1.msra.mxu0 0.0
    %109 = vmatprep.subr.mxu0 0.0
    %110 = vmatpush1.msra.mxu0 0.0
    %111 = vmatprep.subr.mxu0 0.0
    %112 = vmatpush1.msra.mxu0 0.0
    %113 = vmatprep.subr.mxu0 0.0
    %114 = vmatpush1.msra.mxu0 0.0
    %115 = vmatprep.subr.mxu0 0.0
    %116 = vmatpush1.msra.mxu0 0.0
    %117 = vmatprep.subr.mxu0 0.0
    %118 = vmatpush1.msra.mxu0 0.0
    %119 = vmatprep.subr.mxu0 0.0
    %120 = vmatpush1.msra.mxu0 0.0
    %121 = vmatprep.subr.mxu0 0.0
    %122 = vmatpush1.msra.mxu0 0.0
    %123 = vmatprep.subr.mxu0 0.0
    %124 = vmatpush1.msra.mxu0 0.0
    %125 = vmatprep.subr.mxu0 0.0
    %126 = vmatpush1.msra.mxu0 0.0
    %127 = vmatprep.subr.mxu0 0.0
    %128 = vmatpush1.msra.mxu0 0.0
    %129 = vmatprep.subr.mxu0 0.0
    %130 = vmatpush1.msra.mxu0 0.0
    %131 = vmatprep.subr.mxu0 0.0
    %132 = vmatpush1.msra.mxu0 0.0
    %133 = vmatprep.subr.mxu0 0.0
    %134 = vmatpush1.msra.mxu0 0.0
    %135 = vmatprep.subr.mxu0 0.0
    %136 = vmatpush1.msra.mxu0 0.0
    %137 = vmatprep.subr.mxu0 0.0
    %138 = vmatpush1.msra.mxu0 0.0
    %139 = vmatprep.subr.mxu0 0.0
    %140 = vmatpush1.msra.mxu0 0.0
    %141 = vmatprep.subr.mxu0 0.0
    %142 = vmatpush1.msra.mxu0 0.0
    %143 = vmatprep.subr.mxu0 0.0
    %144 = vmatpush1.msra.mxu0 0.0
    %145 = vmatprep.subr.mxu0 0.0
    %146 = vmatpush1.msra.mxu0 0.0
    %147 = vmatprep.subr.mxu0 0.0
    %148 = vmatpush1.msra.mxu0 0.0
    %149 = vmatprep.subr.mxu0 0.0
    %150 = vmatpush1.msra.mxu0 0.0
    %151 = vmatprep.subr.mxu0 0.0
    %152 = vmatpush1.msra.mxu0 0.0
    %153 = vmatprep.subr.mxu0 0.0
    %154 = vmatpush1.msra.mxu0 0.0
    %155 = vmatprep.subr.mxu0 0.0
    %156 = vmatpush1.msra.mxu0 0.0
    %157 = vmatprep.mubr.f32.mxu0 0.0
    %v158 = vand.u32 %v71, 4294901760
    %v159 = vsub.f32 %v71, %v158
    %v160 = vand.u32 %v159, 4294901760
    %v161 = vsub.f32 %v159, %v160
    %v162 = vand.u32 %v161, 4294901760
    %163 = vmatmul.mubr.f32.gmra.mrb[0].mxu0 %v162
    %v164 = vpop.f32.mrb[0].mxu0
    %v165 = vadd.f32 %v48, %v164
    %v166 = vpop.f32.mrb[0].mxu0
    %v167 = vadd.f32 %v48, %v166
    %168 = vmatprep.mubr.f32.mxu0 0.0
    %v169 = vand.u32 %v74, 4294901760
    %v170 = vsub.f32 %v74, %v169
    %v171 = vand.u32 %v170, 4294901760
    %v172 = vsub.f32 %v170, %v171
    %v173 = vand.u32 %v172, 4294901760
    %174 = vmatmul.mubr.f32.gmra.mrb[0].mxu0 %v173
    %v175 = vpop.f32.mrb[0].mxu0
    %v176 = vadd.f32 %v53, %v175
    %v177 = vpop.f32.mrb[0].mxu0
    %v178 = vadd.f32 %v53, %v177
    %179 = vmatprep.mubr.f32.mxu0 0.0
    %v180 = vand.u32 %v77, 4294901760
    %v181 = vsub.f32 %v77, %v180
    %v182 = vand.u32 %v181, 4294901760
    %v183 = vsub.f32 %v181, %v182
    %v184 = vand.u32 %v183, 4294901760
    %185 = vmatmul.mubr.f32.gmra.mrb[0].mxu0 %v184
    %v186 = vpop.f32.mrb[0].mxu0
    %v187 = vadd.f32 %v58, %v186
    %v188 = vpop.f32.mrb[0].mxu0
    %v189 = vadd.f32 %v58, %v188
    %190 = vmatprep.mubr.f32.mxu0 0.0
    %v191 = vand.u32 %v80, 4294901760
    %v192 = vsub.f32 %v80, %v191
    %v193 = vand.u32 %v192, 4294901760
    %v194 = vsub.f32 %v192, %v193
    %v195 = vand.u32 %v194, 4294901760
    %196 = vmatmul.mubr.f32.gmra.mrb[0].mxu0 %v195
    %v197 = vpop.f32.mrb[0].mxu0
    %v198 = vadd.f32 %v63, %v197
    %v199 = vpop.f32.mrb[0].mxu0
    %v200 = vadd.f32 %v63, %v199
    %201 = vdwg.mxu0
    %v202 = vand.u32 %v85, 4294901760
    %v203 = vsub.f32 %v85, %v202
    %v204 = vand.u32 %v203, 4294901760
    %v205 = vsub.f32 %v203, %v204
    %v206 = vand.u32 %v205, 4294901760
    %207 = vmatprep.subr.mxu0 %v206
    %v208 = vand.u32 %v83, 4294901760
    %v209 = vsub.f32 %v83, %v208
    %v210 = vand.u32 %v209, 4294901760
    %v211 = vsub.f32 %v209, %v210
    %v212 = vand.u32 %v211, 4294901760
    %213 = vmatpush1.msra.mxu0 %v212
    %214 = vmatprep.subr.mxu0 0.0
    %215 = vmatpush1.msra.mxu0 0.0
    %216 = vmatprep.subr.mxu0 0.0
    %217 = vmatpush1.msra.mxu0 0.0
    %218 = vmatprep.subr.mxu0 0.0
    %219 = vmatpush1.msra.mxu0 0.0
    %220 = vmatprep.subr.mxu0 0.0
    %221 = vmatpush1.msra.mxu0 0.0
    %222 = vmatprep.subr.mxu0 0.0
    %223 = vmatpush1.msra.mxu0 0.0
    %224 = vmatprep.subr.mxu0 0.0
    %225 = vmatpush1.msra.mxu0 0.0
    %226 = vmatprep.subr.mxu0 0.0
    %227 = vmatpush1.msra.mxu0 0.0
    %228 = vmatprep.subr.mxu0 0.0
    %229 = vmatpush1.msra.mxu0 0.0
    %230 = vmatprep.subr.mxu0 0.0
    %231 = vmatpush1.msra.mxu0 0.0
    %232 = vmatprep.subr.mxu0 0.0
    %233 = vmatpush1.msra.mxu0 0.0
    %234 = vmatprep.subr.mxu0 0.0
    %235 = vmatpush1.msra.mxu0 0.0
    %236 = vmatprep.subr.mxu0 0.0
    %237 = vmatpush1.msra.mxu0 0.0
    %238 = vmatprep.subr.mxu0 0.0
    %239 = vmatpush1.msra.mxu0 0.0
    %240 = vmatprep.subr.mxu0 0.0
    %241 = vmatpush1.msra.mxu0 0.0
    %242 = vmatprep.subr.mxu0 0.0
    %243 = vmatpush1.msra.mxu0 0.0
    %244 = vmatprep.subr.mxu0 0.0
    %245 = vmatpush1.msra.mxu0 0.0
    %246 = vmatprep.subr.mxu0 0.0
    %247 = vmatpush1.msra.mxu0 0.0
    %248 = vmatprep.subr.mxu0 0.0
    %249 = vmatpush1.msra.mxu0 0.0
    %250 = vmatprep.subr.mxu0 0.0
    %251 = vmatpush1.msra.mxu0 0.0
    %252 = vmatprep.subr.mxu0 0.0
    %253 = vmatpush1.msra.mxu0 0.0
    %254 = vmatprep.subr.mxu0 0.0
    %255 = vmatpush1.msra.mxu0 0.0
    %256 = vmatprep.subr.mxu0 0.0
    %257 = vmatpush1.msra.mxu0 0.0
    %258 = vmatprep.subr.mxu0 0.0
    %259 = vmatpush1.msra.mxu0 0.0
    %260 = vmatprep.subr.mxu0 0.0
    %261 = vmatpush1.msra.mxu0 0.0
    %262 = vmatprep.subr.mxu0 0.0
    %263 = vmatpush1.msra.mxu0 0.0
    %264 = vmatprep.subr.mxu0 0.0
    %265 = vmatpush1.msra.mxu0 0.0
    %266 = vmatprep.subr.mxu0 0.0
    %267 = vmatpush1.msra.mxu0 0.0
    %268 = vmatprep.subr.mxu0 0.0
    %269 = vmatpush1.msra.mxu0 0.0
    %270 = vmatprep.subr.mxu0 0.0
    %271 = vmatpush1.msra.mxu0 0.0
    %272 = vmatprep.subr.mxu0 0.0
    %273 = vmatpush1.msra.mxu0 0.0
    %274 = vmatprep.subr.mxu0 0.0
    %275 = vmatpush1.msra.mxu0 0.0
    %276 = vmatprep.mubr.f32.mxu0 0.0
    %v277 = vand.u32 %v71, 4294901760
    %278 = vmatmul.mubr.f32.gmra.mrb[0].mxu0 %v277
    %v279 = vpop.f32.mrb[0].mxu0
    %v280 = vadd.f32 %v165, %v279
    %v281 = vpop.f32.mrb[0].mxu0
    %v282 = vadd.f32 %v167, %v281
    %283 = vmatprep.mubr.f32.mxu0 0.0
    %v284 = vand.u32 %v74, 4294901760
    %285 = vmatmul.mubr.f32.gmra.mrb[0].mxu0 %v284
    %v286 = vpop.f32.mrb[0].mxu0
    %v287 = vadd.f32 %v176, %v286
    %v288 = vpop.f32.mrb[0].mxu0
    %v289 = vadd.f32 %v178, %v288
    %290 = vmatprep.mubr.f32.mxu0 0.0
    %v291 = vand.u32 %v77, 4294901760
    %292 = vmatmul.mubr.f32.gmra.mrb[0].mxu0 %v291
    %v293 = vpop.f32.mrb[0].mxu0
    %v294 = vadd.f32 %v187, %v293
    %v295 = vpop.f32.mrb[0].mxu0
    %v296 = vadd.f32 %v189, %v295
    %297 = vmatprep.mubr.f32.mxu0 0.0
    %v298 = vand.u32 %v80, 4294901760
    %299 = vmatmul.mubr.f32.gmra.mrb[0].mxu0 %v298
    %v300 = vpop.f32.mrb[0].mxu0
    %v301 = vadd.f32 %v198, %v300
    %v302 = vpop.f32.mrb[0].mxu0
    %v303 = vadd.f32 %v200, %v302
    %304 = vdwg.mxu0
    %v305 = vand.u32 %v85, 4294901760
    %v306 = vsub.f32 %v85, %v305
    %307 = vmatprep.subr.mxu0 %v306
    %v308 = vand.u32 %v83, 4294901760
    %v309 = vsub.f32 %v83, %v308
    %310 = vmatpush1.msra.mxu0 %v309
    %311 = vmatprep.subr.mxu0 0.0
    %312 = vmatpush1.msra.mxu0 0.0
    %313 = vmatprep.subr.mxu0 0.0
    %314 = vmatpush1.msra.mxu0 0.0
    %315 = vmatprep.subr.mxu0 0.0
    %316 = vmatpush1.msra.mxu0 0.0
    %317 = vmatprep.subr.mxu0 0.0
    %318 = vmatpush1.msra.mxu0 0.0
    %319 = vmatprep.subr.mxu0 0.0
    %320 = vmatpush1.msra.mxu0 0.0
    %321 = vmatprep.subr.mxu0 0.0
    %322 = vmatpush1.msra.mxu0 0.0
    %323 = vmatprep.subr.mxu0 0.0
    %324 = vmatpush1.msra.mxu0 0.0
    %325 = vmatprep.subr.mxu0 0.0
    %326 = vmatpush1.msra.mxu0 0.0
    %327 = vmatprep.subr.mxu0 0.0
    %328 = vmatpush1.msra.mxu0 0.0
    %329 = vmatprep.subr.mxu0 0.0
    %330 = vmatpush1.msra.mxu0 0.0
    %331 = vmatprep.subr.mxu0 0.0
    %332 = vmatpush1.msra.mxu0 0.0
    %333 = vmatprep.subr.mxu0 0.0
    %334 = vmatpush1.msra.mxu0 0.0
    %335 = vmatprep.subr.mxu0 0.0
    %336 = vmatpush1.msra.mxu0 0.0
    %337 = vmatprep.subr.mxu0 0.0
    %338 = vmatpush1.msra.mxu0 0.0
    %339 = vmatprep.subr.mxu0 0.0
    %340 = vmatpush1.msra.mxu0 0.0
    %341 = vmatprep.subr.mxu0 0.0
    %342 = vmatpush1.msra.mxu0 0.0
    %343 = vmatprep.subr.mxu0 0.0
    %344 = vmatpush1.msra.mxu0 0.0
    %345 = vmatprep.subr.mxu0 0.0
    %346 = vmatpush1.msra.mxu0 0.0
    %347 = vmatprep.subr.mxu0 0.0
    %348 = vmatpush1.msra.mxu0 0.0
    %349 = vmatprep.subr.mxu0 0.0
    %350 = vmatpush1.msra.mxu0 0.0
    %351 = vmatprep.subr.mxu0 0.0
    %352 = vmatpush1.msra.mxu0 0.0
    %353 = vmatprep.subr.mxu0 0.0
    %354 = vmatpush1.msra.mxu0 0.0
    %355 = vmatprep.subr.mxu0 0.0
    %356 = vmatpush1.msra.mxu0 0.0
    %357 = vmatprep.subr.mxu0 0.0
    %358 = vmatpush1.msra.mxu0 0.0
    %359 = vmatprep.subr.mxu0 0.0
    %360 = vmatpush1.msra.mxu0 0.0
    %361 = vmatprep.subr.mxu0 0.0
    %362 = vmatpush1.msra.mxu0 0.0
    %363 = vmatprep.subr.mxu0 0.0
    %364 = vmatpush1.msra.mxu0 0.0
    %365 = vmatprep.subr.mxu0 0.0
    %366 = vmatpush1.msra.mxu0 0.0
    %367 = vmatprep.subr.mxu0 0.0
    %368 = vmatpush1.msra.mxu0 0.0
    %369 = vmatprep.subr.mxu0 0.0
    %370 = vmatpush1.msra.mxu0 0.0
    %371 = vmatprep.subr.mxu0 0.0
    %372 = vmatpush1.msra.mxu0 0.0
    %373 = vmatprep.mubr.f32.mxu0 0.0
    %v374 = vand.u32 %v71, 4294901760
    %v375 = vsub.f32 %v71, %v374
    %376 = vmatmul.mubr.f32.gmra.mrb[0].mxu0 %v375
    %v377 = vpop.f32.mrb[0].mxu0
    %v378 = vadd.f32 %v280, %v377
    %v379 = vpop.f32.mrb[0].mxu0
    %v380 = vadd.f32 %v282, %v379
    %381 = vmatprep.mubr.f32.mxu0 0.0
    %v382 = vand.u32 %v74, 4294901760
    %v383 = vsub.f32 %v74, %v382
    %384 = vmatmul.mubr.f32.gmra.mrb[0].mxu0 %v383
    %v385 = vpop.f32.mrb[0].mxu0
    %v386 = vadd.f32 %v287, %v385
    %v387 = vpop.f32.mrb[0].mxu0
    %v388 = vadd.f32 %v289, %v387
    %389 = vmatprep.mubr.f32.mxu0 0.0
    %v390 = vand.u32 %v77, 4294901760
    %v391 = vsub.f32 %v77, %v390
    %392 = vmatmul.mubr.f32.gmra.mrb[0].mxu0 %v391
    %v393 = vpop.f32.mrb[0].mxu0
    %v394 = vadd.f32 %v294, %v393
    %v395 = vpop.f32.mrb[0].mxu0
    %v396 = vadd.f32 %v296, %v395
    %397 = vmatprep.mubr.f32.mxu0 0.0
    %v398 = vand.u32 %v80, 4294901760
    %v399 = vsub.f32 %v80, %v398
    %400 = vmatmul.mubr.f32.gmra.mrb[0].mxu0 %v399
    %v401 = vpop.f32.mrb[0].mxu0
    %v402 = vadd.f32 %v301, %v401
    %v403 = vpop.f32.mrb[0].mxu0
    %v404 = vadd.f32 %v303, %v403
    %405 = vdwg.mxu0
    %v406 = vand.u32 %v85, 4294901760
    %407 = vmatprep.subr.mxu0 %v406
    %v408 = vand.u32 %v83, 4294901760
    %409 = vmatpush1.msra.mxu0 %v408
    %410 = vmatprep.subr.mxu0 0.0
    %411 = vmatpush1.msra.mxu0 0.0
    %412 = vmatprep.subr.mxu0 0.0
    %413 = vmatpush1.msra.mxu0 0.0
    %414 = vmatprep.subr.mxu0 0.0
    %415 = vmatpush1.msra.mxu0 0.0
    %416 = vmatprep.subr.mxu0 0.0
    %417 = vmatpush1.msra.mxu0 0.0
    %418 = vmatprep.subr.mxu0 0.0
    %419 = vmatpush1.msra.mxu0 0.0
    %420 = vmatprep.subr.mxu0 0.0
    %421 = vmatpush1.msra.mxu0 0.0
    %422 = vmatprep.subr.mxu0 0.0
    %423 = vmatpush1.msra.mxu0 0.0
    %424 = vmatprep.subr.mxu0 0.0
    %425 = vmatpush1.msra.mxu0 0.0
    %426 = vmatprep.subr.mxu0 0.0
    %427 = vmatpush1.msra.mxu0 0.0
    %428 = vmatprep.subr.mxu0 0.0
    %429 = vmatpush1.msra.mxu0 0.0
    %430 = vmatprep.subr.mxu0 0.0
    %431 = vmatpush1.msra.mxu0 0.0
    %432 = vmatprep.subr.mxu0 0.0
    %433 = vmatpush1.msra.mxu0 0.0
    %434 = vmatprep.subr.mxu0 0.0
    %435 = vmatpush1.msra.mxu0 0.0
    %436 = vmatprep.subr.mxu0 0.0
    %437 = vmatpush1.msra.mxu0 0.0
    %438 = vmatprep.subr.mxu0 0.0
    %439 = vmatpush1.msra.mxu0 0.0
    %440 = vmatprep.subr.mxu0 0.0
    %441 = vmatpush1.msra.mxu0 0.0
    %442 = vmatprep.subr.mxu0 0.0
    %443 = vmatpush1.msra.mxu0 0.0
    %444 = vmatprep.subr.mxu0 0.0
    %445 = vmatpush1.msra.mxu0 0.0
    %446 = vmatprep.subr.mxu0 0.0
    %447 = vmatpush1.msra.mxu0 0.0
    %448 = vmatprep.subr.mxu0 0.0
    %449 = vmatpush1.msra.mxu0 0.0
    %450 = vmatprep.subr.mxu0 0.0
    %451 = vmatpush1.msra.mxu0 0.0
    %452 = vmatprep.subr.mxu0 0.0
    %453 = vmatpush1.msra.mxu0 0.0
    %454 = vmatprep.subr.mxu0 0.0
    %455 = vmatpush1.msra.mxu0 0.0
    %456 = vmatprep.subr.mxu0 0.0
    %457 = vmatpush1.msra.mxu0 0.0
    %458 = vmatprep.subr.mxu0 0.0
    %459 = vmatpush1.msra.mxu0 0.0
    %460 = vmatprep.subr.mxu0 0.0
    %461 = vmatpush1.msra.mxu0 0.0
    %462 = vmatprep.subr.mxu0 0.0
    %463 = vmatpush1.msra.mxu0 0.0
    %464 = vmatprep.subr.mxu0 0.0
    %465 = vmatpush1.msra.mxu0 0.0
    %466 = vmatprep.subr.mxu0 0.0
    %467 = vmatpush1.msra.mxu0 0.0
    %468 = vmatprep.subr.mxu0 0.0
    %469 = vmatpush1.msra.mxu0 0.0
    %470 = vmatprep.subr.mxu0 0.0
    %471 = vmatpush1.msra.mxu0 0.0
    %472 = vmatprep.mubr.f32.mxu0 0.0
    %v473 = vand.u32 %v71, 4294901760
    %v474 = vsub.f32 %v71, %v473
    %v475 = vand.u32 %v474, 4294901760
    %476 = vmatmul.mubr.f32.gmra.mrb[0].mxu0 %v475
    %v477 = vpop.f32.mrb[0].mxu0
    %v478 = vadd.f32 %v378, %v477
    %v479 = vpop.f32.mrb[0].mxu0
    %v480 = vadd.f32 %v380, %v479
    %481 = vmatprep.mubr.f32.mxu0 0.0
    %v482 = vand.u32 %v74, 4294901760
    %v483 = vsub.f32 %v74, %v482
    %v484 = vand.u32 %v483, 4294901760
    %485 = vmatmul.mubr.f32.gmra.mrb[0].mxu0 %v484
    %v486 = vpop.f32.mrb[0].mxu0
    %v487 = vadd.f32 %v386, %v486
    %v488 = vpop.f32.mrb[0].mxu0
    %v489 = vadd.f32 %v388, %v488
    %490 = vmatprep.mubr.f32.mxu0 0.0
    %v491 = vand.u32 %v77, 4294901760
    %v492 = vsub.f32 %v77, %v491
    %v493 = vand.u32 %v492, 4294901760
    %494 = vmatmul.mubr.f32.gmra.mrb[0].mxu0 %v493
    %v495 = vpop.f32.mrb[0].mxu0
    %v496 = vadd.f32 %v394, %v495
    %v497 = vpop.f32.mrb[0].mxu0
    %v498 = vadd.f32 %v396, %v497
    %499 = vmatprep.mubr.f32.mxu0 0.0
    %v500 = vand.u32 %v80, 4294901760
    %v501 = vsub.f32 %v80, %v500
    %v502 = vand.u32 %v501, 4294901760
    %503 = vmatmul.mubr.f32.gmra.mrb[0].mxu0 %v502
    %v504 = vpop.f32.mrb[0].mxu0
    %v505 = vadd.f32 %v402, %v504
    %v506 = vpop.f32.mrb[0].mxu0
    %v507 = vadd.f32 %v404, %v506
    %508 = vdwg.mxu0
    %v509 = vand.u32 %v85, 4294901760
    %v510 = vsub.f32 %v85, %v509
    %v511 = vand.u32 %v510, 4294901760
    %512 = vmatprep.subr.mxu0 %v511
    %v513 = vand.u32 %v83, 4294901760
    %v514 = vsub.f32 %v83, %v513
    %v515 = vand.u32 %v514, 4294901760
    %516 = vmatpush1.msra.mxu0 %v515
    %517 = vmatprep.subr.mxu0 0.0
    %518 = vmatpush1.msra.mxu0 0.0
    %519 = vmatprep.subr.mxu0 0.0
    %520 = vmatpush1.msra.mxu0 0.0
    %521 = vmatprep.subr.mxu0 0.0
    %522 = vmatpush1.msra.mxu0 0.0
    %523 = vmatprep.subr.mxu0 0.0
    %524 = vmatpush1.msra.mxu0 0.0
    %525 = vmatprep.subr.mxu0 0.0
    %526 = vmatpush1.msra.mxu0 0.0
    %527 = vmatprep.subr.mxu0 0.0
    %528 = vmatpush1.msra.mxu0 0.0
    %529 = vmatprep.subr.mxu0 0.0
    %530 = vmatpush1.msra.mxu0 0.0
    %531 = vmatprep.subr.mxu0 0.0
    %532 = vmatpush1.msra.mxu0 0.0
    %533 = vmatprep.subr.mxu0 0.0
    %534 = vmatpush1.msra.mxu0 0.0
    %535 = vmatprep.subr.mxu0 0.0
    %536 = vmatpush1.msra.mxu0 0.0
    %537 = vmatprep.subr.mxu0 0.0
    %538 = vmatpush1.msra.mxu0 0.0
    %539 = vmatprep.subr.mxu0 0.0
    %540 = vmatpush1.msra.mxu0 0.0
    %541 = vmatprep.subr.mxu0 0.0
    %542 = vmatpush1.msra.mxu0 0.0
    %543 = vmatprep.subr.mxu0 0.0
    %544 = vmatpush1.msra.mxu0 0.0
    %545 = vmatprep.subr.mxu0 0.0
    %546 = vmatpush1.msra.mxu0 0.0
    %547 = vmatprep.subr.mxu0 0.0
    %548 = vmatpush1.msra.mxu0 0.0
    %549 = vmatprep.subr.mxu0 0.0
    %550 = vmatpush1.msra.mxu0 0.0
    %551 = vmatprep.subr.mxu0 0.0
    %552 = vmatpush1.msra.mxu0 0.0
    %553 = vmatprep.subr.mxu0 0.0
    %554 = vmatpush1.msra.mxu0 0.0
    %555 = vmatprep.subr.mxu0 0.0
    %556 = vmatpush1.msra.mxu0 0.0
    %557 = vmatprep.subr.mxu0 0.0
    %558 = vmatpush1.msra.mxu0 0.0
    %559 = vmatprep.subr.mxu0 0.0
    %560 = vmatpush1.msra.mxu0 0.0
    %561 = vmatprep.subr.mxu0 0.0
    %562 = vmatpush1.msra.mxu0 0.0
    %563 = vmatprep.subr.mxu0 0.0
    %564 = vmatpush1.msra.mxu0 0.0
    %565 = vmatprep.subr.mxu0 0.0
    %566 = vmatpush1.msra.mxu0 0.0
    %567 = vmatprep.subr.mxu0 0.0
    %568 = vmatpush1.msra.mxu0 0.0
    %569 = vmatprep.subr.mxu0 0.0
    %570 = vmatpush1.msra.mxu0 0.0
    %571 = vmatprep.subr.mxu0 0.0
    %572 = vmatpush1.msra.mxu0 0.0
    %573 = vmatprep.subr.mxu0 0.0
    %574 = vmatpush1.msra.mxu0 0.0
    %575 = vmatprep.subr.mxu0 0.0
    %576 = vmatpush1.msra.mxu0 0.0
    %577 = vmatprep.subr.mxu0 0.0
    %578 = vmatpush1.msra.mxu0 0.0
    %579 = vmatprep.mubr.f32.mxu0 0.0
    %v580 = vand.u32 %v71, 4294901760
    %581 = vmatmul.mubr.f32.gmra.mrb[0].mxu0 %v580
    %v582 = vpop.f32.mrb[0].mxu0
    %v583 = vadd.f32 %v478, %v582
    %v584 = vpop.f32.mrb[0].mxu0
    %v585 = vadd.f32 %v480, %v584
    %586 = vmatprep.mubr.f32.mxu0 0.0
    %v587 = vand.u32 %v74, 4294901760
    %588 = vmatmul.mubr.f32.gmra.mrb[0].mxu0 %v587
    %v589 = vpop.f32.mrb[0].mxu0
    %v590 = vadd.f32 %v487, %v589
    %v591 = vpop.f32.mrb[0].mxu0
    %v592 = vadd.f32 %v489, %v591
    %593 = vmatprep.mubr.f32.mxu0 0.0
    %v594 = vand.u32 %v77, 4294901760
    %595 = vmatmul.mubr.f32.gmra.mrb[0].mxu0 %v594
    %v596 = vpop.f32.mrb[0].mxu0
    %v597 = vadd.f32 %v496, %v596
    %v598 = vpop.f32.mrb[0].mxu0
    %v599 = vadd.f32 %v498, %v598
    %600 = vmatprep.mubr.f32.mxu0 0.0
    %v601 = vand.u32 %v80, 4294901760
    %602 = vmatmul.mubr.f32.gmra.mrb[0].mxu0 %v601
    %v603 = vpop.f32.mrb[0].mxu0
    %v604 = vadd.f32 %v505, %v603
    %v605 = vpop.f32.mrb[0].mxu0
    %v606 = vadd.f32 %v507, %v605
    %607 = vdwg.mxu0
    %v608 = vand.u32 %v85, 4294901760
    %609 = vmatprep.subr.mxu0 %v608
    %v610 = vand.u32 %v83, 4294901760
    %611 = vmatpush1.msra.mxu0 %v610
    %612 = vmatprep.subr.mxu0 0.0
    %613 = vmatpush1.msra.mxu0 0.0
    %614 = vmatprep.subr.mxu0 0.0
    %615 = vmatpush1.msra.mxu0 0.0
    %616 = vmatprep.subr.mxu0 0.0
    %617 = vmatpush1.msra.mxu0 0.0
    %618 = vmatprep.subr.mxu0 0.0
    %619 = vmatpush1.msra.mxu0 0.0
    %620 = vmatprep.subr.mxu0 0.0
    %621 = vmatpush1.msra.mxu0 0.0
    %622 = vmatprep.subr.mxu0 0.0
    %623 = vmatpush1.msra.mxu0 0.0
    %624 = vmatprep.subr.mxu0 0.0
    %625 = vmatpush1.msra.mxu0 0.0
    %626 = vmatprep.subr.mxu0 0.0
    %627 = vmatpush1.msra.mxu0 0.0
    %628 = vmatprep.subr.mxu0 0.0
    %629 = vmatpush1.msra.mxu0 0.0
    %630 = vmatprep.subr.mxu0 0.0
    %631 = vmatpush1.msra.mxu0 0.0
    %632 = vmatprep.subr.mxu0 0.0
    %633 = vmatpush1.msra.mxu0 0.0
    %634 = vmatprep.subr.mxu0 0.0
    %635 = vmatpush1.msra.mxu0 0.0
    %636 = vmatprep.subr.mxu0 0.0
    %637 = vmatpush1.msra.mxu0 0.0
    %638 = vmatprep.subr.mxu0 0.0
    %639 = vmatpush1.msra.mxu0 0.0
    %640 = vmatprep.subr.mxu0 0.0
    %641 = vmatpush1.msra.mxu0 0.0
    %642 = vmatprep.subr.mxu0 0.0
    %643 = vmatpush1.msra.mxu0 0.0
    %644 = vmatprep.subr.mxu0 0.0
    %645 = vmatpush1.msra.mxu0 0.0
    %646 = vmatprep.subr.mxu0 0.0
    %647 = vmatpush1.msra.mxu0 0.0
    %648 = vmatprep.subr.mxu0 0.0
    %649 = vmatpush1.msra.mxu0 0.0
    %650 = vmatprep.subr.mxu0 0.0
    %651 = vmatpush1.msra.mxu0 0.0
    %652 = vmatprep.subr.mxu0 0.0
    %653 = vmatpush1.msra.mxu0 0.0
    %654 = vmatprep.subr.mxu0 0.0
    %655 = vmatpush1.msra.mxu0 0.0
    %656 = vmatprep.subr.mxu0 0.0
    %657 = vmatpush1.msra.mxu0 0.0
    %658 = vmatprep.subr.mxu0 0.0
    %659 = vmatpush1.msra.mxu0 0.0
    %660 = vmatprep.subr.mxu0 0.0
    %661 = vmatpush1.msra.mxu0 0.0
    %662 = vmatprep.subr.mxu0 0.0
    %663 = vmatpush1.msra.mxu0 0.0
    %664 = vmatprep.subr.mxu0 0.0
    %665 = vmatpush1.msra.mxu0 0.0
    %666 = vmatprep.subr.mxu0 0.0
    %667 = vmatpush1.msra.mxu0 0.0
    %668 = vmatprep.subr.mxu0 0.0
    %669 = vmatpush1.msra.mxu0 0.0
    %670 = vmatprep.subr.mxu0 0.0
    %671 = vmatpush1.msra.mxu0 0.0
    %672 = vmatprep.subr.mxu0 0.0
    %673 = vmatpush1.msra.mxu0 0.0
    %674 = vmatprep.mubr.f32.mxu0 0.0
    %v675 = vand.u32 %v71, 4294901760
    %676 = vmatmul.mubr.f32.gmra.mrb[0].mxu0 %v675
    %v677 = vpop.f32.mrb[0].mxu0
    %v678 = vadd.f32 %v583, %v677
    %v679 = vpop.f32.mrb[0].mxu0
    %v680 = vadd.f32 %v585, %v679
    %681 = vmatprep.mubr.f32.mxu0 0.0
    %v682 = vand.u32 %v74, 4294901760
    %683 = vmatmul.mubr.f32.gmra.mrb[0].mxu0 %v682
    %v684 = vpop.f32.mrb[0].mxu0
    %v685 = vadd.f32 %v590, %v684
    %v686 = vpop.f32.mrb[0].mxu0
    %v687 = vadd.f32 %v592, %v686
    %688 = vmatprep.mubr.f32.mxu0 0.0
    %v689 = vand.u32 %v77, 4294901760
    %690 = vmatmul.mubr.f32.gmra.mrb[0].mxu0 %v689
    %v691 = vpop.f32.mrb[0].mxu0
    %v692 = vadd.f32 %v597, %v691
    %v693 = vpop.f32.mrb[0].mxu0
    %v694 = vadd.f32 %v599, %v693
    %695 = vmatprep.mubr.f32.mxu0 0.0
    %v696 = vand.u32 %v80, 4294901760
    %697 = vmatmul.mubr.f32.gmra.mrb[0].mxu0 %v696
    %v698 = vpop.f32.mrb[0].mxu0
    %v699 = vadd.f32 %v604, %v698
    %v700 = vpop.f32.mrb[0].mxu0
    %v701 = vadd.f32 %v606, %v700
    %702 = vdwg.mxu0
    %v703 = vand.u32 %v89, 4294901760
    %704 = vmatprep.subr.mxu0 %v703
    %v705 = vand.u32 %v87, 4294901760
    %706 = vmatpush1.msra.mxu0 %v705
    %707 = vmatprep.subr.mxu0 0.0
    %708 = vmatpush1.msra.mxu0 0.0
    %709 = vmatprep.subr.mxu0 0.0
    %710 = vmatpush1.msra.mxu0 0.0
    %711 = vmatprep.subr.mxu0 0.0
    %712 = vmatpush1.msra.mxu0 0.0
    %713 = vmatprep.subr.mxu0 0.0
    %714 = vmatpush1.msra.mxu0 0.0
    %715 = vmatprep.subr.mxu0 0.0
    %716 = vmatpush1.msra.mxu0 0.0
    %717 = vmatprep.subr.mxu0 0.0
    %718 = vmatpush1.msra.mxu0 0.0
    %719 = vmatprep.subr.mxu0 0.0
    %720 = vmatpush1.msra.mxu0 0.0
    %721 = vmatprep.subr.mxu0 0.0
    %722 = vmatpush1.msra.mxu0 0.0
    %723 = vmatprep.subr.mxu0 0.0
    %724 = vmatpush1.msra.mxu0 0.0
    %725 = vmatprep.subr.mxu0 0.0
    %726 = vmatpush1.msra.mxu0 0.0
    %727 = vmatprep.subr.mxu0 0.0
    %728 = vmatpush1.msra.mxu0 0.0
    %729 = vmatprep.subr.mxu0 0.0
    %730 = vmatpush1.msra.mxu0 0.0
    %731 = vmatprep.subr.mxu0 0.0
    %732 = vmatpush1.msra.mxu0 0.0
    %733 = vmatprep.subr.mxu0 0.0
    %734 = vmatpush1.msra.mxu0 0.0
    %735 = vmatprep.subr.mxu0 0.0
    %736 = vmatpush1.msra.mxu0 0.0
    %737 = vmatprep.subr.mxu0 0.0
    %738 = vmatpush1.msra.mxu0 0.0
    %739 = vmatprep.subr.mxu0 0.0
    %740 = vmatpush1.msra.mxu0 0.0
    %741 = vmatprep.subr.mxu0 0.0
    %742 = vmatpush1.msra.mxu0 0.0
    %743 = vmatprep.subr.mxu0 0.0
    %744 = vmatpush1.msra.mxu0 0.0
    %745 = vmatprep.subr.mxu0 0.0
    %746 = vmatpush1.msra.mxu0 0.0
    %747 = vmatprep.subr.mxu0 0.0
    %748 = vmatpush1.msra.mxu0 0.0
    %749 = vmatprep.subr.mxu0 0.0
    %750 = vmatpush1.msra.mxu0 0.0
    %751 = vmatprep.subr.mxu0 0.0
    %752 = vmatpush1.msra.mxu0 0.0
    %753 = vmatprep.subr.mxu0 0.0
    %754 = vmatpush1.msra.mxu0 0.0
    %755 = vmatprep.subr.mxu0 0.0
    %756 = vmatpush1.msra.mxu0 0.0
    %757 = vmatprep.subr.mxu0 0.0
    %758 = vmatpush1.msra.mxu0 0.0
    %759 = vmatprep.subr.mxu0 0.0
    %760 = vmatpush1.msra.mxu0 0.0
    %761 = vmatprep.subr.mxu0 0.0
    %762 = vmatpush1.msra.mxu0 0.0
    %763 = vmatprep.subr.mxu0 0.0
    %764 = vmatpush1.msra.mxu0 0.0
    %765 = vmatprep.subr.mxu0 0.0
    %766 = vmatpush1.msra.mxu0 0.0
    %767 = vmatprep.subr.mxu0 0.0
    %768 = vmatpush1.msra.mxu0 0.0
    %769 = vmatprep.mubr.f32.mxu0 0.0
    %v770 = vand.u32 %v71, 4294901760
    %v771 = vsub.f32 %v71, %v770
    %v772 = vand.u32 %v771, 4294901760
    %v773 = vsub.f32 %v771, %v772
    %v774 = vand.u32 %v773, 4294901760
    %775 = vmatmul.mubr.f32.gmra.mrb[0].mxu0 %v774
    %v776 = vpop.f32.mrb[0].mxu0
    %v777 = vadd.f32 %v48, %v776
    %v778 = vpop.f32.mrb[0].mxu0
    %v779 = vadd.f32 %v48, %v778
    %780 = vmatprep.mubr.f32.mxu0 0.0
    %v781 = vand.u32 %v74, 4294901760
    %v782 = vsub.f32 %v74, %v781
    %v783 = vand.u32 %v782, 4294901760
    %v784 = vsub.f32 %v782, %v783
    %v785 = vand.u32 %v784, 4294901760
    %786 = vmatmul.mubr.f32.gmra.mrb[0].mxu0 %v785
    %v787 = vpop.f32.mrb[0].mxu0
    %v788 = vadd.f32 %v53, %v787
    %v789 = vpop.f32.mrb[0].mxu0
    %v790 = vadd.f32 %v53, %v789
    %791 = vmatprep.mubr.f32.mxu0 0.0
    %v792 = vand.u32 %v77, 4294901760
    %v793 = vsub.f32 %v77, %v792
    %v794 = vand.u32 %v793, 4294901760
    %v795 = vsub.f32 %v793, %v794
    %v796 = vand.u32 %v795, 4294901760
    %797 = vmatmul.mubr.f32.gmra.mrb[0].mxu0 %v796
    %v798 = vpop.f32.mrb[0].mxu0
    %v799 = vadd.f32 %v58, %v798
    %v800 = vpop.f32.mrb[0].mxu0
    %v801 = vadd.f32 %v58, %v800
    %802 = vmatprep.mubr.f32.mxu0 0.0
    %v803 = vand.u32 %v80, 4294901760
    %v804 = vsub.f32 %v80, %v803
    %v805 = vand.u32 %v804, 4294901760
    %v806 = vsub.f32 %v804, %v805
    %v807 = vand.u32 %v806, 4294901760
    %808 = vmatmul.mubr.f32.gmra.mrb[0].mxu0 %v807
    %v809 = vpop.f32.mrb[0].mxu0
    %v810 = vadd.f32 %v63, %v809
    %v811 = vpop.f32.mrb[0].mxu0
    %v812 = vadd.f32 %v63, %v811
    %813 = vdwg.mxu0
    %v814 = vand.u32 %v89, 4294901760
    %v815 = vsub.f32 %v89, %v814
    %v816 = vand.u32 %v815, 4294901760
    %v817 = vsub.f32 %v815, %v816
    %v818 = vand.u32 %v817, 4294901760
    %819 = vmatprep.subr.mxu0 %v818
    %v820 = vand.u32 %v87, 4294901760
    %v821 = vsub.f32 %v87, %v820
    %v822 = vand.u32 %v821, 4294901760
    %v823 = vsub.f32 %v821, %v822
    %v824 = vand.u32 %v823, 4294901760
    %825 = vmatpush1.msra.mxu0 %v824
    %826 = vmatprep.subr.mxu0 0.0
    %827 = vmatpush1.msra.mxu0 0.0
    %828 = vmatprep.subr.mxu0 0.0
    %829 = vmatpush1.msra.mxu0 0.0
    %830 = vmatprep.subr.mxu0 0.0
    %831 = vmatpush1.msra.mxu0 0.0
    %832 = vmatprep.subr.mxu0 0.0
    %833 = vmatpush1.msra.mxu0 0.0
    %834 = vmatprep.subr.mxu0 0.0
    %835 = vmatpush1.msra.mxu0 0.0
    %836 = vmatprep.subr.mxu0 0.0
    %837 = vmatpush1.msra.mxu0 0.0
    %838 = vmatprep.subr.mxu0 0.0
    %839 = vmatpush1.msra.mxu0 0.0
    %840 = vmatprep.subr.mxu0 0.0
    %841 = vmatpush1.msra.mxu0 0.0
    %842 = vmatprep.subr.mxu0 0.0
    %843 = vmatpush1.msra.mxu0 0.0
    %844 = vmatprep.subr.mxu0 0.0
    %845 = vmatpush1.msra.mxu0 0.0
    %846 = vmatprep.subr.mxu0 0.0
    %847 = vmatpush1.msra.mxu0 0.0
    %848 = vmatprep.subr.mxu0 0.0
    %849 = vmatpush1.msra.mxu0 0.0
    %850 = vmatprep.subr.mxu0 0.0
    %851 = vmatpush1.msra.mxu0 0.0
    %852 = vmatprep.subr.mxu0 0.0
    %853 = vmatpush1.msra.mxu0 0.0
    %854 = vmatprep.subr.mxu0 0.0
    %855 = vmatpush1.msra.mxu0 0.0
    %856 = vmatprep.subr.mxu0 0.0
    %857 = vmatpush1.msra.mxu0 0.0
    %858 = vmatprep.subr.mxu0 0.0
    %859 = vmatpush1.msra.mxu0 0.0
    %860 = vmatprep.subr.mxu0 0.0
    %861 = vmatpush1.msra.mxu0 0.0
    %862 = vmatprep.subr.mxu0 0.0
    %863 = vmatpush1.msra.mxu0 0.0
    %864 = vmatprep.subr.mxu0 0.0
    %865 = vmatpush1.msra.mxu0 0.0
    %866 = vmatprep.subr.mxu0 0.0
    %867 = vmatpush1.msra.mxu0 0.0
    %868 = vmatprep.subr.mxu0 0.0
    %869 = vmatpush1.msra.mxu0 0.0
    %870 = vmatprep.subr.mxu0 0.0
    %871 = vmatpush1.msra.mxu0 0.0
    %872 = vmatprep.subr.mxu0 0.0
    %873 = vmatpush1.msra.mxu0 0.0
    %874 = vmatprep.subr.mxu0 0.0
    %875 = vmatpush1.msra.mxu0 0.0
    %876 = vmatprep.subr.mxu0 0.0
    %877 = vmatpush1.msra.mxu0 0.0
    %878 = vmatprep.subr.mxu0 0.0
    %879 = vmatpush1.msra.mxu0 0.0
    %880 = vmatprep.subr.mxu0 0.0
    %881 = vmatpush1.msra.mxu0 0.0
    %882 = vmatprep.subr.mxu0 0.0
    %883 = vmatpush1.msra.mxu0 0.0
    %884 = vmatprep.subr.mxu0 0.0
    %885 = vmatpush1.msra.mxu0 0.0
    %886 = vmatprep.subr.mxu0 0.0
    %887 = vmatpush1.msra.mxu0 0.0
    %888 = vmatprep.mubr.f32.mxu0 0.0
    %v889 = vand.u32 %v71, 4294901760
    %890 = vmatmul.mubr.f32.gmra.mrb[0].mxu0 %v889
    %v891 = vpop.f32.mrb[0].mxu0
    %v892 = vadd.f32 %v777, %v891
    %v893 = vpop.f32.mrb[0].mxu0
    %v894 = vadd.f32 %v779, %v893
    %895 = vmatprep.mubr.f32.mxu0 0.0
    %v896 = vand.u32 %v74, 4294901760
    %897 = vmatmul.mubr.f32.gmra.mrb[0].mxu0 %v896
    %v898 = vpop.f32.mrb[0].mxu0
    %v899 = vadd.f32 %v788, %v898
    %v900 = vpop.f32.mrb[0].mxu0
    %v901 = vadd.f32 %v790, %v900
    %902 = vmatprep.mubr.f32.mxu0 0.0
    %v903 = vand.u32 %v77, 4294901760
    %904 = vmatmul.mubr.f32.gmra.mrb[0].mxu0 %v903
    %v905 = vpop.f32.mrb[0].mxu0
    %v906 = vadd.f32 %v799, %v905
    %v907 = vpop.f32.mrb[0].mxu0
    %v908 = vadd.f32 %v801, %v907
    %909 = vmatprep.mubr.f32.mxu0 0.0
    %v910 = vand.u32 %v80, 4294901760
    %911 = vmatmul.mubr.f32.gmra.mrb[0].mxu0 %v910
    %v912 = vpop.f32.mrb[0].mxu0
    %v913 = vadd.f32 %v810, %v912
    %v914 = vpop.f32.mrb[0].mxu0
    %v915 = vadd.f32 %v812, %v914
    %916 = vdwg.mxu0
    %v917 = vand.u32 %v89, 4294901760
    %v918 = vsub.f32 %v89, %v917
    %919 = vmatprep.subr.mxu0 %v918
    %v920 = vand.u32 %v87, 4294901760
    %v921 = vsub.f32 %v87, %v920
    %922 = vmatpush1.msra.mxu0 %v921
    %923 = vmatprep.subr.mxu0 0.0
    %924 = vmatpush1.msra.mxu0 0.0
    %925 = vmatprep.subr.mxu0 0.0
    %926 = vmatpush1.msra.mxu0 0.0
    %927 = vmatprep.subr.mxu0 0.0
    %928 = vmatpush1.msra.mxu0 0.0
    %929 = vmatprep.subr.mxu0 0.0
    %930 = vmatpush1.msra.mxu0 0.0
    %931 = vmatprep.subr.mxu0 0.0
    %932 = vmatpush1.msra.mxu0 0.0
    %933 = vmatprep.subr.mxu0 0.0
    %934 = vmatpush1.msra.mxu0 0.0
    %935 = vmatprep.subr.mxu0 0.0
    %936 = vmatpush1.msra.mxu0 0.0
    %937 = vmatprep.subr.mxu0 0.0
    %938 = vmatpush1.msra.mxu0 0.0
    %939 = vmatprep.subr.mxu0 0.0
    %940 = vmatpush1.msra.mxu0 0.0
    %941 = vmatprep.subr.mxu0 0.0
    %942 = vmatpush1.msra.mxu0 0.0
    %943 = vmatprep.subr.mxu0 0.0
    %944 = vmatpush1.msra.mxu0 0.0
    %945 = vmatprep.subr.mxu0 0.0
    %946 = vmatpush1.msra.mxu0 0.0
    %947 = vmatprep.subr.mxu0 0.0
    %948 = vmatpush1.msra.mxu0 0.0
    %949 = vmatprep.subr.mxu0 0.0
    %950 = vmatpush1.msra.mxu0 0.0
    %951 = vmatprep.subr.mxu0 0.0
    %952 = vmatpush1.msra.mxu0 0.0
    %953 = vmatprep.subr.mxu0 0.0
    %954 = vmatpush1.msra.mxu0 0.0
    %955 = vmatprep.subr.mxu0 0.0
    %956 = vmatpush1.msra.mxu0 0.0
    %957 = vmatprep.subr.mxu0 0.0
    %958 = vmatpush1.msra.mxu0 0.0
    %959 = vmatprep.subr.mxu0 0.0
    %960 = vmatpush1.msra.mxu0 0.0
    %961 = vmatprep.subr.mxu0 0.0
    %962 = vmatpush1.msra.mxu0 0.0
    %963 = vmatprep.subr.mxu0 0.0
    %964 = vmatpush1.msra.mxu0 0.0
    %965 = vmatprep.subr.mxu0 0.0
    %966 = vmatpush1.msra.mxu0 0.0
    %967 = vmatprep.subr.mxu0 0.0
    %968 = vmatpush1.msra.mxu0 0.0
    %969 = vmatprep.subr.mxu0 0.0
    %970 = vmatpush1.msra.mxu0 0.0
    %971 = vmatprep.subr.mxu0 0.0
    %972 = vmatpush1.msra.mxu0 0.0
    %973 = vmatprep.subr.mxu0 0.0
    %974 = vmatpush1.msra.mxu0 0.0
    %975 = vmatprep.subr.mxu0 0.0
    %976 = vmatpush1.msra.mxu0 0.0
    %977 = vmatprep.subr.mxu0 0.0
    %978 = vmatpush1.msra.mxu0 0.0
    %979 = vmatprep.subr.mxu0 0.0
    %980 = vmatpush1.msra.mxu0 0.0
    %981 = vmatprep.subr.mxu0 0.0
    %982 = vmatpush1.msra.mxu0 0.0
    %983 = vmatprep.subr.mxu0 0.0
    %984 = vmatpush1.msra.mxu0 0.0
    %985 = vmatprep.mubr.f32.mxu0 0.0
    %v986 = vand.u32 %v71, 4294901760
    %v987 = vsub.f32 %v71, %v986
    %988 = vmatmul.mubr.f32.gmra.mrb[0].mxu0 %v987
    %v989 = vpop.f32.mrb[0].mxu0
    %v990 = vadd.f32 %v892, %v989
    %v991 = vpop.f32.mrb[0].mxu0
    %v992 = vadd.f32 %v894, %v991
    %993 = vmatprep.mubr.f32.mxu0 0.0
    %v994 = vand.u32 %v74, 4294901760
    %v995 = vsub.f32 %v74, %v994
    %996 = vmatmul.mubr.f32.gmra.mrb[0].mxu0 %v995
    %v997 = vpop.f32.mrb[0].mxu0
    %v998 = vadd.f32 %v899, %v997
    %v999 = vpop.f32.mrb[0].mxu0
    %v1000 = vadd.f32 %v901, %v999
    %1001 = vmatprep.mubr.f32.mxu0 0.0
    %v1002 = vand.u32 %v77, 4294901760
    %v1003 = vsub.f32 %v77, %v1002
    %1004 = vmatmul.mubr.f32.gmra.mrb[0].mxu0 %v1003
    %v1005 = vpop.f32.mrb[0].mxu0
    %v1006 = vadd.f32 %v906, %v1005
    %v1007 = vpop.f32.mrb[0].mxu0
    %v1008 = vadd.f32 %v908, %v1007
    %1009 = vmatprep.mubr.f32.mxu0 0.0
    %v1010 = vand.u32 %v80, 4294901760
    %v1011 = vsub.f32 %v80, %v1010
    %1012 = vmatmul.mubr.f32.gmra.mrb[0].mxu0 %v1011
    %v1013 = vpop.f32.mrb[0].mxu0
    %v1014 = vadd.f32 %v913, %v1013
    %v1015 = vpop.f32.mrb[0].mxu0
    %v1016 = vadd.f32 %v915, %v1015
    %1017 = vdwg.mxu0
    %v1018 = vand.u32 %v89, 4294901760
    %1019 = vmatprep.subr.mxu0 %v1018
    %v1020 = vand.u32 %v87, 4294901760
    %1021 = vmatpush1.msra.mxu0 %v1020
    %1022 = vmatprep.subr.mxu0 0.0
    %1023 = vmatpush1.msra.mxu0 0.0
    %1024 = vmatprep.subr.mxu0 0.0
    %1025 = vmatpush1.msra.mxu0 0.0
    %1026 = vmatprep.subr.mxu0 0.0
    %1027 = vmatpush1.msra.mxu0 0.0
    %1028 = vmatprep.subr.mxu0 0.0
    %1029 = vmatpush1.msra.mxu0 0.0
    %1030 = vmatprep.subr.mxu0 0.0
    %1031 = vmatpush1.msra.mxu0 0.0
    %1032 = vmatprep.subr.mxu0 0.0
    %1033 = vmatpush1.msra.mxu0 0.0
    %1034 = vmatprep.subr.mxu0 0.0
    %1035 = vmatpush1.msra.mxu0 0.0
    %1036 = vmatprep.subr.mxu0 0.0
    %1037 = vmatpush1.msra.mxu0 0.0
    %1038 = vmatprep.subr.mxu0 0.0
    %1039 = vmatpush1.msra.mxu0 0.0
    %1040 = vmatprep.subr.mxu0 0.0
    %1041 = vmatpush1.msra.mxu0 0.0
    %1042 = vmatprep.subr.mxu0 0.0
    %1043 = vmatpush1.msra.mxu0 0.0
    %1044 = vmatprep.subr.mxu0 0.0
    %1045 = vmatpush1.msra.mxu0 0.0
    %1046 = vmatprep.subr.mxu0 0.0
    %1047 = vmatpush1.msra.mxu0 0.0
    %1048 = vmatprep.subr.mxu0 0.0
    %1049 = vmatpush1.msra.mxu0 0.0
    %1050 = vmatprep.subr.mxu0 0.0
    %1051 = vmatpush1.msra.mxu0 0.0
    %1052 = vmatprep.subr.mxu0 0.0
    %1053 = vmatpush1.msra.mxu0 0.0
    %1054 = vmatprep.subr.mxu0 0.0
    %1055 = vmatpush1.msra.mxu0 0.0
    %1056 = vmatprep.subr.mxu0 0.0
    %1057 = vmatpush1.msra.mxu0 0.0
    %1058 = vmatprep.subr.mxu0 0.0
    %1059 = vmatpush1.msra.mxu0 0.0
    %1060 = vmatprep.subr.mxu0 0.0
    %1061 = vmatpush1.msra.mxu0 0.0
    %1062 = vmatprep.subr.mxu0 0.0
    %1063 = vmatpush1.msra.mxu0 0.0
    %1064 = vmatprep.subr.mxu0 0.0
    %1065 = vmatpush1.msra.mxu0 0.0
    %1066 = vmatprep.subr.mxu0 0.0
    %1067 = vmatpush1.msra.mxu0 0.0
    %1068 = vmatprep.subr.mxu0 0.0
    %1069 = vmatpush1.msra.mxu0 0.0
    %1070 = vmatprep.subr.mxu0 0.0
    %1071 = vmatpush1.msra.mxu0 0.0
    %1072 = vmatprep.subr.mxu0 0.0
    %1073 = vmatpush1.msra.mxu0 0.0
    %1074 = vmatprep.subr.mxu0 0.0
    %1075 = vmatpush1.msra.mxu0 0.0
    %1076 = vmatprep.subr.mxu0 0.0
    %1077 = vmatpush1.msra.mxu0 0.0
    %1078 = vmatprep.subr.mxu0 0.0
    %1079 = vmatpush1.msra.mxu0 0.0
    %1080 = vmatprep.subr.mxu0 0.0
    %1081 = vmatpush1.msra.mxu0 0.0
    %1082 = vmatprep.subr.mxu0 0.0
    %1083 = vmatpush1.msra.mxu0 0.0
    %1084 = vmatprep.mubr.f32.mxu0 0.0
    %v1085 = vand.u32 %v71, 4294901760
    %v1086 = vsub.f32 %v71, %v1085
    %v1087 = vand.u32 %v1086, 4294901760
    %1088 = vmatmul.mubr.f32.gmra.mrb[0].mxu0 %v1087
    %v1089 = vpop.f32.mrb[0].mxu0
    %v1090 = vadd.f32 %v990, %v1089
    %v1091 = vpop.f32.mrb[0].mxu0
    %v1092 = vadd.f32 %v992, %v1091
    %1093 = vmatprep.mubr.f32.mxu0 0.0
    %v1094 = vand.u32 %v74, 4294901760
    %v1095 = vsub.f32 %v74, %v1094
    %v1096 = vand.u32 %v1095, 4294901760
    %1097 = vmatmul.mubr.f32.gmra.mrb[0].mxu0 %v1096
    %v1098 = vpop.f32.mrb[0].mxu0
    %v1099 = vadd.f32 %v998, %v1098
    %v1100 = vpop.f32.mrb[0].mxu0
    %v1101 = vadd.f32 %v1000, %v1100
    %1102 = vmatprep.mubr.f32.mxu0 0.0
    %v1103 = vand.u32 %v77, 4294901760
    %v1104 = vsub.f32 %v77, %v1103
    %v1105 = vand.u32 %v1104, 4294901760
    %1106 = vmatmul.mubr.f32.gmra.mrb[0].mxu0 %v1105
    %v1107 = vpop.f32.mrb[0].mxu0
    %v1108 = vadd.f32 %v1006, %v1107
    %v1109 = vpop.f32.mrb[0].mxu0
    %v1110 = vadd.f32 %v1008, %v1109
    %1111 = vmatprep.mubr.f32.mxu0 0.0
    %v1112 = vand.u32 %v80, 4294901760
    %v1113 = vsub.f32 %v80, %v1112
    %v1114 = vand.u32 %v1113, 4294901760
    %1115 = vmatmul.mubr.f32.gmra.mrb[0].mxu0 %v1114
    %v1116 = vpop.f32.mrb[0].mxu0
    %v1117 = vadd.f32 %v1014, %v1116
    %v1118 = vpop.f32.mrb[0].mxu0
    %v1119 = vadd.f32 %v1016, %v1118
    %1120 = vdwg.mxu0
    %v1121 = vand.u32 %v89, 4294901760
    %v1122 = vsub.f32 %v89, %v1121
    %v1123 = vand.u32 %v1122, 4294901760
    %1124 = vmatprep.subr.mxu0 %v1123
    %v1125 = vand.u32 %v87, 4294901760
    %v1126 = vsub.f32 %v87, %v1125
    %v1127 = vand.u32 %v1126, 4294901760
    %1128 = vmatpush1.msra.mxu0 %v1127
    %1129 = vmatprep.subr.mxu0 0.0
    %1130 = vmatpush1.msra.mxu0 0.0
    %1131 = vmatprep.subr.mxu0 0.0
    %1132 = vmatpush1.msra.mxu0 0.0
    %1133 = vmatprep.subr.mxu0 0.0
    %1134 = vmatpush1.msra.mxu0 0.0
    %1135 = vmatprep.subr.mxu0 0.0
    %1136 = vmatpush1.msra.mxu0 0.0
    %1137 = vmatprep.subr.mxu0 0.0
    %1138 = vmatpush1.msra.mxu0 0.0
    %1139 = vmatprep.subr.mxu0 0.0
    %1140 = vmatpush1.msra.mxu0 0.0
    %1141 = vmatprep.subr.mxu0 0.0
    %1142 = vmatpush1.msra.mxu0 0.0
    %1143 = vmatprep.subr.mxu0 0.0
    %1144 = vmatpush1.msra.mxu0 0.0
    %1145 = vmatprep.subr.mxu0 0.0
    %1146 = vmatpush1.msra.mxu0 0.0
    %1147 = vmatprep.subr.mxu0 0.0
    %1148 = vmatpush1.msra.mxu0 0.0
    %1149 = vmatprep.subr.mxu0 0.0
    %1150 = vmatpush1.msra.mxu0 0.0
    %1151 = vmatprep.subr.mxu0 0.0
    %1152 = vmatpush1.msra.mxu0 0.0
    %1153 = vmatprep.subr.mxu0 0.0
    %1154 = vmatpush1.msra.mxu0 0.0
    %1155 = vmatprep.subr.mxu0 0.0
    %1156 = vmatpush1.msra.mxu0 0.0
    %1157 = vmatprep.subr.mxu0 0.0
    %1158 = vmatpush1.msra.mxu0 0.0
    %1159 = vmatprep.subr.mxu0 0.0
    %1160 = vmatpush1.msra.mxu0 0.0
    %1161 = vmatprep.subr.mxu0 0.0
    %1162 = vmatpush1.msra.mxu0 0.0
    %1163 = vmatprep.subr.mxu0 0.0
    %1164 = vmatpush1.msra.mxu0 0.0
    %1165 = vmatprep.subr.mxu0 0.0
    %1166 = vmatpush1.msra.mxu0 0.0
    %1167 = vmatprep.subr.mxu0 0.0
    %1168 = vmatpush1.msra.mxu0 0.0
    %1169 = vmatprep.subr.mxu0 0.0
    %1170 = vmatpush1.msra.mxu0 0.0
    %1171 = vmatprep.subr.mxu0 0.0
    %1172 = vmatpush1.msra.mxu0 0.0
    %1173 = vmatprep.subr.mxu0 0.0
    %1174 = vmatpush1.msra.mxu0 0.0
    %1175 = vmatprep.subr.mxu0 0.0
    %1176 = vmatpush1.msra.mxu0 0.0
    %1177 = vmatprep.subr.mxu0 0.0
    %1178 = vmatpush1.msra.mxu0 0.0
    %1179 = vmatprep.subr.mxu0 0.0
    %1180 = vmatpush1.msra.mxu0 0.0
    %1181 = vmatprep.subr.mxu0 0.0
    %1182 = vmatpush1.msra.mxu0 0.0
    %1183 = vmatprep.subr.mxu0 0.0
    %1184 = vmatpush1.msra.mxu0 0.0
    %1185 = vmatprep.subr.mxu0 0.0
    %1186 = vmatpush1.msra.mxu0 0.0
    %1187 = vmatprep.subr.mxu0 0.0
    %1188 = vmatpush1.msra.mxu0 0.0
    %1189 = vmatprep.subr.mxu0 0.0
    %1190 = vmatpush1.msra.mxu0 0.0
    %1191 = vmatprep.mubr.f32.mxu0 0.0
    %v1192 = vand.u32 %v71, 4294901760
    %1193 = vmatmul.mubr.f32.gmra.mrb[0].mxu0 %v1192
    %v1194 = vpop.f32.mrb[0].mxu0
    %v1195 = vadd.f32 %v1090, %v1194
    %v1196 = vpop.f32.mrb[0].mxu0
    %v1197 = vadd.f32 %v1092, %v1196
    %1198 = vmatprep.mubr.f32.mxu0 0.0
    %v1199 = vand.u32 %v74, 4294901760
    %1200 = vmatmul.mubr.f32.gmra.mrb[0].mxu0 %v1199
    %v1201 = vpop.f32.mrb[0].mxu0
    %v1202 = vadd.f32 %v1099, %v1201
    %v1203 = vpop.f32.mrb[0].mxu0
    %v1204 = vadd.f32 %v1101, %v1203
    %1205 = vmatprep.mubr.f32.mxu0 0.0
    %v1206 = vand.u32 %v77, 4294901760
    %1207 = vmatmul.mubr.f32.gmra.mrb[0].mxu0 %v1206
    %v1208 = vpop.f32.mrb[0].mxu0
    %v1209 = vadd.f32 %v1108, %v1208
    %v1210 = vpop.f32.mrb[0].mxu0
    %v1211 = vadd.f32 %v1110, %v1210
    %1212 = vmatprep.mubr.f32.mxu0 0.0
    %v1213 = vand.u32 %v80, 4294901760
    %1214 = vmatmul.mubr.f32.gmra.mrb[0].mxu0 %v1213
    %v1215 = vpop.f32.mrb[0].mxu0
    %v1216 = vadd.f32 %v1117, %v1215
    %v1217 = vpop.f32.mrb[0].mxu0
    %v1218 = vadd.f32 %v1119, %v1217
    %1219 = vdwg.mxu0
    %v1220 = vand.u32 %v89, 4294901760
    %1221 = vmatprep.subr.mxu0 %v1220
    %v1222 = vand.u32 %v87, 4294901760
    %1223 = vmatpush1.msra.mxu0 %v1222
    %1224 = vmatprep.subr.mxu0 0.0
    %1225 = vmatpush1.msra.mxu0 0.0
    %1226 = vmatprep.subr.mxu0 0.0
    %1227 = vmatpush1.msra.mxu0 0.0
    %1228 = vmatprep.subr.mxu0 0.0
    %1229 = vmatpush1.msra.mxu0 0.0
    %1230 = vmatprep.subr.mxu0 0.0
    %1231 = vmatpush1.msra.mxu0 0.0
    %1232 = vmatprep.subr.mxu0 0.0
    %1233 = vmatpush1.msra.mxu0 0.0
    %1234 = vmatprep.subr.mxu0 0.0
    %1235 = vmatpush1.msra.mxu0 0.0
    %1236 = vmatprep.subr.mxu0 0.0
    %1237 = vmatpush1.msra.mxu0 0.0
    %1238 = vmatprep.subr.mxu0 0.0
    %1239 = vmatpush1.msra.mxu0 0.0
    %1240 = vmatprep.subr.mxu0 0.0
    %1241 = vmatpush1.msra.mxu0 0.0
    %1242 = vmatprep.subr.mxu0 0.0
    %1243 = vmatpush1.msra.mxu0 0.0
    %1244 = vmatprep.subr.mxu0 0.0
    %1245 = vmatpush1.msra.mxu0 0.0
    %1246 = vmatprep.subr.mxu0 0.0
    %1247 = vmatpush1.msra.mxu0 0.0
    %1248 = vmatprep.subr.mxu0 0.0
    %1249 = vmatpush1.msra.mxu0 0.0
    %1250 = vmatprep.subr.mxu0 0.0
    %1251 = vmatpush1.msra.mxu0 0.0
    %1252 = vmatprep.subr.mxu0 0.0
    %1253 = vmatpush1.msra.mxu0 0.0
    %1254 = vmatprep.subr.mxu0 0.0
    %1255 = vmatpush1.msra.mxu0 0.0
    %1256 = vmatprep.subr.mxu0 0.0
    %1257 = vmatpush1.msra.mxu0 0.0
    %1258 = vmatprep.subr.mxu0 0.0
    %1259 = vmatpush1.msra.mxu0 0.0
    %1260 = vmatprep.subr.mxu0 0.0
    %1261 = vmatpush1.msra.mxu0 0.0
    %1262 = vmatprep.subr.mxu0 0.0
    %1263 = vmatpush1.msra.mxu0 0.0
    %1264 = vmatprep.subr.mxu0 0.0
    %1265 = vmatpush1.msra.mxu0 0.0
    %1266 = vmatprep.subr.mxu0 0.0
    %1267 = vmatpush1.msra.mxu0 0.0
    %1268 = vmatprep.subr.mxu0 0.0
    %1269 = vmatpush1.msra.mxu0 0.0
    %1270 = vmatprep.subr.mxu0 0.0
    %1271 = vmatpush1.msra.mxu0 0.0
    %1272 = vmatprep.subr.mxu0 0.0
    %1273 = vmatpush1.msra.mxu0 0.0
    %1274 = vmatprep.subr.mxu0 0.0
    %1275 = vmatpush1.msra.mxu0 0.0
    %1276 = vmatprep.subr.mxu0 0.0
    %1277 = vmatpush1.msra.mxu0 0.0
    %1278 = vmatprep.subr.mxu0 0.0
    %1279 = vmatpush1.msra.mxu0 0.0
    %1280 = vmatprep.subr.mxu0 0.0
    %1281 = vmatpush1.msra.mxu0 0.0
    %1282 = vmatprep.subr.mxu0 0.0
    %1283 = vmatpush1.msra.mxu0 0.0
    %1284 = vmatprep.subr.mxu0 0.0
    %1285 = vmatpush1.msra.mxu0 0.0
    %1286 = vmatprep.mubr.f32.mxu0 0.0
    %v1287 = vand.u32 %v71, 4294901760
    %1288 = vmatmul.mubr.f32.gmra.mrb[0].mxu0 %v1287
    %v1289 = vpop.f32.mrb[0].mxu0
    %v1290 = vadd.f32 %v1195, %v1289
    %v1291 = vpop.f32.mrb[0].mxu0
    %v1292 = vadd.f32 %v1197, %v1291
    %1293 = vmatprep.mubr.f32.mxu0 0.0
    %v1294 = vand.u32 %v74, 4294901760
    %1295 = vmatmul.mubr.f32.gmra.mrb[0].mxu0 %v1294
    %v1296 = vpop.f32.mrb[0].mxu0
    %v1297 = vadd.f32 %v1202, %v1296
    %v1298 = vpop.f32.mrb[0].mxu0
    %v1299 = vadd.f32 %v1204, %v1298
    %1300 = vmatprep.mubr.f32.mxu0 0.0
    %v1301 = vand.u32 %v77, 4294901760
    %1302 = vmatmul.mubr.f32.gmra.mrb[0].mxu0 %v1301
    %v1303 = vpop.f32.mrb[0].mxu0
    %v1304 = vadd.f32 %v1209, %v1303
    %v1305 = vpop.f32.mrb[0].mxu0
    %v1306 = vadd.f32 %v1211, %v1305
    %1307 = vmatprep.mubr.f32.mxu0 0.0
    %v1308 = vand.u32 %v80, 4294901760
    %1309 = vmatmul.mubr.f32.gmra.mrb[0].mxu0 %v1308
    %v1310 = vpop.f32.mrb[0].mxu0
    %v1311 = vadd.f32 %v1216, %v1310
    %v1312 = vpop.f32.mrb[0].mxu0
    %v1313 = vadd.f32 %v1218, %v1312
    %1314 = vdwg.mxu0
    %v1315 = vtanh.pop %v678
    %v1316 = vtanh.pop %v680
    %v1317 = vtanh.pop %v1290
    %v1318 = vtanh.pop %v1292
    %v1319 = vtanh.pop %v685
    %v1320 = vtanh.pop %v687
    %v1321 = vtanh.pop %v1297
    %v1322 = vtanh.pop %v1299
    %v1323 = vtanh.pop %v692
    %v1324 = vtanh.pop %v694
    %v1325 = vtanh.pop %v1304
    %v1326 = vtanh.pop %v1306
    %v1327 = vtanh.pop %v699
    %v1328 = vtanh.pop %v701
    %v1329 = vtanh.pop %v1311
    %v1330 = vtanh.pop %v1313
    %v1331 = vld [vmem:[%s3] sm:$0xff]
    %v1332 = vld [vmem:[%s3 + $0x8] sm:$0xff]
    %v1333 = vld [vmem:[%s3 + $0x10] sm:$0xff]
    %v1334 = vld [vmem:[%s3 + $0x18] sm:$0xff]
    %v1335 = vld [vmem:[%s4] sm:$0xff]
    %v1336 = vld [vmem:[%s4 + $0x8] sm:$0xff]
    %v1337 = vld [vmem:[%s4 + $0x10] sm:$0xff]
    %v1338 = vld [vmem:[%s4 + $0x18] sm:$0xff]
    %1340 = vset.pattern.permute.xlu0 0
    %1341 = vperm.xlu0 %1340, %v1335
    %v1342 = vpop.permute.xlu0 %1341
    %1345 = vset.pattern.permute.xlu0 0
    %1346 = vperm.xlu0 %1345, %v1336
    %v1347 = vpop.permute.xlu0 %1346
    %1350 = vset.pattern.permute.xlu0 0
    %1351 = vperm.xlu0 %1350, %v1337
    %v1352 = vpop.permute.xlu0 %1351
    %1355 = vset.pattern.permute.xlu0 0
    %1356 = vperm.xlu0 %1355, %v1338
    %v1357 = vpop.permute.xlu0 %1356
    %vm1359 = vcmask 261120
    %v1361 = vsel %vm1359, %v1331, 0
    %v1364 = vsel %vm1359, %v1332, 0
    %v1367 = vsel %vm1359, %v1333, 0
    %v1370 = vsel %vm1359, %v1334, 0
    %v1372 = vand.u32 %v1316, 4294901760
    %1373 = vmatprep.subr.mxu0 %v1372
    %v1374 = vand.u32 %v1315, 4294901760
    %1375 = vmatpush1.msra.mxu0 %v1374
    %v1376 = vand.u32 %v1320, 4294901760
    %1377 = vmatprep.subr.mxu0 %v1376
    %v1378 = vand.u32 %v1319, 4294901760
    %1379 = vmatpush1.msra.mxu0 %v1378
    %v1380 = vand.u32 %v1324, 4294901760
    %1381 = vmatprep.subr.mxu0 %v1380
    %v1382 = vand.u32 %v1323, 4294901760
    %1383 = vmatpush1.msra.mxu0 %v1382
    %v1384 = vand.u32 %v1328, 4294901760
    %1385 = vmatprep.subr.mxu0 %v1384
    %v1386 = vand.u32 %v1327, 4294901760
    %1387 = vmatpush1.msra.mxu0 %v1386
    %1388 = vmatprep.subr.mxu0 0.0
    %1389 = vmatpush1.msra.mxu0 0.0
    %1390 = vmatprep.subr.mxu0 0.0
    %1391 = vmatpush1.msra.mxu0 0.0
    %1392 = vmatprep.subr.mxu0 0.0
    %1393 = vmatpush1.msra.mxu0 0.0
    %1394 = vmatprep.subr.mxu0 0.0
    %1395 = vmatpush1.msra.mxu0 0.0
    %1396 = vmatprep.subr.mxu0 0.0
    %1397 = vmatpush1.msra.mxu0 0.0
    %1398 = vmatprep.subr.mxu0 0.0
    %1399 = vmatpush1.msra.mxu0 0.0
    %1400 = vmatprep.subr.mxu0 0.0
    %1401 = vmatpush1.msra.mxu0 0.0
    %1402 = vmatprep.subr.mxu0 0.0
    %1403 = vmatpush1.msra.mxu0 0.0
    %1404 = vmatprep.subr.mxu0 0.0
    %1405 = vmatpush1.msra.mxu0 0.0
    %1406 = vmatprep.subr.mxu0 0.0
    %1407 = vmatpush1.msra.mxu0 0.0
    %1408 = vmatprep.subr.mxu0 0.0
    %1409 = vmatpush1.msra.mxu0 0.0
    %1410 = vmatprep.subr.mxu0 0.0
    %1411 = vmatpush1.msra.mxu0 0.0
    %1412 = vmatprep.subr.mxu0 0.0
    %1413 = vmatpush1.msra.mxu0 0.0
    %1414 = vmatprep.subr.mxu0 0.0
    %1415 = vmatpush1.msra.mxu0 0.0
    %1416 = vmatprep.subr.mxu0 0.0
    %1417 = vmatpush1.msra.mxu0 0.0
    %1418 = vmatprep.subr.mxu0 0.0
    %1419 = vmatpush1.msra.mxu0 0.0
    %1420 = vmatprep.subr.mxu0 0.0
    %1421 = vmatpush1.msra.mxu0 0.0
    %1422 = vmatprep.subr.mxu0 0.0
    %1423 = vmatpush1.msra.mxu0 0.0
    %1424 = vmatprep.subr.mxu0 0.0
    %1425 = vmatpush1.msra.mxu0 0.0
    %1426 = vmatprep.subr.mxu0 0.0
    %1427 = vmatpush1.msra.mxu0 0.0
    %1428 = vmatprep.subr.mxu0 0.0
    %1429 = vmatpush1.msra.mxu0 0.0
    %1430 = vmatprep.subr.mxu0 0.0
    %1431 = vmatpush1.msra.mxu0 0.0
    %1432 = vmatprep.subr.mxu0 0.0
    %1433 = vmatpush1.msra.mxu0 0.0
    %1434 = vmatprep.subr.mxu0 0.0
    %1435 = vmatpush1.msra.mxu0 0.0
    %1436 = vmatprep.subr.mxu0 0.0
    %1437 = vmatpush1.msra.mxu0 0.0
    %1438 = vmatprep.subr.mxu0 0.0
    %1439 = vmatpush1.msra.mxu0 0.0
    %1440 = vmatprep.subr.mxu0 0.0
    %1441 = vmatpush1.msra.mxu0 0.0
    %1442 = vmatprep.subr.mxu0 0.0
    %1443 = vmatpush1.msra.mxu0 0.0
    %1444 = vmatprep.mubr.f32.mxu0 0.0
    %v1445 = vand.u32 %v1361, 4294901760
    %v1446 = vsub.f32 %v1361, %v1445
    %v1447 = vand.u32 %v1446, 4294901760
    %v1448 = vsub.f32 %v1446, %v1447
    %v1449 = vand.u32 %v1448, 4294901760
    %1450 = vmatmul.mubr.f32.gmra.mrb[0].mxu0 %v1449
    %v1451 = vpop.f32.mrb[0].mxu0
    %v1452 = vadd.f32 %v1342, %v1451
    %v1453 = vpop.f32.mrb[0].mxu0
    %v1454 = vadd.f32 %v1342, %v1453
    %1455 = vmatprep.mubr.f32.mxu0 0.0
    %v1456 = vand.u32 %v1364, 4294901760
    %v1457 = vsub.f32 %v1364, %v1456
    %v1458 = vand.u32 %v1457, 4294901760
    %v1459 = vsub.f32 %v1457, %v1458
    %v1460 = vand.u32 %v1459, 4294901760
    %1461 = vmatmul.mubr.f32.gmra.mrb[0].mxu0 %v1460
    %v1462 = vpop.f32.mrb[0].mxu0
    %v1463 = vadd.f32 %v1347, %v1462
    %v1464 = vpop.f32.mrb[0].mxu0
    %v1465 = vadd.f32 %v1347, %v1464
    %1466 = vmatprep.mubr.f32.mxu0 0.0
    %v1467 = vand.u32 %v1367, 4294901760
    %v1468 = vsub.f32 %v1367, %v1467
    %v1469 = vand.u32 %v1468, 4294901760
    %v1470 = vsub.f32 %v1468, %v1469
    %v1471 = vand.u32 %v1470, 4294901760
    %1472 = vmatmul.mubr.f32.gmra.mrb[0].mxu0 %v1471
    %v1473 = vpop.f32.mrb[0].mxu0
    %v1474 = vadd.f32 %v1352, %v1473
    %v1475 = vpop.f32.mrb[0].mxu0
    %v1476 = vadd.f32 %v1352, %v1475
    %1477 = vmatprep.mubr.f32.mxu0 0.0
    %v1478 = vand.u32 %v1370, 4294901760
    %v1479 = vsub.f32 %v1370, %v1478
    %v1480 = vand.u32 %v1479, 4294901760
    %v1481 = vsub.f32 %v1479, %v1480
    %v1482 = vand.u32 %v1481, 4294901760
    %1483 = vmatmul.mubr.f32.gmra.mrb[0].mxu0 %v1482
    %v1484 = vpop.f32.mrb[0].mxu0
    %v1485 = vadd.f32 %v1357, %v1484
    %v1486 = vpop.f32.mrb[0].mxu0
    %v1487 = vadd.f32 %v1357, %v1486
    %1488 = vdwg.mxu0
    %v1489 = vand.u32 %v1316, 4294901760
    %v1490 = vsub.f32 %v1316, %v1489
    %v1491 = vand.u32 %v1490, 4294901760
    %v1492 = vsub.f32 %v1490, %v1491
    %v1493 = vand.u32 %v1492, 4294901760
    %1494 = vmatprep.subr.mxu0 %v1493
    %v1495 = vand.u32 %v1315, 4294901760
    %v1496 = vsub.f32 %v1315, %v1495
    %v1497 = vand.u32 %v1496, 4294901760
    %v1498 = vsub.f32 %v1496, %v1497
    %v1499 = vand.u32 %v1498, 4294901760
    %1500 = vmatpush1.msra.mxu0 %v1499
    %v1501 = vand.u32 %v1320, 4294901760
    %v1502 = vsub.f32 %v1320, %v1501
    %v1503 = vand.u32 %v1502, 4294901760
    %v1504 = vsub.f32 %v1502, %v1503
    %v1505 = vand.u32 %v1504, 4294901760
    %1506 = vmatprep.subr.mxu0 %v1505
    %v1507 = vand.u32 %v1319, 4294901760
    %v1508 = vsub.f32 %v1319, %v1507
    %v1509 = vand.u32 %v1508, 4294901760
    %v1510 = vsub.f32 %v1508, %v1509
    %v1511 = vand.u32 %v1510, 4294901760
    %1512 = vmatpush1.msra.mxu0 %v1511
    %v1513 = vand.u32 %v1324, 4294901760
    %v1514 = vsub.f32 %v1324, %v1513
    %v1515 = vand.u32 %v1514, 4294901760
    %v1516 = vsub.f32 %v1514, %v1515
    %v1517 = vand.u32 %v1516, 4294901760
    %1518 = vmatprep.subr.mxu0 %v1517
    %v1519 = vand.u32 %v1323, 4294901760
    %v1520 = vsub.f32 %v1323, %v1519
    %v1521 = vand.u32 %v1520, 4294901760
    %v1522 = vsub.f32 %v1520, %v1521
    %v1523 = vand.u32 %v1522, 4294901760
    %1524 = vmatpush1.msra.mxu0 %v1523
    %v1525 = vand.u32 %v1328, 4294901760
    %v1526 = vsub.f32 %v1328, %v1525
    %v1527 = vand.u32 %v1526, 4294901760
    %v1528 = vsub.f32 %v1526, %v1527
    %v1529 = vand.u32 %v1528, 4294901760
    %1530 = vmatprep.subr.mxu0 %v1529
    %v1531 = vand.u32 %v1327, 4294901760
    %v1532 = vsub.f32 %v1327, %v1531
    %v1533 = vand.u32 %v1532, 4294901760
    %v1534 = vsub.f32 %v1532, %v1533
    %v1535 = vand.u32 %v1534, 4294901760
    %1536 = vmatpush1.msra.mxu0 %v1535
    %1537 = vmatprep.subr.mxu0 0.0
    %1538 = vmatpush1.msra.mxu0 0.0
    %1539 = vmatprep.subr.mxu0 0.0
    %1540 = vmatpush1.msra.mxu0 0.0
    %1541 = vmatprep.subr.mxu0 0.0
    %1542 = vmatpush1.msra.mxu0 0.0
    %1543 = vmatprep.subr.mxu0 0.0
    %1544 = vmatpush1.msra.mxu0 0.0
    %1545 = vmatprep.subr.mxu0 0.0
    %1546 = vmatpush1.msra.mxu0 0.0
    %1547 = vmatprep.subr.mxu0 0.0
    %1548 = vmatpush1.msra.mxu0 0.0
    %1549 = vmatprep.subr.mxu0 0.0
    %1550 = vmatpush1.msra.mxu0 0.0
    %1551 = vmatprep.subr.mxu0 0.0
    %1552 = vmatpush1.msra.mxu0 0.0
    %1553 = vmatprep.subr.mxu0 0.0
    %1554 = vmatpush1.msra.mxu0 0.0
    %1555 = vmatprep.subr.mxu0 0.0
    %1556 = vmatpush1.msra.mxu0 0.0
    %1557 = vmatprep.subr.mxu0 0.0
    %1558 = vmatpush1.msra.mxu0 0.0
    %1559 = vmatprep.subr.mxu0 0.0
    %1560 = vmatpush1.msra.mxu0 0.0
    %1561 = vmatprep.subr.mxu0 0.0
    %1562 = vmatpush1.msra.mxu0 0.0
    %1563 = vmatprep.subr.mxu0 0.0
    %1564 = vmatpush1.msra.mxu0 0.0
    %1565 = vmatprep.subr.mxu0 0.0
    %1566 = vmatpush1.msra.mxu0 0.0
    %1567 = vmatprep.subr.mxu0 0.0
    %1568 = vmatpush1.msra.mxu0 0.0
    %1569 = vmatprep.subr.mxu0 0.0
    %1570 = vmatpush1.msra.mxu0 0.0
    %1571 = vmatprep.subr.mxu0 0.0
    %1572 = vmatpush1.msra.mxu0 0.0
    %1573 = vmatprep.subr.mxu0 0.0
    %1574 = vmatpush1.msra.mxu0 0.0
    %1575 = vmatprep.subr.mxu0 0.0
    %1576 = vmatpush1.msra.mxu0 0.0
    %1577 = vmatprep.subr.mxu0 0.0
    %1578 = vmatpush1.msra.mxu0 0.0
    %1579 = vmatprep.subr.mxu0 0.0
    %1580 = vmatpush1.msra.mxu0 0.0
    %1581 = vmatprep.subr.mxu0 0.0
    %1582 = vmatpush1.msra.mxu0 0.0
    %1583 = vmatprep.subr.mxu0 0.0
    %1584 = vmatpush1.msra.mxu0 0.0
    %1585 = vmatprep.subr.mxu0 0.0
    %1586 = vmatpush1.msra.mxu0 0.0
    %1587 = vmatprep.subr.mxu0 0.0
    %1588 = vmatpush1.msra.mxu0 0.0
    %1589 = vmatprep.subr.mxu0 0.0
    %1590 = vmatpush1.msra.mxu0 0.0
    %1591 = vmatprep.subr.mxu0 0.0
    %1592 = vmatpush1.msra.mxu0 0.0
    %1593 = vmatprep.mubr.f32.mxu0 0.0
    %v1594 = vand.u32 %v1361, 4294901760
    %1595 = vmatmul.mubr.f32.gmra.mrb[0].mxu0 %v1594
    %v1596 = vpop.f32.mrb[0].mxu0
    %v1597 = vadd.f32 %v1452, %v1596
    %v1598 = vpop.f32.mrb[0].mxu0
    %v1599 = vadd.f32 %v1454, %v1598
    %1600 = vmatprep.mubr.f32.mxu0 0.0
    %v1601 = vand.u32 %v1364, 4294901760
    %1602 = vmatmul.mubr.f32.gmra.mrb[0].mxu0 %v1601
    %v1603 = vpop.f32.mrb[0].mxu0
    %v1604 = vadd.f32 %v1463, %v1603
    %v1605 = vpop.f32.mrb[0].mxu0
    %v1606 = vadd.f32 %v1465, %v1605
    %1607 = vmatprep.mubr.f32.mxu0 0.0
    %v1608 = vand.u32 %v1367, 4294901760
    %1609 = vmatmul.mubr.f32.gmra.mrb[0].mxu0 %v1608
    %v1610 = vpop.f32.mrb[0].mxu0
    %v1611 = vadd.f32 %v1474, %v1610
    %v1612 = vpop.f32.mrb[0].mxu0
    %v1613 = vadd.f32 %v1476, %v1612
    %1614 = vmatprep.mubr.f32.mxu0 0.0
    %v1615 = vand.u32 %v1370, 4294901760
    %1616 = vmatmul.mubr.f32.gmra.mrb[0].mxu0 %v1615
    %v1617 = vpop.f32.mrb[0].mxu0
    %v1618 = vadd.f32 %v1485, %v1617
    %v1619 = vpop.f32.mrb[0].mxu0
    %v1620 = vadd.f32 %v1487, %v1619
    %1621 = vdwg.mxu0
    %v1622 = vand.u32 %v1316, 4294901760
    %v1623 = vsub.f32 %v1316, %v1622
    %1624 = vmatprep.subr.mxu0 %v1623
    %v1625 = vand.u32 %v1315, 4294901760
    %v1626 = vsub.f32 %v1315, %v1625
    %1627 = vmatpush1.msra.mxu0 %v1626
    %v1628 = vand.u32 %v1320, 4294901760
    %v1629 = vsub.f32 %v1320, %v1628
    %1630 = vmatprep.subr.mxu0 %v1629
    %v1631 = vand.u32 %v1319, 4294901760
    %v1632 = vsub.f32 %v1319, %v1631
    %1633 = vmatpush1.msra.mxu0 %v1632
    %v1634 = vand.u32 %v1324, 4294901760
    %v1635 = vsub.f32 %v1324, %v1634
    %1636 = vmatprep.subr.mxu0 %v1635
    %v1637 = vand.u32 %v1323, 4294901760
    %v1638 = vsub.f32 %v1323, %v1637
    %1639 = vmatpush1.msra.mxu0 %v1638
    %v1640 = vand.u32 %v1328, 4294901760
    %v1641 = vsub.f32 %v1328, %v1640
    %1642 = vmatprep.subr.mxu0 %v1641
    %v1643 = vand.u32 %v1327, 4294901760
    %v1644 = vsub.f32 %v1327, %v1643
    %1645 = vmatpush1.msra.mxu0 %v1644
    %1646 = vmatprep.subr.mxu0 0.0
    %1647 = vmatpush1.msra.mxu0 0.0
    %1648 = vmatprep.subr.mxu0 0.0
    %1649 = vmatpush1.msra.mxu0 0.0
    %1650 = vmatprep.subr.mxu0 0.0
    %1651 = vmatpush1.msra.mxu0 0.0
    %1652 = vmatprep.subr.mxu0 0.0
    %1653 = vmatpush1.msra.mxu0 0.0
    %1654 = vmatprep.subr.mxu0 0.0
    %1655 = vmatpush1.msra.mxu0 0.0
    %1656 = vmatprep.subr.mxu0 0.0
    %1657 = vmatpush1.msra.mxu0 0.0
    %1658 = vmatprep.subr.mxu0 0.0
    %1659 = vmatpush1.msra.mxu0 0.0
    %1660 = vmatprep.subr.mxu0 0.0
    %1661 = vmatpush1.msra.mxu0 0.0
    %1662 = vmatprep.subr.mxu0 0.0
    %1663 = vmatpush1.msra.mxu0 0.0
    %1664 = vmatprep.subr.mxu0 0.0
    %1665 = vmatpush1.msra.mxu0 0.0
    %1666 = vmatprep.subr.mxu0 0.0
    %1667 = vmatpush1.msra.mxu0 0.0
    %1668 = vmatprep.subr.mxu0 0.0
    %1669 = vmatpush1.msra.mxu0 0.0
    %1670 = vmatprep.subr.mxu0 0.0
    %1671 = vmatpush1.msra.mxu0 0.0
    %1672 = vmatprep.subr.mxu0 0.0
    %1673 = vmatpush1.msra.mxu0 0.0
    %1674 = vmatprep.subr.mxu0 0.0
    %1675 = vmatpush1.msra.mxu0 0.0
    %1676 = vmatprep.subr.mxu0 0.0
    %1677 = vmatpush1.msra.mxu0 0.0
    %1678 = vmatprep.subr.mxu0 0.0
    %1679 = vmatpush1.msra.mxu0 0.0
    %1680 = vmatprep.subr.mxu0 0.0
    %1681 = vmatpush1.msra.mxu0 0.0
    %1682 = vmatprep.subr.mxu0 0.0
    %1683 = vmatpush1.msra.mxu0 0.0
    %1684 = vmatprep.subr.mxu0 0.0
    %1685 = vmatpush1.msra.mxu0 0.0
    %1686 = vmatprep.subr.mxu0 0.0
    %1687 = vmatpush1.msra.mxu0 0.0
    %1688 = vmatprep.subr.mxu0 0.0
    %1689 = vmatpush1.msra.mxu0 0.0
    %1690 = vmatprep.subr.mxu0 0.0
    %1691 = vmatpush1.msra.mxu0 0.0
    %1692 = vmatprep.subr.mxu0 0.0
    %1693 = vmatpush1.msra.mxu0 0.0
    %1694 = vmatprep.subr.mxu0 0.0
    %1695 = vmatpush1.msra.mxu0 0.0
    %1696 = vmatprep.subr.mxu0 0.0
    %1697 = vmatpush1.msra.mxu0 0.0
    %1698 = vmatprep.subr.mxu0 0.0
    %1699 = vmatpush1.msra.mxu0 0.0
    %1700 = vmatprep.subr.mxu0 0.0
    %1701 = vmatpush1.msra.mxu0 0.0
    %1702 = vmatprep.mubr.f32.mxu0 0.0
    %v1703 = vand.u32 %v1361, 4294901760
    %v1704 = vsub.f32 %v1361, %v1703
    %1705 = vmatmul.mubr.f32.gmra.mrb[0].mxu0 %v1704
    %v1706 = vpop.f32.mrb[0].mxu0
    %v1707 = vadd.f32 %v1597, %v1706
    %v1708 = vpop.f32.mrb[0].mxu0
    %v1709 = vadd.f32 %v1599, %v1708
    %1710 = vmatprep.mubr.f32.mxu0 0.0
    %v1711 = vand.u32 %v1364, 4294901760
    %v1712 = vsub.f32 %v1364, %v1711
    %1713 = vmatmul.mubr.f32.gmra.mrb[0].mxu0 %v1712
    %v1714 = vpop.f32.mrb[0].mxu0
    %v1715 = vadd.f32 %v1604, %v1714
    %v1716 = vpop.f32.mrb[0].mxu0
    %v1717 = vadd.f32 %v1606, %v1716
    %1718 = vmatprep.mubr.f32.mxu0 0.0
    %v1719 = vand.u32 %v1367, 4294901760
    %v1720 = vsub.f32 %v1367, %v1719
    %1721 = vmatmul.mubr.f32.gmra.mrb[0].mxu0 %v1720
    %v1722 = vpop.f32.mrb[0].mxu0
    %v1723 = vadd.f32 %v1611, %v1722
    %v1724 = vpop.f32.mrb[0].mxu0
    %v1725 = vadd.f32 %v1613, %v1724
    %1726 = vmatprep.mubr.f32.mxu0 0.0
    %v1727 = vand.u32 %v1370, 4294901760
    %v1728 = vsub.f32 %v1370, %v1727
    %1729 = vmatmul.mubr.f32.gmra.mrb[0].mxu0 %v1728
    %v1730 = vpop.f32.mrb[0].mxu0
    %v1731 = vadd.f32 %v1618, %v1730
    %v1732 = vpop.f32.mrb[0].mxu0
    %v1733 = vadd.f32 %v1620, %v1732
    %1734 = vdwg.mxu0
    %v1735 = vand.u32 %v1316, 4294901760
    %1736 = vmatprep.subr.mxu0 %v1735
    %v1737 = vand.u32 %v1315, 4294901760
    %1738 = vmatpush1.msra.mxu0 %v1737
    %v1739 = vand.u32 %v1320, 4294901760
    %1740 = vmatprep.subr.mxu0 %v1739
    %v1741 = vand.u32 %v1319, 4294901760
    %1742 = vmatpush1.msra.mxu0 %v1741
    %v1743 = vand.u32 %v1324, 4294901760
    %1744 = vmatprep.subr.mxu0 %v1743
    %v1745 = vand.u32 %v1323, 4294901760
    %1746 = vmatpush1.msra.mxu0 %v1745
    %v1747 = vand.u32 %v1328, 4294901760
    %1748 = vmatprep.subr.mxu0 %v1747
    %v1749 = vand.u32 %v1327, 4294901760
    %1750 = vmatpush1.msra.mxu0 %v1749
    %1751 = vmatprep.subr.mxu0 0.0
    %1752 = vmatpush1.msra.mxu0 0.0
    %1753 = vmatprep.subr.mxu0 0.0
    %1754 = vmatpush1.msra.mxu0 0.0
    %1755 = vmatprep.subr.mxu0 0.0
    %1756 = vmatpush1.msra.mxu0 0.0
    %1757 = vmatprep.subr.mxu0 0.0
    %1758 = vmatpush1.msra.mxu0 0.0
    %1759 = vmatprep.subr.mxu0 0.0
    %1760 = vmatpush1.msra.mxu0 0.0
    %1761 = vmatprep.subr.mxu0 0.0
    %1762 = vmatpush1.msra.mxu0 0.0
    %1763 = vmatprep.subr.mxu0 0.0
    %1764 = vmatpush1.msra.mxu0 0.0
    %1765 = vmatprep.subr.mxu0 0.0
    %1766 = vmatpush1.msra.mxu0 0.0
    %1767 = vmatprep.subr.mxu0 0.0
    %1768 = vmatpush1.msra.mxu0 0.0
    %1769 = vmatprep.subr.mxu0 0.0
    %1770 = vmatpush1.msra.mxu0 0.0
    %1771 = vmatprep.subr.mxu0 0.0
    %1772 = vmatpush1.msra.mxu0 0.0
    %1773 = vmatprep.subr.mxu0 0.0
    %1774 = vmatpush1.msra.mxu0 0.0
    %1775 = vmatprep.subr.mxu0 0.0
    %1776 = vmatpush1.msra.mxu0 0.0
    %1777 = vmatprep.subr.mxu0 0.0
    %1778 = vmatpush1.msra.mxu0 0.0
    %1779 = vmatprep.subr.mxu0 0.0
    %1780 = vmatpush1.msra.mxu0 0.0
    %1781 = vmatprep.subr.mxu0 0.0
    %1782 = vmatpush1.msra.mxu0 0.0
    %1783 = vmatprep.subr.mxu0 0.0
    %1784 = vmatpush1.msra.mxu0 0.0
    %1785 = vmatprep.subr.mxu0 0.0
    %1786 = vmatpush1.msra.mxu0 0.0
    %1787 = vmatprep.subr.mxu0 0.0
    %1788 = vmatpush1.msra.mxu0 0.0
    %1789 = vmatprep.subr.mxu0 0.0
    %1790 = vmatpush1.msra.mxu0 0.0
    %1791 = vmatprep.subr.mxu0 0.0
    %1792 = vmatpush1.msra.mxu0 0.0
    %1793 = vmatprep.subr.mxu0 0.0
    %1794 = vmatpush1.msra.mxu0 0.0
    %1795 = vmatprep.subr.mxu0 0.0
    %1796 = vmatpush1.msra.mxu0 0.0
    %1797 = vmatprep.subr.mxu0 0.0
    %1798 = vmatpush1.msra.mxu0 0.0
    %1799 = vmatprep.subr.mxu0 0.0
    %1800 = vmatpush1.msra.mxu0 0.0
    %1801 = vmatprep.subr.mxu0 0.0
    %1802 = vmatpush1.msra.mxu0 0.0
    %1803 = vmatprep.subr.mxu0 0.0
    %1804 = vmatpush1.msra.mxu0 0.0
    %1805 = vmatprep.subr.mxu0 0.0
    %1806 = vmatpush1.msra.mxu0 0.0
    %1807 = vmatprep.mubr.f32.mxu0 0.0
    %v1808 = vand.u32 %v1361, 4294901760
    %v1809 = vsub.f32 %v1361, %v1808
    %v1810 = vand.u32 %v1809, 4294901760
    %1811 = vmatmul.mubr.f32.gmra.mrb[0].mxu0 %v1810
    %v1812 = vpop.f32.mrb[0].mxu0
    %v1813 = vadd.f32 %v1707, %v1812
    %v1814 = vpop.f32.mrb[0].mxu0
    %v1815 = vadd.f32 %v1709, %v1814
    %1816 = vmatprep.mubr.f32.mxu0 0.0
    %v1817 = vand.u32 %v1364, 4294901760
    %v1818 = vsub.f32 %v1364, %v1817
    %v1819 = vand.u32 %v1818, 4294901760
    %1820 = vmatmul.mubr.f32.gmra.mrb[0].mxu0 %v1819
    %v1821 = vpop.f32.mrb[0].mxu0
    %v1822 = vadd.f32 %v1715, %v1821
    %v1823 = vpop.f32.mrb[0].mxu0
    %v1824 = vadd.f32 %v1717, %v1823
    %1825 = vmatprep.mubr.f32.mxu0 0.0
    %v1826 = vand.u32 %v1367, 4294901760
    %v1827 = vsub.f32 %v1367, %v1826
    %v1828 = vand.u32 %v1827, 4294901760
    %1829 = vmatmul.mubr.f32.gmra.mrb[0].mxu0 %v1828
    %v1830 = vpop.f32.mrb[0].mxu0
    %v1831 = vadd.f32 %v1723, %v1830
    %v1832 = vpop.f32.mrb[0].mxu0
    %v1833 = vadd.f32 %v1725, %v1832
    %1834 = vmatprep.mubr.f32.mxu0 0.0
    %v1835 = vand.u32 %v1370, 4294901760
    %v1836 = vsub.f32 %v1370, %v1835
    %v1837 = vand.u32 %v1836, 4294901760
    %1838 = vmatmul.mubr.f32.gmra.mrb[0].mxu0 %v1837
    %v1839 = vpop.f32.mrb[0].mxu0
    %v1840 = vadd.f32 %v1731, %v1839
    %v1841 = vpop.f32.mrb[0].mxu0
    %v1842 = vadd.f32 %v1733, %v1841
    %1843 = vdwg.mxu0
    %v1844 = vand.u32 %v1316, 4294901760
    %v1845 = vsub.f32 %v1316, %v1844
    %v1846 = vand.u32 %v1845, 4294901760
    %1847 = vmatprep.subr.mxu0 %v1846
    %v1848 = vand.u32 %v1315, 4294901760
    %v1849 = vsub.f32 %v1315, %v1848
    %v1850 = vand.u32 %v1849, 4294901760
    %1851 = vmatpush1.msra.mxu0 %v1850
    %v1852 = vand.u32 %v1320, 4294901760
    %v1853 = vsub.f32 %v1320, %v1852
    %v1854 = vand.u32 %v1853, 4294901760
    %1855 = vmatprep.subr.mxu0 %v1854
    %v1856 = vand.u32 %v1319, 4294901760
    %v1857 = vsub.f32 %v1319, %v1856
    %v1858 = vand.u32 %v1857, 4294901760
    %1859 = vmatpush1.msra.mxu0 %v1858
    %v1860 = vand.u32 %v1324, 4294901760
    %v1861 = vsub.f32 %v1324, %v1860
    %v1862 = vand.u32 %v1861, 4294901760
    %1863 = vmatprep.subr.mxu0 %v1862
    %v1864 = vand.u32 %v1323, 4294901760
    %v1865 = vsub.f32 %v1323, %v1864
    %v1866 = vand.u32 %v1865, 4294901760
    %1867 = vmatpush1.msra.mxu0 %v1866
    %v1868 = vand.u32 %v1328, 4294901760
    %v1869 = vsub.f32 %v1328, %v1868
    %v1870 = vand.u32 %v1869, 4294901760
    %1871 = vmatprep.subr.mxu0 %v1870
    %v1872 = vand.u32 %v1327, 4294901760
    %v1873 = vsub.f32 %v1327, %v1872
    %v1874 = vand.u32 %v1873, 4294901760
    %1875 = vmatpush1.msra.mxu0 %v1874
    %1876 = vmatprep.subr.mxu0 0.0
    %1877 = vmatpush1.msra.mxu0 0.0
    %1878 = vmatprep.subr.mxu0 0.0
    %1879 = vmatpush1.msra.mxu0 0.0
    %1880 = vmatprep.subr.mxu0 0.0
    %1881 = vmatpush1.msra.mxu0 0.0
    %1882 = vmatprep.subr.mxu0 0.0
    %1883 = vmatpush1.msra.mxu0 0.0
    %1884 = vmatprep.subr.mxu0 0.0
    %1885 = vmatpush1.msra.mxu0 0.0
    %1886 = vmatprep.subr.mxu0 0.0
    %1887 = vmatpush1.msra.mxu0 0.0
    %1888 = vmatprep.subr.mxu0 0.0
    %1889 = vmatpush1.msra.mxu0 0.0
    %1890 = vmatprep.subr.mxu0 0.0
    %1891 = vmatpush1.msra.mxu0 0.0
    %1892 = vmatprep.subr.mxu0 0.0
    %1893 = vmatpush1.msra.mxu0 0.0
    %1894 = vmatprep.subr.mxu0 0.0
    %1895 = vmatpush1.msra.mxu0 0.0
    %1896 = vmatprep.subr.mxu0 0.0
    %1897 = vmatpush1.msra.mxu0 0.0
    %1898 = vmatprep.subr.mxu0 0.0
    %1899 = vmatpush1.msra.mxu0 0.0
    %1900 = vmatprep.subr.mxu0 0.0
    %1901 = vmatpush1.msra.mxu0 0.0
    %1902 = vmatprep.subr.mxu0 0.0
    %1903 = vmatpush1.msra.mxu0 0.0
    %1904 = vmatprep.subr.mxu0 0.0
    %1905 = vmatpush1.msra.mxu0 0.0
    %1906 = vmatprep.subr.mxu0 0.0
    %1907 = vmatpush1.msra.mxu0 0.0
    %1908 = vmatprep.subr.mxu0 0.0
    %1909 = vmatpush1.msra.mxu0 0.0
    %1910 = vmatprep.subr.mxu0 0.0
    %1911 = vmatpush1.msra.mxu0 0.0
    %1912 = vmatprep.subr.mxu0 0.0
    %1913 = vmatpush1.msra.mxu0 0.0
    %1914 = vmatprep.subr.mxu0 0.0
    %1915 = vmatpush1.msra.mxu0 0.0
    %1916 = vmatprep.subr.mxu0 0.0
    %1917 = vmatpush1.msra.mxu0 0.0
    %1918 = vmatprep.subr.mxu0 0.0
    %1919 = vmatpush1.msra.mxu0 0.0
    %1920 = vmatprep.subr.mxu0 0.0
    %1921 = vmatpush1.msra.mxu0 0.0
    %1922 = vmatprep.subr.mxu0 0.0
    %1923 = vmatpush1.msra.mxu0 0.0
    %1924 = vmatprep.subr.mxu0 0.0
    %1925 = vmatpush1.msra.mxu0 0.0
    %1926 = vmatprep.subr.mxu0 0.0
    %1927 = vmatpush1.msra.mxu0 0.0
    %1928 = vmatprep.subr.mxu0 0.0
    %1929 = vmatpush1.msra.mxu0 0.0
    %1930 = vmatprep.subr.mxu0 0.0
    %1931 = vmatpush1.msra.mxu0 0.0
    %1932 = vmatprep.mubr.f32.mxu0 0.0
    %v1933 = vand.u32 %v1361, 4294901760
    %1934 = vmatmul.mubr.f32.gmra.mrb[0].mxu0 %v1933
    %v1935 = vpop.f32.mrb[0].mxu0
    %v1936 = vadd.f32 %v1813, %v1935
    %v1937 = vpop.f32.mrb[0].mxu0
    %v1938 = vadd.f32 %v1815, %v1937
    %1939 = vmatprep.mubr.f32.mxu0 0.0
    %v1940 = vand.u32 %v1364, 4294901760
    %1941 = vmatmul.mubr.f32.gmra.mrb[0].mxu0 %v1940
    %v1942 = vpop.f32.mrb[0].mxu0
    %v1943 = vadd.f32 %v1822, %v1942
    %v1944 = vpop.f32.mrb[0].mxu0
    %v1945 = vadd.f32 %v1824, %v1944
    %1946 = vmatprep.mubr.f32.mxu0 0.0
    %v1947 = vand.u32 %v1367, 4294901760
    %1948 = vmatmul.mubr.f32.gmra.mrb[0].mxu0 %v1947
    %v1949 = vpop.f32.mrb[0].mxu0
    %v1950 = vadd.f32 %v1831, %v1949
    %v1951 = vpop.f32.mrb[0].mxu0
    %v1952 = vadd.f32 %v1833, %v1951
    %1953 = vmatprep.mubr.f32.mxu0 0.0
    %v1954 = vand.u32 %v1370, 4294901760
    %1955 = vmatmul.mubr.f32.gmra.mrb[0].mxu0 %v1954
    %v1956 = vpop.f32.mrb[0].mxu0
    %v1957 = vadd.f32 %v1840, %v1956
    %v1958 = vpop.f32.mrb[0].mxu0
    %v1959 = vadd.f32 %v1842, %v1958
    %1960 = vdwg.mxu0
    %v1961 = vand.u32 %v1316, 4294901760
    %1962 = vmatprep.subr.mxu0 %v1961
    %v1963 = vand.u32 %v1315, 4294901760
    %1964 = vmatpush1.msra.mxu0 %v1963
    %v1965 = vand.u32 %v1320, 4294901760
    %1966 = vmatprep.subr.mxu0 %v1965
    %v1967 = vand.u32 %v1319, 4294901760
    %1968 = vmatpush1.msra.mxu0 %v1967
    %v1969 = vand.u32 %v1324, 4294901760
    %1970 = vmatprep.subr.mxu0 %v1969
    %v1971 = vand.u32 %v1323, 4294901760
    %1972 = vmatpush1.msra.mxu0 %v1971
    %v1973 = vand.u32 %v1328, 4294901760
    %1974 = vmatprep.subr.mxu0 %v1973
    %v1975 = vand.u32 %v1327, 4294901760
    %1976 = vmatpush1.msra.mxu0 %v1975
    %1977 = vmatprep.subr.mxu0 0.0
    %1978 = vmatpush1.msra.mxu0 0.0
    %1979 = vmatprep.subr.mxu0 0.0
    %1980 = vmatpush1.msra.mxu0 0.0
    %1981 = vmatprep.subr.mxu0 0.0
    %1982 = vmatpush1.msra.mxu0 0.0
    %1983 = vmatprep.subr.mxu0 0.0
    %1984 = vmatpush1.msra.mxu0 0.0
    %1985 = vmatprep.subr.mxu0 0.0
    %1986 = vmatpush1.msra.mxu0 0.0
    %1987 = vmatprep.subr.mxu0 0.0
    %1988 = vmatpush1.msra.mxu0 0.0
    %1989 = vmatprep.subr.mxu0 0.0
    %1990 = vmatpush1.msra.mxu0 0.0
    %1991 = vmatprep.subr.mxu0 0.0
    %1992 = vmatpush1.msra.mxu0 0.0
    %1993 = vmatprep.subr.mxu0 0.0
    %1994 = vmatpush1.msra.mxu0 0.0
    %1995 = vmatprep.subr.mxu0 0.0
    %1996 = vmatpush1.msra.mxu0 0.0
    %1997 = vmatprep.subr.mxu0 0.0
    %1998 = vmatpush1.msra.mxu0 0.0
    %1999 = vmatprep.subr.mxu0 0.0
    %2000 = vmatpush1.msra.mxu0 0.0
    %2001 = vmatprep.subr.mxu0 0.0
    %2002 = vmatpush1.msra.mxu0 0.0
    %2003 = vmatprep.subr.mxu0 0.0
    %2004 = vmatpush1.msra.mxu0 0.0
    %2005 = vmatprep.subr.mxu0 0.0
    %2006 = vmatpush1.msra.mxu0 0.0
    %2007 = vmatprep.subr.mxu0 0.0
    %2008 = vmatpush1.msra.mxu0 0.0
    %2009 = vmatprep.subr.mxu0 0.0
    %2010 = vmatpush1.msra.mxu0 0.0
    %2011 = vmatprep.subr.mxu0 0.0
    %2012 = vmatpush1.msra.mxu0 0.0
    %2013 = vmatprep.subr.mxu0 0.0
    %2014 = vmatpush1.msra.mxu0 0.0
    %2015 = vmatprep.subr.mxu0 0.0
    %2016 = vmatpush1.msra.mxu0 0.0
    %2017 = vmatprep.subr.mxu0 0.0
    %2018 = vmatpush1.msra.mxu0 0.0
    %2019 = vmatprep.subr.mxu0 0.0
    %2020 = vmatpush1.msra.mxu0 0.0
    %2021 = vmatprep.subr.mxu0 0.0
    %2022 = vmatpush1.msra.mxu0 0.0
    %2023 = vmatprep.subr.mxu0 0.0
    %2024 = vmatpush1.msra.mxu0 0.0
    %2025 = vmatprep.subr.mxu0 0.0
    %2026 = vmatpush1.msra.mxu0 0.0
    %2027 = vmatprep.subr.mxu0 0.0
    %2028 = vmatpush1.msra.mxu0 0.0
    %2029 = vmatprep.subr.mxu0 0.0
    %2030 = vmatpush1.msra.mxu0 0.0
    %2031 = vmatprep.subr.mxu0 0.0
    %2032 = vmatpush1.msra.mxu0 0.0
    %2033 = vmatprep.mubr.f32.mxu0 0.0
    %v2034 = vand.u32 %v1361, 4294901760
    %2035 = vmatmul.mubr.f32.gmra.mrb[0].mxu0 %v2034
    %v2036 = vpop.f32.mrb[0].mxu0
    %v2037 = vadd.f32 %v1936, %v2036
    %v2038 = vpop.f32.mrb[0].mxu0
    %v2039 = vadd.f32 %v1938, %v2038
    %2040 = vmatprep.mubr.f32.mxu0 0.0
    %v2041 = vand.u32 %v1364, 4294901760
    %2042 = vmatmul.mubr.f32.gmra.mrb[0].mxu0 %v2041
    %v2043 = vpop.f32.mrb[0].mxu0
    %v2044 = vadd.f32 %v1943, %v2043
    %v2045 = vpop.f32.mrb[0].mxu0
    %v2046 = vadd.f32 %v1945, %v2045
    %2047 = vmatprep.mubr.f32.mxu0 0.0
    %v2048 = vand.u32 %v1367, 4294901760
    %2049 = vmatmul.mubr.f32.gmra.mrb[0].mxu0 %v2048
    %v2050 = vpop.f32.mrb[0].mxu0
    %v2051 = vadd.f32 %v1950, %v2050
    %v2052 = vpop.f32.mrb[0].mxu0
    %v2053 = vadd.f32 %v1952, %v2052
    %2054 = vmatprep.mubr.f32.mxu0 0.0
    %v2055 = vand.u32 %v1370, 4294901760
    %2056 = vmatmul.mubr.f32.gmra.mrb[0].mxu0 %v2055
    %v2057 = vpop.f32.mrb[0].mxu0
    %v2058 = vadd.f32 %v1957, %v2057
    %v2059 = vpop.f32.mrb[0].mxu0
    %v2060 = vadd.f32 %v1959, %v2059
    %2061 = vdwg.mxu0
    %v2062 = vand.u32 %v1318, 4294901760
    %2063 = vmatprep.subr.mxu0 %v2062
    %v2064 = vand.u32 %v1317, 4294901760
    %2065 = vmatpush1.msra.mxu0 %v2064
    %v2066 = vand.u32 %v1322, 4294901760
    %2067 = vmatprep.subr.mxu0 %v2066
    %v2068 = vand.u32 %v1321, 4294901760
    %2069 = vmatpush1.msra.mxu0 %v2068
    %v2070 = vand.u32 %v1326, 4294901760
    %2071 = vmatprep.subr.mxu0 %v2070
    %v2072 = vand.u32 %v1325, 4294901760
    %2073 = vmatpush1.msra.mxu0 %v2072
    %v2074 = vand.u32 %v1330, 4294901760
    %2075 = vmatprep.subr.mxu0 %v2074
    %v2076 = vand.u32 %v1329, 4294901760
    %2077 = vmatpush1.msra.mxu0 %v2076
    %2078 = vmatprep.subr.mxu0 0.0
    %2079 = vmatpush1.msra.mxu0 0.0
    %2080 = vmatprep.subr.mxu0 0.0
    %2081 = vmatpush1.msra.mxu0 0.0
    %2082 = vmatprep.subr.mxu0 0.0
    %2083 = vmatpush1.msra.mxu0 0.0
    %2084 = vmatprep.subr.mxu0 0.0
    %2085 = vmatpush1.msra.mxu0 0.0
    %2086 = vmatprep.subr.mxu0 0.0
    %2087 = vmatpush1.msra.mxu0 0.0
    %2088 = vmatprep.subr.mxu0 0.0
    %2089 = vmatpush1.msra.mxu0 0.0
    %2090 = vmatprep.subr.mxu0 0.0
    %2091 = vmatpush1.msra.mxu0 0.0
    %2092 = vmatprep.subr.mxu0 0.0
    %2093 = vmatpush1.msra.mxu0 0.0
    %2094 = vmatprep.subr.mxu0 0.0
    %2095 = vmatpush1.msra.mxu0 0.0
    %2096 = vmatprep.subr.mxu0 0.0
    %2097 = vmatpush1.msra.mxu0 0.0
    %2098 = vmatprep.subr.mxu0 0.0
    %2099 = vmatpush1.msra.mxu0 0.0
    %2100 = vmatprep.subr.mxu0 0.0
    %2101 = vmatpush1.msra.mxu0 0.0
    %2102 = vmatprep.subr.mxu0 0.0
    %2103 = vmatpush1.msra.mxu0 0.0
    %2104 = vmatprep.subr.mxu0 0.0
    %2105 = vmatpush1.msra.mxu0 0.0
    %2106 = vmatprep.subr.mxu0 0.0
    %2107 = vmatpush1.msra.mxu0 0.0
    %2108 = vmatprep.subr.mxu0 0.0
    %2109 = vmatpush1.msra.mxu0 0.0
    %2110 = vmatprep.subr.mxu0 0.0
    %2111 = vmatpush1.msra.mxu0 0.0
    %2112 = vmatprep.subr.mxu0 0.0
    %2113 = vmatpush1.msra.mxu0 0.0
    %2114 = vmatprep.subr.mxu0 0.0
    %2115 = vmatpush1.msra.mxu0 0.0
    %2116 = vmatprep.subr.mxu0 0.0
    %2117 = vmatpush1.msra.mxu0 0.0
    %2118 = vmatprep.subr.mxu0 0.0
    %2119 = vmatpush1.msra.mxu0 0.0
    %2120 = vmatprep.subr.mxu0 0.0
    %2121 = vmatpush1.msra.mxu0 0.0
    %2122 = vmatprep.subr.mxu0 0.0
    %2123 = vmatpush1.msra.mxu0 0.0
    %2124 = vmatprep.subr.mxu0 0.0
    %2125 = vmatpush1.msra.mxu0 0.0
    %2126 = vmatprep.subr.mxu0 0.0
    %2127 = vmatpush1.msra.mxu0 0.0
    %2128 = vmatprep.subr.mxu0 0.0
    %2129 = vmatpush1.msra.mxu0 0.0
    %2130 = vmatprep.subr.mxu0 0.0
    %2131 = vmatpush1.msra.mxu0 0.0
    %2132 = vmatprep.subr.mxu0 0.0
    %2133 = vmatpush1.msra.mxu0 0.0
    %2134 = vmatprep.mubr.f32.mxu0 0.0
    %v2135 = vand.u32 %v1361, 4294901760
    %v2136 = vsub.f32 %v1361, %v2135
    %v2137 = vand.u32 %v2136, 4294901760
    %v2138 = vsub.f32 %v2136, %v2137
    %v2139 = vand.u32 %v2138, 4294901760
    %2140 = vmatmul.mubr.f32.gmra.mrb[0].mxu0 %v2139
    %v2141 = vpop.f32.mrb[0].mxu0
    %v2142 = vadd.f32 %v1342, %v2141
    %v2143 = vpop.f32.mrb[0].mxu0
    %v2144 = vadd.f32 %v1342, %v2143
    %2145 = vmatprep.mubr.f32.mxu0 0.0
    %v2146 = vand.u32 %v1364, 4294901760
    %v2147 = vsub.f32 %v1364, %v2146
    %v2148 = vand.u32 %v2147, 4294901760
    %v2149 = vsub.f32 %v2147, %v2148
    %v2150 = vand.u32 %v2149, 4294901760
    %2151 = vmatmul.mubr.f32.gmra.mrb[0].mxu0 %v2150
    %v2152 = vpop.f32.mrb[0].mxu0
    %v2153 = vadd.f32 %v1347, %v2152
    %v2154 = vpop.f32.mrb[0].mxu0
    %v2155 = vadd.f32 %v1347, %v2154
    %2156 = vmatprep.mubr.f32.mxu0 0.0
    %v2157 = vand.u32 %v1367, 4294901760
    %v2158 = vsub.f32 %v1367, %v2157
    %v2159 = vand.u32 %v2158, 4294901760
    %v2160 = vsub.f32 %v2158, %v2159
    %v2161 = vand.u32 %v2160, 4294901760
    %2162 = vmatmul.mubr.f32.gmra.mrb[0].mxu0 %v2161
    %v2163 = vpop.f32.mrb[0].mxu0
    %v2164 = vadd.f32 %v1352, %v2163
    %v2165 = vpop.f32.mrb[0].mxu0
    %v2166 = vadd.f32 %v1352, %v2165
    %2167 = vmatprep.mubr.f32.mxu0 0.0
    %v2168 = vand.u32 %v1370, 4294901760
    %v2169 = vsub.f32 %v1370, %v2168
    %v2170 = vand.u32 %v2169, 4294901760
    %v2171 = vsub.f32 %v2169, %v2170
    %v2172 = vand.u32 %v2171, 4294901760
    %2173 = vmatmul.mubr.f32.gmra.mrb[0].mxu0 %v2172
    %v2174 = vpop.f32.mrb[0].mxu0
    %v2175 = vadd.f32 %v1357, %v2174
    %v2176 = vpop.f32.mrb[0].mxu0
    %v2177 = vadd.f32 %v1357, %v2176
    %2178 = vdwg.mxu0
    %v2179 = vand.u32 %v1318, 4294901760
    %v2180 = vsub.f32 %v1318, %v2179
    %v2181 = vand.u32 %v2180, 4294901760
    %v2182 = vsub.f32 %v2180, %v2181
    %v2183 = vand.u32 %v2182, 4294901760
    %2184 = vmatprep.subr.mxu0 %v2183
    %v2185 = vand.u32 %v1317, 4294901760
    %v2186 = vsub.f32 %v1317, %v2185
    %v2187 = vand.u32 %v2186, 4294901760
    %v2188 = vsub.f32 %v2186, %v2187
    %v2189 = vand.u32 %v2188, 4294901760
    %2190 = vmatpush1.msra.mxu0 %v2189
    %v2191 = vand.u32 %v1322, 4294901760
    %v2192 = vsub.f32 %v1322, %v2191
    %v2193 = vand.u32 %v2192, 4294901760
    %v2194 = vsub.f32 %v2192, %v2193
    %v2195 = vand.u32 %v2194, 4294901760
    %2196 = vmatprep.subr.mxu0 %v2195
    %v2197 = vand.u32 %v1321, 4294901760
    %v2198 = vsub.f32 %v1321, %v2197
    %v2199 = vand.u32 %v2198, 4294901760
    %v2200 = vsub.f32 %v2198, %v2199
    %v2201 = vand.u32 %v2200, 4294901760
    %2202 = vmatpush1.msra.mxu0 %v2201
    %v2203 = vand.u32 %v1326, 4294901760
    %v2204 = vsub.f32 %v1326, %v2203
    %v2205 = vand.u32 %v2204, 4294901760
    %v2206 = vsub.f32 %v2204, %v2205
    %v2207 = vand.u32 %v2206, 4294901760
    %2208 = vmatprep.subr.mxu0 %v2207
    %v2209 = vand.u32 %v1325, 4294901760
    %v2210 = vsub.f32 %v1325, %v2209
    %v2211 = vand.u32 %v2210, 4294901760
    %v2212 = vsub.f32 %v2210, %v2211
    %v2213 = vand.u32 %v2212, 4294901760
    %2214 = vmatpush1.msra.mxu0 %v2213
    %v2215 = vand.u32 %v1330, 4294901760
    %v2216 = vsub.f32 %v1330, %v2215
    %v2217 = vand.u32 %v2216, 4294901760
    %v2218 = vsub.f32 %v2216, %v2217
    %v2219 = vand.u32 %v2218, 4294901760
    %2220 = vmatprep.subr.mxu0 %v2219
    %v2221 = vand.u32 %v1329, 4294901760
    %v2222 = vsub.f32 %v1329, %v2221
    %v2223 = vand.u32 %v2222, 4294901760
    %v2224 = vsub.f32 %v2222, %v2223
    %v2225 = vand.u32 %v2224, 4294901760
    %2226 = vmatpush1.msra.mxu0 %v2225
    %2227 = vmatprep.subr.mxu0 0.0
    %2228 = vmatpush1.msra.mxu0 0.0
    %2229 = vmatprep.subr.mxu0 0.0
    %2230 = vmatpush1.msra.mxu0 0.0
    %2231 = vmatprep.subr.mxu0 0.0
    %2232 = vmatpush1.msra.mxu0 0.0
    %2233 = vmatprep.subr.mxu0 0.0
    %2234 = vmatpush1.msra.mxu0 0.0
    %2235 = vmatprep.subr.mxu0 0.0
    %2236 = vmatpush1.msra.mxu0 0.0
    %2237 = vmatprep.subr.mxu0 0.0
    %2238 = vmatpush1.msra.mxu0 0.0
    %2239 = vmatprep.subr.mxu0 0.0
    %2240 = vmatpush1.msra.mxu0 0.0
    %2241 = vmatprep.subr.mxu0 0.0
    %2242 = vmatpush1.msra.mxu0 0.0
    %2243 = vmatprep.subr.mxu0 0.0
    %2244 = vmatpush1.msra.mxu0 0.0
    %2245 = vmatprep.subr.mxu0 0.0
    %2246 = vmatpush1.msra.mxu0 0.0
    %2247 = vmatprep.subr.mxu0 0.0
    %2248 = vmatpush1.msra.mxu0 0.0
    %2249 = vmatprep.subr.mxu0 0.0
    %2250 = vmatpush1.msra.mxu0 0.0
    %2251 = vmatprep.subr.mxu0 0.0
    %2252 = vmatpush1.msra.mxu0 0.0
    %2253 = vmatprep.subr.mxu0 0.0
    %2254 = vmatpush1.msra.mxu0 0.0
    %2255 = vmatprep.subr.mxu0 0.0
    %2256 = vmatpush1.msra.mxu0 0.0
    %2257 = vmatprep.subr.mxu0 0.0
    %2258 = vmatpush1.msra.mxu0 0.0
    %2259 = vmatprep.subr.mxu0 0.0
    %2260 = vmatpush1.msra.mxu0 0.0
    %2261 = vmatprep.subr.mxu0 0.0
    %2262 = vmatpush1.msra.mxu0 0.0
    %2263 = vmatprep.subr.mxu0 0.0
    %2264 = vmatpush1.msra.mxu0 0.0
    %2265 = vmatprep.subr.mxu0 0.0
    %2266 = vmatpush1.msra.mxu0 0.0
    %2267 = vmatprep.subr.mxu0 0.0
    %2268 = vmatpush1.msra.mxu0 0.0
    %2269 = vmatprep.subr.mxu0 0.0
    %2270 = vmatpush1.msra.mxu0 0.0
    %2271 = vmatprep.subr.mxu0 0.0
    %2272 = vmatpush1.msra.mxu0 0.0
    %2273 = vmatprep.subr.mxu0 0.0
    %2274 = vmatpush1.msra.mxu0 0.0
    %2275 = vmatprep.subr.mxu0 0.0
    %2276 = vmatpush1.msra.mxu0 0.0
    %2277 = vmatprep.subr.mxu0 0.0
    %2278 = vmatpush1.msra.mxu0 0.0
    %2279 = vmatprep.subr.mxu0 0.0
    %2280 = vmatpush1.msra.mxu0 0.0
    %2281 = vmatprep.subr.mxu0 0.0
    %2282 = vmatpush1.msra.mxu0 0.0
    %2283 = vmatprep.mubr.f32.mxu0 0.0
    %v2284 = vand.u32 %v1361, 4294901760
    %2285 = vmatmul.mubr.f32.gmra.mrb[0].mxu0 %v2284
    %v2286 = vpop.f32.mrb[0].mxu0
    %v2287 = vadd.f32 %v2142, %v2286
    %v2288 = vpop.f32.mrb[0].mxu0
    %v2289 = vadd.f32 %v2144, %v2288
    %2290 = vmatprep.mubr.f32.mxu0 0.0
    %v2291 = vand.u32 %v1364, 4294901760
    %2292 = vmatmul.mubr.f32.gmra.mrb[0].mxu0 %v2291
    %v2293 = vpop.f32.mrb[0].mxu0
    %v2294 = vadd.f32 %v2153, %v2293
    %v2295 = vpop.f32.mrb[0].mxu0
    %v2296 = vadd.f32 %v2155, %v2295
    %2297 = vmatprep.mubr.f32.mxu0 0.0
    %v2298 = vand.u32 %v1367, 4294901760
    %2299 = vmatmul.mubr.f32.gmra.mrb[0].mxu0 %v2298
    %v2300 = vpop.f32.mrb[0].mxu0
    %v2301 = vadd.f32 %v2164, %v2300
    %v2302 = vpop.f32.mrb[0].mxu0
    %v2303 = vadd.f32 %v2166, %v2302
    %2304 = vmatprep.mubr.f32.mxu0 0.0
    %v2305 = vand.u32 %v1370, 4294901760
    %2306 = vmatmul.mubr.f32.gmra.mrb[0].mxu0 %v2305
    %v2307 = vpop.f32.mrb[0].mxu0
    %v2308 = vadd.f32 %v2175, %v2307
    %v2309 = vpop.f32.mrb[0].mxu0
    %v2310 = vadd.f32 %v2177, %v2309
    %2311 = vdwg.mxu0
    %v2312 = vand.u32 %v1318, 4294901760
    %v2313 = vsub.f32 %v1318, %v2312
    %2314 = vmatprep.subr.mxu0 %v2313
    %v2315 = vand.u32 %v1317, 4294901760
    %v2316 = vsub.f32 %v1317, %v2315
    %2317 = vmatpush1.msra.mxu0 %v2316
    %v2318 = vand.u32 %v1322, 4294901760
    %v2319 = vsub.f32 %v1322, %v2318
    %2320 = vmatprep.subr.mxu0 %v2319
    %v2321 = vand.u32 %v1321, 4294901760
    %v2322 = vsub.f32 %v1321, %v2321
    %2323 = vmatpush1.msra.mxu0 %v2322
    %v2324 = vand.u32 %v1326, 4294901760
    %v2325 = vsub.f32 %v1326, %v2324
    %2326 = vmatprep.subr.mxu0 %v2325
    %v2327 = vand.u32 %v1325, 4294901760
    %v2328 = vsub.f32 %v1325, %v2327
    %2329 = vmatpush1.msra.mxu0 %v2328
    %v2330 = vand.u32 %v1330, 4294901760
    %v2331 = vsub.f32 %v1330, %v2330
    %2332 = vmatprep.subr.mxu0 %v2331
    %v2333 = vand.u32 %v1329, 4294901760
    %v2334 = vsub.f32 %v1329, %v2333
    %2335 = vmatpush1.msra.mxu0 %v2334
    %2336 = vmatprep.subr.mxu0 0.0
    %2337 = vmatpush1.msra.mxu0 0.0
    %2338 = vmatprep.subr.mxu0 0.0
    %2339 = vmatpush1.msra.mxu0 0.0
    %2340 = vmatprep.subr.mxu0 0.0
    %2341 = vmatpush1.msra.mxu0 0.0
    %2342 = vmatprep.subr.mxu0 0.0
    %2343 = vmatpush1.msra.mxu0 0.0
    %2344 = vmatprep.subr.mxu0 0.0
    %2345 = vmatpush1.msra.mxu0 0.0
    %2346 = vmatprep.subr.mxu0 0.0
    %2347 = vmatpush1.msra.mxu0 0.0
    %2348 = vmatprep.subr.mxu0 0.0
    %2349 = vmatpush1.msra.mxu0 0.0
    %2350 = vmatprep.subr.mxu0 0.0
    %2351 = vmatpush1.msra.mxu0 0.0
    %2352 = vmatprep.subr.mxu0 0.0
    %2353 = vmatpush1.msra.mxu0 0.0
    %2354 = vmatprep.subr.mxu0 0.0
    %2355 = vmatpush1.msra.mxu0 0.0
    %2356 = vmatprep.subr.mxu0 0.0
    %2357 = vmatpush1.msra.mxu0 0.0
    %2358 = vmatprep.subr.mxu0 0.0
    %2359 = vmatpush1.msra.mxu0 0.0
    %2360 = vmatprep.subr.mxu0 0.0
    %2361 = vmatpush1.msra.mxu0 0.0
    %2362 = vmatprep.subr.mxu0 0.0
    %2363 = vmatpush1.msra.mxu0 0.0
    %2364 = vmatprep.subr.mxu0 0.0
    %2365 = vmatpush1.msra.mxu0 0.0
    %2366 = vmatprep.subr.mxu0 0.0
    %2367 = vmatpush1.msra.mxu0 0.0
    %2368 = vmatprep.subr.mxu0 0.0
    %2369 = vmatpush1.msra.mxu0 0.0
    %2370 = vmatprep.subr.mxu0 0.0
    %2371 = vmatpush1.msra.mxu0 0.0
    %2372 = vmatprep.subr.mxu0 0.0
    %2373 = vmatpush1.msra.mxu0 0.0
    %2374 = vmatprep.subr.mxu0 0.0
    %2375 = vmatpush1.msra.mxu0 0.0
    %2376 = vmatprep.subr.mxu0 0.0
    %2377 = vmatpush1.msra.mxu0 0.0
    %2378 = vmatprep.subr.mxu0 0.0
    %2379 = vmatpush1.msra.mxu0 0.0
    %2380 = vmatprep.subr.mxu0 0.0
    %2381 = vmatpush1.msra.mxu0 0.0
    %2382 = vmatprep.subr.mxu0 0.0
    %2383 = vmatpush1.msra.mxu0 0.0
    %2384 = vmatprep.subr.mxu0 0.0
    %2385 = vmatpush1.msra.mxu0 0.0
    %2386 = vmatprep.subr.mxu0 0.0
    %2387 = vmatpush1.msra.mxu0 0.0
    %2388 = vmatprep.subr.mxu0 0.0
    %2389 = vmatpush1.msra.mxu0 0.0
    %2390 = vmatprep.subr.mxu0 0.0
    %2391 = vmatpush1.msra.mxu0 0.0
    %2392 = vmatprep.mubr.f32.mxu0 0.0
    %v2393 = vand.u32 %v1361, 4294901760
    %v2394 = vsub.f32 %v1361, %v2393
    %2395 = vmatmul.mubr.f32.gmra.mrb[0].mxu0 %v2394
    %v2396 = vpop.f32.mrb[0].mxu0
    %v2397 = vadd.f32 %v2287, %v2396
    %v2398 = vpop.f32.mrb[0].mxu0
    %v2399 = vadd.f32 %v2289, %v2398
    %2400 = vmatprep.mubr.f32.mxu0 0.0
    %v2401 = vand.u32 %v1364, 4294901760
    %v2402 = vsub.f32 %v1364, %v2401
    %2403 = vmatmul.mubr.f32.gmra.mrb[0].mxu0 %v2402
    %v2404 = vpop.f32.mrb[0].mxu0
    %v2405 = vadd.f32 %v2294, %v2404
    %v2406 = vpop.f32.mrb[0].mxu0
    %v2407 = vadd.f32 %v2296, %v2406
    %2408 = vmatprep.mubr.f32.mxu0 0.0
    %v2409 = vand.u32 %v1367, 4294901760
    %v2410 = vsub.f32 %v1367, %v2409
    %2411 = vmatmul.mubr.f32.gmra.mrb[0].mxu0 %v2410
    %v2412 = vpop.f32.mrb[0].mxu0
    %v2413 = vadd.f32 %v2301, %v2412
    %v2414 = vpop.f32.mrb[0].mxu0
    %v2415 = vadd.f32 %v2303, %v2414
    %2416 = vmatprep.mubr.f32.mxu0 0.0
    %v2417 = vand.u32 %v1370, 4294901760
    %v2418 = vsub.f32 %v1370, %v2417
    %2419 = vmatmul.mubr.f32.gmra.mrb[0].mxu0 %v2418
    %v2420 = vpop.f32.mrb[0].mxu0
    %v2421 = vadd.f32 %v2308, %v2420
    %v2422 = vpop.f32.mrb[0].mxu0
    %v2423 = vadd.f32 %v2310, %v2422
    %2424 = vdwg.mxu0
    %v2425 = vand.u32 %v1318, 4294901760
    %2426 = vmatprep.subr.mxu0 %v2425
    %v2427 = vand.u32 %v1317, 4294901760
    %2428 = vmatpush1.msra.mxu0 %v2427
    %v2429 = vand.u32 %v1322, 4294901760
    %2430 = vmatprep.subr.mxu0 %v2429
    %v2431 = vand.u32 %v1321, 4294901760
    %2432 = vmatpush1.msra.mxu0 %v2431
    %v2433 = vand.u32 %v1326, 4294901760
    %2434 = vmatprep.subr.mxu0 %v2433
    %v2435 = vand.u32 %v1325, 4294901760
    %2436 = vmatpush1.msra.mxu0 %v2435
    %v2437 = vand.u32 %v1330, 4294901760
    %2438 = vmatprep.subr.mxu0 %v2437
    %v2439 = vand.u32 %v1329, 4294901760
    %2440 = vmatpush1.msra.mxu0 %v2439
    %2441 = vmatprep.subr.mxu0 0.0
    %2442 = vmatpush1.msra.mxu0 0.0
    %2443 = vmatprep.subr.mxu0 0.0
    %2444 = vmatpush1.msra.mxu0 0.0
    %2445 = vmatprep.subr.mxu0 0.0
    %2446 = vmatpush1.msra.mxu0 0.0
    %2447 = vmatprep.subr.mxu0 0.0
    %2448 = vmatpush1.msra.mxu0 0.0
    %2449 = vmatprep.subr.mxu0 0.0
    %2450 = vmatpush1.msra.mxu0 0.0
    %2451 = vmatprep.subr.mxu0 0.0
    %2452 = vmatpush1.msra.mxu0 0.0
    %2453 = vmatprep.subr.mxu0 0.0
    %2454 = vmatpush1.msra.mxu0 0.0
    %2455 = vmatprep.subr.mxu0 0.0
    %2456 = vmatpush1.msra.mxu0 0.0
    %2457 = vmatprep.subr.mxu0 0.0
    %2458 = vmatpush1.msra.mxu0 0.0
    %2459 = vmatprep.subr.mxu0 0.0
    %2460 = vmatpush1.msra.mxu0 0.0
    %2461 = vmatprep.subr.mxu0 0.0
    %2462 = vmatpush1.msra.mxu0 0.0
    %2463 = vmatprep.subr.mxu0 0.0
    %2464 = vmatpush1.msra.mxu0 0.0
    %2465 = vmatprep.subr.mxu0 0.0
    %2466 = vmatpush1.msra.mxu0 0.0
    %2467 = vmatprep.subr.mxu0 0.0
    %2468 = vmatpush1.msra.mxu0 0.0
    %2469 = vmatprep.subr.mxu0 0.0
    %2470 = vmatpush1.msra.mxu0 0.0
    %2471 = vmatprep.subr.mxu0 0.0
    %2472 = vmatpush1.msra.mxu0 0.0
    %2473 = vmatprep.subr.mxu0 0.0
    %2474 = vmatpush1.msra.mxu0 0.0
    %2475 = vmatprep.subr.mxu0 0.0
    %2476 = vmatpush1.msra.mxu0 0.0
    %2477 = vmatprep.subr.mxu0 0.0
    %2478 = vmatpush1.msra.mxu0 0.0
    %2479 = vmatprep.subr.mxu0 0.0
    %2480 = vmatpush1.msra.mxu0 0.0
    %2481 = vmatprep.subr.mxu0 0.0
    %2482 = vmatpush1.msra.mxu0 0.0
    %2483 = vmatprep.subr.mxu0 0.0
    %2484 = vmatpush1.msra.mxu0 0.0
    %2485 = vmatprep.subr.mxu0 0.0
    %2486 = vmatpush1.msra.mxu0 0.0
    %2487 = vmatprep.subr.mxu0 0.0
    %2488 = vmatpush1.msra.mxu0 0.0
    %2489 = vmatprep.subr.mxu0 0.0
    %2490 = vmatpush1.msra.mxu0 0.0
    %2491 = vmatprep.subr.mxu0 0.0
    %2492 = vmatpush1.msra.mxu0 0.0
    %2493 = vmatprep.subr.mxu0 0.0
    %2494 = vmatpush1.msra.mxu0 0.0
    %2495 = vmatprep.subr.mxu0 0.0
    %2496 = vmatpush1.msra.mxu0 0.0
    %2497 = vmatprep.mubr.f32.mxu0 0.0
    %v2498 = vand.u32 %v1361, 4294901760
    %v2499 = vsub.f32 %v1361, %v2498
    %v2500 = vand.u32 %v2499, 4294901760
    %2501 = vmatmul.mubr.f32.gmra.mrb[0].mxu0 %v2500
    %v2502 = vpop.f32.mrb[0].mxu0
    %v2503 = vadd.f32 %v2397, %v2502
    %v2504 = vpop.f32.mrb[0].mxu0
    %v2505 = vadd.f32 %v2399, %v2504
    %2506 = vmatprep.mubr.f32.mxu0 0.0
    %v2507 = vand.u32 %v1364, 4294901760
    %v2508 = vsub.f32 %v1364, %v2507
    %v2509 = vand.u32 %v2508, 4294901760
    %2510 = vmatmul.mubr.f32.gmra.mrb[0].mxu0 %v2509
    %v2511 = vpop.f32.mrb[0].mxu0
    %v2512 = vadd.f32 %v2405, %v2511
    %v2513 = vpop.f32.mrb[0].mxu0
    %v2514 = vadd.f32 %v2407, %v2513
    %2515 = vmatprep.mubr.f32.mxu0 0.0
    %v2516 = vand.u32 %v1367, 4294901760
    %v2517 = vsub.f32 %v1367, %v2516
    %v2518 = vand.u32 %v2517, 4294901760
    %2519 = vmatmul.mubr.f32.gmra.mrb[0].mxu0 %v2518
    %v2520 = vpop.f32.mrb[0].mxu0
    %v2521 = vadd.f32 %v2413, %v2520
    %v2522 = vpop.f32.mrb[0].mxu0
    %v2523 = vadd.f32 %v2415, %v2522
    %2524 = vmatprep.mubr.f32.mxu0 0.0
    %v2525 = vand.u32 %v1370, 4294901760
    %v2526 = vsub.f32 %v1370, %v2525
    %v2527 = vand.u32 %v2526, 4294901760
    %2528 = vmatmul.mubr.f32.gmra.mrb[0].mxu0 %v2527
    %v2529 = vpop.f32.mrb[0].mxu0
    %v2530 = vadd.f32 %v2421, %v2529
    %v2531 = vpop.f32.mrb[0].mxu0
    %v2532 = vadd.f32 %v2423, %v2531
    %2533 = vdwg.mxu0
    %v2534 = vand.u32 %v1318, 4294901760
    %v2535 = vsub.f32 %v1318, %v2534
    %v2536 = vand.u32 %v2535, 4294901760
    %2537 = vmatprep.subr.mxu0 %v2536
    %v2538 = vand.u32 %v1317, 4294901760
    %v2539 = vsub.f32 %v1317, %v2538
    %v2540 = vand.u32 %v2539, 4294901760
    %2541 = vmatpush1.msra.mxu0 %v2540
    %v2542 = vand.u32 %v1322, 4294901760
    %v2543 = vsub.f32 %v1322, %v2542
    %v2544 = vand.u32 %v2543, 4294901760
    %2545 = vmatprep.subr.mxu0 %v2544
    %v2546 = vand.u32 %v1321, 4294901760
    %v2547 = vsub.f32 %v1321, %v2546
    %v2548 = vand.u32 %v2547, 4294901760
    %2549 = vmatpush1.msra.mxu0 %v2548
    %v2550 = vand.u32 %v1326, 4294901760
    %v2551 = vsub.f32 %v1326, %v2550
    %v2552 = vand.u32 %v2551, 4294901760
    %2553 = vmatprep.subr.mxu0 %v2552
    %v2554 = vand.u32 %v1325, 4294901760
    %v2555 = vsub.f32 %v1325, %v2554
    %v2556 = vand.u32 %v2555, 4294901760
    %2557 = vmatpush1.msra.mxu0 %v2556
    %v2558 = vand.u32 %v1330, 4294901760
    %v2559 = vsub.f32 %v1330, %v2558
    %v2560 = vand.u32 %v2559, 4294901760
    %2561 = vmatprep.subr.mxu0 %v2560
    %v2562 = vand.u32 %v1329, 4294901760
    %v2563 = vsub.f32 %v1329, %v2562
    %v2564 = vand.u32 %v2563, 4294901760
    %2565 = vmatpush1.msra.mxu0 %v2564
    %2566 = vmatprep.subr.mxu0 0.0
    %2567 = vmatpush1.msra.mxu0 0.0
    %2568 = vmatprep.subr.mxu0 0.0
    %2569 = vmatpush1.msra.mxu0 0.0
    %2570 = vmatprep.subr.mxu0 0.0
    %2571 = vmatpush1.msra.mxu0 0.0
    %2572 = vmatprep.subr.mxu0 0.0
    %2573 = vmatpush1.msra.mxu0 0.0
    %2574 = vmatprep.subr.mxu0 0.0
    %2575 = vmatpush1.msra.mxu0 0.0
    %2576 = vmatprep.subr.mxu0 0.0
    %2577 = vmatpush1.msra.mxu0 0.0
    %2578 = vmatprep.subr.mxu0 0.0
    %2579 = vmatpush1.msra.mxu0 0.0
    %2580 = vmatprep.subr.mxu0 0.0
    %2581 = vmatpush1.msra.mxu0 0.0
    %2582 = vmatprep.subr.mxu0 0.0
    %2583 = vmatpush1.msra.mxu0 0.0
    %2584 = vmatprep.subr.mxu0 0.0
    %2585 = vmatpush1.msra.mxu0 0.0
    %2586 = vmatprep.subr.mxu0 0.0
    %2587 = vmatpush1.msra.mxu0 0.0
    %2588 = vmatprep.subr.mxu0 0.0
    %2589 = vmatpush1.msra.mxu0 0.0
    %2590 = vmatprep.subr.mxu0 0.0
    %2591 = vmatpush1.msra.mxu0 0.0
    %2592 = vmatprep.subr.mxu0 0.0
    %2593 = vmatpush1.msra.mxu0 0.0
    %2594 = vmatprep.subr.mxu0 0.0
    %2595 = vmatpush1.msra.mxu0 0.0
    %2596 = vmatprep.subr.mxu0 0.0
    %2597 = vmatpush1.msra.mxu0 0.0
    %2598 = vmatprep.subr.mxu0 0.0
    %2599 = vmatpush1.msra.mxu0 0.0
    %2600 = vmatprep.subr.mxu0 0.0
    %2601 = vmatpush1.msra.mxu0 0.0
    %2602 = vmatprep.subr.mxu0 0.0
    %2603 = vmatpush1.msra.mxu0 0.0
    %2604 = vmatprep.subr.mxu0 0.0
    %2605 = vmatpush1.msra.mxu0 0.0
    %2606 = vmatprep.subr.mxu0 0.0
    %2607 = vmatpush1.msra.mxu0 0.0
    %2608 = vmatprep.subr.mxu0 0.0
    %2609 = vmatpush1.msra.mxu0 0.0
    %2610 = vmatprep.subr.mxu0 0.0
    %2611 = vmatpush1.msra.mxu0 0.0
    %2612 = vmatprep.subr.mxu0 0.0
    %2613 = vmatpush1.msra.mxu0 0.0
    %2614 = vmatprep.subr.mxu0 0.0
    %2615 = vmatpush1.msra.mxu0 0.0
    %2616 = vmatprep.subr.mxu0 0.0
    %2617 = vmatpush1.msra.mxu0 0.0
    %2618 = vmatprep.subr.mxu0 0.0
    %2619 = vmatpush1.msra.mxu0 0.0
    %2620 = vmatprep.subr.mxu0 0.0
    %2621 = vmatpush1.msra.mxu0 0.0
    %2622 = vmatprep.mubr.f32.mxu0 0.0
    %v2623 = vand.u32 %v1361, 4294901760
    %2624 = vmatmul.mubr.f32.gmra.mrb[0].mxu0 %v2623
    %v2625 = vpop.f32.mrb[0].mxu0
    %v2626 = vadd.f32 %v2503, %v2625
    %v2627 = vpop.f32.mrb[0].mxu0
    %v2628 = vadd.f32 %v2505, %v2627
    %2629 = vmatprep.mubr.f32.mxu0 0.0
    %v2630 = vand.u32 %v1364, 4294901760
    %2631 = vmatmul.mubr.f32.gmra.mrb[0].mxu0 %v2630
    %v2632 = vpop.f32.mrb[0].mxu0
    %v2633 = vadd.f32 %v2512, %v2632
    %v2634 = vpop.f32.mrb[0].mxu0
    %v2635 = vadd.f32 %v2514, %v2634
    %2636 = vmatprep.mubr.f32.mxu0 0.0
    %v2637 = vand.u32 %v1367, 4294901760
    %2638 = vmatmul.mubr.f32.gmra.mrb[0].mxu0 %v2637
    %v2639 = vpop.f32.mrb[0].mxu0
    %v2640 = vadd.f32 %v2521, %v2639
    %v2641 = vpop.f32.mrb[0].mxu0
    %v2642 = vadd.f32 %v2523, %v2641
    %2643 = vmatprep.mubr.f32.mxu0 0.0
    %v2644 = vand.u32 %v1370, 4294901760
    %2645 = vmatmul.mubr.f32.gmra.mrb[0].mxu0 %v2644
    %v2646 = vpop.f32.mrb[0].mxu0
    %v2647 = vadd.f32 %v2530, %v2646
    %v2648 = vpop.f32.mrb[0].mxu0
    %v2649 = vadd.f32 %v2532, %v2648
    %2650 = vdwg.mxu0
    %v2651 = vand.u32 %v1318, 4294901760
    %2652 = vmatprep.subr.mxu0 %v2651
    %v2653 = vand.u32 %v1317, 4294901760
    %2654 = vmatpush1.msra.mxu0 %v2653
    %v2655 = vand.u32 %v1322, 4294901760
    %2656 = vmatprep.subr.mxu0 %v2655
    %v2657 = vand.u32 %v1321, 4294901760
    %2658 = vmatpush1.msra.mxu0 %v2657
    %v2659 = vand.u32 %v1326, 4294901760
    %2660 = vmatprep.subr.mxu0 %v2659
    %v2661 = vand.u32 %v1325, 4294901760
    %2662 = vmatpush1.msra.mxu0 %v2661
    %v2663 = vand.u32 %v1330, 4294901760
    %2664 = vmatprep.subr.mxu0 %v2663
    %v2665 = vand.u32 %v1329, 4294901760
    %2666 = vmatpush1.msra.mxu0 %v2665
    %2667 = vmatprep.subr.mxu0 0.0
    %2668 = vmatpush1.msra.mxu0 0.0
    %2669 = vmatprep.subr.mxu0 0.0
    %2670 = vmatpush1.msra.mxu0 0.0
    %2671 = vmatprep.subr.mxu0 0.0
    %2672 = vmatpush1.msra.mxu0 0.0
    %2673 = vmatprep.subr.mxu0 0.0
    %2674 = vmatpush1.msra.mxu0 0.0
    %2675 = vmatprep.subr.mxu0 0.0
    %2676 = vmatpush1.msra.mxu0 0.0
    %2677 = vmatprep.subr.mxu0 0.0
    %2678 = vmatpush1.msra.mxu0 0.0
    %2679 = vmatprep.subr.mxu0 0.0
    %2680 = vmatpush1.msra.mxu0 0.0
    %2681 = vmatprep.subr.mxu0 0.0
    %2682 = vmatpush1.msra.mxu0 0.0
    %2683 = vmatprep.subr.mxu0 0.0
    %2684 = vmatpush1.msra.mxu0 0.0
    %2685 = vmatprep.subr.mxu0 0.0
    %2686 = vmatpush1.msra.mxu0 0.0
    %2687 = vmatprep.subr.mxu0 0.0
    %2688 = vmatpush1.msra.mxu0 0.0
    %2689 = vmatprep.subr.mxu0 0.0
    %2690 = vmatpush1.msra.mxu0 0.0
    %2691 = vmatprep.subr.mxu0 0.0
    %2692 = vmatpush1.msra.mxu0 0.0
    %2693 = vmatprep.subr.mxu0 0.0
    %2694 = vmatpush1.msra.mxu0 0.0
    %2695 = vmatprep.subr.mxu0 0.0
    %2696 = vmatpush1.msra.mxu0 0.0
    %2697 = vmatprep.subr.mxu0 0.0
    %2698 = vmatpush1.msra.mxu0 0.0
    %2699 = vmatprep.subr.mxu0 0.0
    %2700 = vmatpush1.msra.mxu0 0.0
    %2701 = vmatprep.subr.mxu0 0.0
    %2702 = vmatpush1.msra.mxu0 0.0
    %2703 = vmatprep.subr.mxu0 0.0
    %2704 = vmatpush1.msra.mxu0 0.0
    %2705 = vmatprep.subr.mxu0 0.0
    %2706 = vmatpush1.msra.mxu0 0.0
    %2707 = vmatprep.subr.mxu0 0.0
    %2708 = vmatpush1.msra.mxu0 0.0
    %2709 = vmatprep.subr.mxu0 0.0
    %2710 = vmatpush1.msra.mxu0 0.0
    %2711 = vmatprep.subr.mxu0 0.0
    %2712 = vmatpush1.msra.mxu0 0.0
    %2713 = vmatprep.subr.mxu0 0.0
    %2714 = vmatpush1.msra.mxu0 0.0
    %2715 = vmatprep.subr.mxu0 0.0
    %2716 = vmatpush1.msra.mxu0 0.0
    %2717 = vmatprep.subr.mxu0 0.0
    %2718 = vmatpush1.msra.mxu0 0.0
    %2719 = vmatprep.subr.mxu0 0.0
    %2720 = vmatpush1.msra.mxu0 0.0
    %2721 = vmatprep.subr.mxu0 0.0
    %2722 = vmatpush1.msra.mxu0 0.0
    %2723 = vmatprep.mubr.f32.mxu0 0.0
    %v2724 = vand.u32 %v1361, 4294901760
    %2725 = vmatmul.mubr.f32.gmra.mrb[0].mxu0 %v2724
    %v2726 = vpop.f32.mrb[0].mxu0
    %v2727 = vadd.f32 %v2626, %v2726
    %v2728 = vpop.f32.mrb[0].mxu0
    %v2729 = vadd.f32 %v2628, %v2728
    %2730 = vmatprep.mubr.f32.mxu0 0.0
    %v2731 = vand.u32 %v1364, 4294901760
    %2732 = vmatmul.mubr.f32.gmra.mrb[0].mxu0 %v2731
    %v2733 = vpop.f32.mrb[0].mxu0
    %v2734 = vadd.f32 %v2633, %v2733
    %v2735 = vpop.f32.mrb[0].mxu0
    %v2736 = vadd.f32 %v2635, %v2735
    %2737 = vmatprep.mubr.f32.mxu0 0.0
    %v2738 = vand.u32 %v1367, 4294901760
    %2739 = vmatmul.mubr.f32.gmra.mrb[0].mxu0 %v2738
    %v2740 = vpop.f32.mrb[0].mxu0
    %v2741 = vadd.f32 %v2640, %v2740
    %v2742 = vpop.f32.mrb[0].mxu0
    %v2743 = vadd.f32 %v2642, %v2742
    %2744 = vmatprep.mubr.f32.mxu0 0.0
    %v2745 = vand.u32 %v1370, 4294901760
    %2746 = vmatmul.mubr.f32.gmra.mrb[0].mxu0 %v2745
    %v2747 = vpop.f32.mrb[0].mxu0
    %v2748 = vadd.f32 %v2647, %v2747
    %v2749 = vpop.f32.mrb[0].mxu0
    %v2750 = vadd.f32 %v2649, %v2749
    %2751 = vdwg.mxu0
    %v2752 = vtanh.pop %v2037
    %v2753 = vtanh.pop %v2039
    %v2754 = vtanh.pop %v2727
    %v2755 = vtanh.pop %v2729
    %v2756 = vtanh.pop %v2044
    %v2757 = vtanh.pop %v2046
    %v2758 = vtanh.pop %v2734
    %v2759 = vtanh.pop %v2736
    %v2760 = vtanh.pop %v2051
    %v2761 = vtanh.pop %v2053
    %v2762 = vtanh.pop %v2741
    %v2763 = vtanh.pop %v2743
    %v2764 = vtanh.pop %v2058
    %v2765 = vtanh.pop %v2060
    %v2766 = vtanh.pop %v2748
    %v2767 = vtanh.pop %v2750
    %v2768 = vld [vmem:[%s5] sm:$0xff]
    %v2769 = vld [vmem:[%s5 + $0x8] sm:$0xff]
    %v2770 = vld [vmem:[%s5 + $0x10] sm:$0xff]
    %v2771 = vld [vmem:[%s5 + $0x18] sm:$0xff]
    %v2772 = vld [vmem:[%s6] sm:$0xff]
    %v2773 = vld [vmem:[%s6 + $0x8] sm:$0xff]
    %v2774 = vld [vmem:[%s6 + $0x10] sm:$0xff]
    %v2775 = vld [vmem:[%s6 + $0x18] sm:$0xff]
    %2777 = vset.pattern.permute.xlu0 0
    %2778 = vperm.xlu0 %2777, %v2772
    %v2779 = vpop.permute.xlu0 %2778
    %2782 = vset.pattern.permute.xlu0 0
    %2783 = vperm.xlu0 %2782, %v2773
    %v2784 = vpop.permute.xlu0 %2783
    %2787 = vset.pattern.permute.xlu0 0
    %2788 = vperm.xlu0 %2787, %v2774
    %v2789 = vpop.permute.xlu0 %2788
    %2792 = vset.pattern.permute.xlu0 0
    %2793 = vperm.xlu0 %2792, %v2775
    %v2794 = vpop.permute.xlu0 %2793
    %v2797 = vsel %vm1359, %v2768, 0
    %v2800 = vsel %vm1359, %v2769, 0
    %v2803 = vsel %vm1359, %v2770, 0
    %v2806 = vsel %vm1359, %v2771, 0
    %v2808 = vand.u32 %v2753, 4294901760
    %2809 = vmatprep.subr.mxu0 %v2808
    %v2810 = vand.u32 %v2752, 4294901760
    %2811 = vmatpush1.msra.mxu0 %v2810
    %v2812 = vand.u32 %v2757, 4294901760
    %2813 = vmatprep.subr.mxu0 %v2812
    %v2814 = vand.u32 %v2756, 4294901760
    %2815 = vmatpush1.msra.mxu0 %v2814
    %v2816 = vand.u32 %v2761, 4294901760
    %2817 = vmatprep.subr.mxu0 %v2816
    %v2818 = vand.u32 %v2760, 4294901760
    %2819 = vmatpush1.msra.mxu0 %v2818
    %v2820 = vand.u32 %v2765, 4294901760
    %2821 = vmatprep.subr.mxu0 %v2820
    %v2822 = vand.u32 %v2764, 4294901760
    %2823 = vmatpush1.msra.mxu0 %v2822
    %2824 = vmatprep.subr.mxu0 0.0
    %2825 = vmatpush1.msra.mxu0 0.0
    %2826 = vmatprep.subr.mxu0 0.0
    %2827 = vmatpush1.msra.mxu0 0.0
    %2828 = vmatprep.subr.mxu0 0.0
    %2829 = vmatpush1.msra.mxu0 0.0
    %2830 = vmatprep.subr.mxu0 0.0
    %2831 = vmatpush1.msra.mxu0 0.0
    %2832 = vmatprep.subr.mxu0 0.0
    %2833 = vmatpush1.msra.mxu0 0.0
    %2834 = vmatprep.subr.mxu0 0.0
    %2835 = vmatpush1.msra.mxu0 0.0
    %2836 = vmatprep.subr.mxu0 0.0
    %2837 = vmatpush1.msra.mxu0 0.0
    %2838 = vmatprep.subr.mxu0 0.0
    %2839 = vmatpush1.msra.mxu0 0.0
    %2840 = vmatprep.subr.mxu0 0.0
    %2841 = vmatpush1.msra.mxu0 0.0
    %2842 = vmatprep.subr.mxu0 0.0
    %2843 = vmatpush1.msra.mxu0 0.0
    %2844 = vmatprep.subr.mxu0 0.0
    %2845 = vmatpush1.msra.mxu0 0.0
    %2846 = vmatprep.subr.mxu0 0.0
    %2847 = vmatpush1.msra.mxu0 0.0
    %2848 = vmatprep.subr.mxu0 0.0
    %2849 = vmatpush1.msra.mxu0 0.0
    %2850 = vmatprep.subr.mxu0 0.0
    %2851 = vmatpush1.msra.mxu0 0.0
    %2852 = vmatprep.subr.mxu0 0.0
    %2853 = vmatpush1.msra.mxu0 0.0
    %2854 = vmatprep.subr.mxu0 0.0
    %2855 = vmatpush1.msra.mxu0 0.0
    %2856 = vmatprep.subr.mxu0 0.0
    %2857 = vmatpush1.msra.mxu0 0.0
    %2858 = vmatprep.subr.mxu0 0.0
    %2859 = vmatpush1.msra.mxu0 0.0
    %2860 = vmatprep.subr.mxu0 0.0
    %2861 = vmatpush1.msra.mxu0 0.0
    %2862 = vmatprep.subr.mxu0 0.0
    %2863 = vmatpush1.msra.mxu0 0.0
    %2864 = vmatprep.subr.mxu0 0.0
    %2865 = vmatpush1.msra.mxu0 0.0
    %2866 = vmatprep.subr.mxu0 0.0
    %2867 = vmatpush1.msra.mxu0 0.0
    %2868 = vmatprep.subr.mxu0 0.0
    %2869 = vmatpush1.msra.mxu0 0.0
    %2870 = vmatprep.subr.mxu0 0.0
    %2871 = vmatpush1.msra.mxu0 0.0
    %2872 = vmatprep.subr.mxu0 0.0
    %2873 = vmatpush1.msra.mxu0 0.0
    %2874 = vmatprep.subr.mxu0 0.0
    %2875 = vmatpush1.msra.mxu0 0.0
    %2876 = vmatprep.subr.mxu0 0.0
    %2877 = vmatpush1.msra.mxu0 0.0
    %2878 = vmatprep.subr.mxu0 0.0
    %2879 = vmatpush1.msra.mxu0 0.0
    %2880 = vmatprep.mubr.f32.mxu0 0.0
    %v2881 = vand.u32 %v2797, 4294901760
    %v2882 = vsub.f32 %v2797, %v2881
    %v2883 = vand.u32 %v2882, 4294901760
    %v2884 = vsub.f32 %v2882, %v2883
    %v2885 = vand.u32 %v2884, 4294901760
    %2886 = vmatmul.mubr.f32.gmra.mrb[0].mxu0 %v2885
    %v2887 = vpop.f32.mrb[0].mxu0
    %v2888 = vadd.f32 %v2779, %v2887
    %v2889 = vpop.f32.mrb[0].mxu0
    %v2890 = vadd.f32 %v2779, %v2889
    %2891 = vmatprep.mubr.f32.mxu0 0.0
    %v2892 = vand.u32 %v2800, 4294901760
    %v2893 = vsub.f32 %v2800, %v2892
    %v2894 = vand.u32 %v2893, 4294901760
    %v2895 = vsub.f32 %v2893, %v2894
    %v2896 = vand.u32 %v2895, 4294901760
    %2897 = vmatmul.mubr.f32.gmra.mrb[0].mxu0 %v2896
    %v2898 = vpop.f32.mrb[0].mxu0
    %v2899 = vadd.f32 %v2784, %v2898
    %v2900 = vpop.f32.mrb[0].mxu0
    %v2901 = vadd.f32 %v2784, %v2900
    %2902 = vmatprep.mubr.f32.mxu0 0.0
    %v2903 = vand.u32 %v2803, 4294901760
    %v2904 = vsub.f32 %v2803, %v2903
    %v2905 = vand.u32 %v2904, 4294901760
    %v2906 = vsub.f32 %v2904, %v2905
    %v2907 = vand.u32 %v2906, 4294901760
    %2908 = vmatmul.mubr.f32.gmra.mrb[0].mxu0 %v2907
    %v2909 = vpop.f32.mrb[0].mxu0
    %v2910 = vadd.f32 %v2789, %v2909
    %v2911 = vpop.f32.mrb[0].mxu0
    %v2912 = vadd.f32 %v2789, %v2911
    %2913 = vmatprep.mubr.f32.mxu0 0.0
    %v2914 = vand.u32 %v2806, 4294901760
    %v2915 = vsub.f32 %v2806, %v2914
    %v2916 = vand.u32 %v2915, 4294901760
    %v2917 = vsub.f32 %v2915, %v2916
    %v2918 = vand.u32 %v2917, 4294901760
    %2919 = vmatmul.mubr.f32.gmra.mrb[0].mxu0 %v2918
    %v2920 = vpop.f32.mrb[0].mxu0
    %v2921 = vadd.f32 %v2794, %v2920
    %v2922 = vpop.f32.mrb[0].mxu0
    %v2923 = vadd.f32 %v2794, %v2922
    %2924 = vdwg.mxu0
    %v2925 = vand.u32 %v2753, 4294901760
    %v2926 = vsub.f32 %v2753, %v2925
    %v2927 = vand.u32 %v2926, 4294901760
    %v2928 = vsub.f32 %v2926, %v2927
    %v2929 = vand.u32 %v2928, 4294901760
    %2930 = vmatprep.subr.mxu0 %v2929
    %v2931 = vand.u32 %v2752, 4294901760
    %v2932 = vsub.f32 %v2752, %v2931
    %v2933 = vand.u32 %v2932, 4294901760
    %v2934 = vsub.f32 %v2932, %v2933
    %v2935 = vand.u32 %v2934, 4294901760
    %2936 = vmatpush1.msra.mxu0 %v2935
    %v2937 = vand.u32 %v2757, 4294901760
    %v2938 = vsub.f32 %v2757, %v2937
    %v2939 = vand.u32 %v2938, 4294901760
    %v2940 = vsub.f32 %v2938, %v2939
    %v2941 = vand.u32 %v2940, 4294901760
    %2942 = vmatprep.subr.mxu0 %v2941
    %v2943 = vand.u32 %v2756, 4294901760
    %v2944 = vsub.f32 %v2756, %v2943
    %v2945 = vand.u32 %v2944, 4294901760
    %v2946 = vsub.f32 %v2944, %v2945
    %v2947 = vand.u32 %v2946, 4294901760
    %2948 = vmatpush1.msra.mxu0 %v2947
    %v2949 = vand.u32 %v2761, 4294901760
    %v2950 = vsub.f32 %v2761, %v2949
    %v2951 = vand.u32 %v2950, 4294901760
    %v2952 = vsub.f32 %v2950, %v2951
    %v2953 = vand.u32 %v2952, 4294901760
    %2954 = vmatprep.subr.mxu0 %v2953
    %v2955 = vand.u32 %v2760, 4294901760
    %v2956 = vsub.f32 %v2760, %v2955
    %v2957 = vand.u32 %v2956, 4294901760
    %v2958 = vsub.f32 %v2956, %v2957
    %v2959 = vand.u32 %v2958, 4294901760
    %2960 = vmatpush1.msra.mxu0 %v2959
    %v2961 = vand.u32 %v2765, 4294901760
    %v2962 = vsub.f32 %v2765, %v2961
    %v2963 = vand.u32 %v2962, 4294901760
    %v2964 = vsub.f32 %v2962, %v2963
    %v2965 = vand.u32 %v2964, 4294901760
    %2966 = vmatprep.subr.mxu0 %v2965
    %v2967 = vand.u32 %v2764, 4294901760
    %v2968 = vsub.f32 %v2764, %v2967
    %v2969 = vand.u32 %v2968, 4294901760
    %v2970 = vsub.f32 %v2968, %v2969
    %v2971 = vand.u32 %v2970, 4294901760
    %2972 = vmatpush1.msra.mxu0 %v2971
    %2973 = vmatprep.subr.mxu0 0.0
    %2974 = vmatpush1.msra.mxu0 0.0
    %2975 = vmatprep.subr.mxu0 0.0
    %2976 = vmatpush1.msra.mxu0 0.0
    %2977 = vmatprep.subr.mxu0 0.0
    %2978 = vmatpush1.msra.mxu0 0.0
    %2979 = vmatprep.subr.mxu0 0.0
    %2980 = vmatpush1.msra.mxu0 0.0
    %2981 = vmatprep.subr.mxu0 0.0
    %2982 = vmatpush1.msra.mxu0 0.0
    %2983 = vmatprep.subr.mxu0 0.0
    %2984 = vmatpush1.msra.mxu0 0.0
    %2985 = vmatprep.subr.mxu0 0.0
    %2986 = vmatpush1.msra.mxu0 0.0
    %2987 = vmatprep.subr.mxu0 0.0
    %2988 = vmatpush1.msra.mxu0 0.0
    %2989 = vmatprep.subr.mxu0 0.0
    %2990 = vmatpush1.msra.mxu0 0.0
    %2991 = vmatprep.subr.mxu0 0.0
    %2992 = vmatpush1.msra.mxu0 0.0
    %2993 = vmatprep.subr.mxu0 0.0
    %2994 = vmatpush1.msra.mxu0 0.0
    %2995 = vmatprep.subr.mxu0 0.0
    %2996 = vmatpush1.msra.mxu0 0.0
    %2997 = vmatprep.subr.mxu0 0.0
    %2998 = vmatpush1.msra.mxu0 0.0
    %2999 = vmatprep.subr.mxu0 0.0
    %3000 = vmatpush1.msra.mxu0 0.0
    %3001 = vmatprep.subr.mxu0 0.0
    %3002 = vmatpush1.msra.mxu0 0.0
    %3003 = vmatprep.subr.mxu0 0.0
    %3004 = vmatpush1.msra.mxu0 0.0
    %3005 = vmatprep.subr.mxu0 0.0
    %3006 = vmatpush1.msra.mxu0 0.0
    %3007 = vmatprep.subr.mxu0 0.0
    %3008 = vmatpush1.msra.mxu0 0.0
    %3009 = vmatprep.subr.mxu0 0.0
    %3010 = vmatpush1.msra.mxu0 0.0
    %3011 = vmatprep.subr.mxu0 0.0
    %3012 = vmatpush1.msra.mxu0 0.0
    %3013 = vmatprep.subr.mxu0 0.0
    %3014 = vmatpush1.msra.mxu0 0.0
    %3015 = vmatprep.subr.mxu0 0.0
    %3016 = vmatpush1.msra.mxu0 0.0
    %3017 = vmatprep.subr.mxu0 0.0
    %3018 = vmatpush1.msra.mxu0 0.0
    %3019 = vmatprep.subr.mxu0 0.0
    %3020 = vmatpush1.msra.mxu0 0.0
    %3021 = vmatprep.subr.mxu0 0.0
    %3022 = vmatpush1.msra.mxu0 0.0
    %3023 = vmatprep.subr.mxu0 0.0
    %3024 = vmatpush1.msra.mxu0 0.0
    %3025 = vmatprep.subr.mxu0 0.0
    %3026 = vmatpush1.msra.mxu0 0.0
    %3027 = vmatprep.subr.mxu0 0.0
    %3028 = vmatpush1.msra.mxu0 0.0
    %3029 = vmatprep.mubr.f32.mxu0 0.0
    %v3030 = vand.u32 %v2797, 4294901760
    %3031 = vmatmul.mubr.f32.gmra.mrb[0].mxu0 %v3030
    %v3032 = vpop.f32.mrb[0].mxu0
    %v3033 = vadd.f32 %v2888, %v3032
    %v3034 = vpop.f32.mrb[0].mxu0
    %v3035 = vadd.f32 %v2890, %v3034
    %3036 = vmatprep.mubr.f32.mxu0 0.0
    %v3037 = vand.u32 %v2800, 4294901760
    %3038 = vmatmul.mubr.f32.gmra.mrb[0].mxu0 %v3037
    %v3039 = vpop.f32.mrb[0].mxu0
    %v3040 = vadd.f32 %v2899, %v3039
    %v3041 = vpop.f32.mrb[0].mxu0
    %v3042 = vadd.f32 %v2901, %v3041
    %3043 = vmatprep.mubr.f32.mxu0 0.0
    %v3044 = vand.u32 %v2803, 4294901760
    %3045 = vmatmul.mubr.f32.gmra.mrb[0].mxu0 %v3044
    %v3046 = vpop.f32.mrb[0].mxu0
    %v3047 = vadd.f32 %v2910, %v3046
    %v3048 = vpop.f32.mrb[0].mxu0
    %v3049 = vadd.f32 %v2912, %v3048
    %3050 = vmatprep.mubr.f32.mxu0 0.0
    %v3051 = vand.u32 %v2806, 4294901760
    %3052 = vmatmul.mubr.f32.gmra.mrb[0].mxu0 %v3051
    %v3053 = vpop.f32.mrb[0].mxu0
    %v3054 = vadd.f32 %v2921, %v3053
    %v3055 = vpop.f32.mrb[0].mxu0
    %v3056 = vadd.f32 %v2923, %v3055
    %3057 = vdwg.mxu0
    %v3058 = vand.u32 %v2753, 4294901760
    %v3059 = vsub.f32 %v2753, %v3058
    %3060 = vmatprep.subr.mxu0 %v3059
    %v3061 = vand.u32 %v2752, 4294901760
    %v3062 = vsub.f32 %v2752, %v3061
    %3063 = vmatpush1.msra.mxu0 %v3062
    %v3064 = vand.u32 %v2757, 4294901760
    %v3065 = vsub.f32 %v2757, %v3064
    %3066 = vmatprep.subr.mxu0 %v3065
    %v3067 = vand.u32 %v2756, 4294901760
    %v3068 = vsub.f32 %v2756, %v3067
    %3069 = vmatpush1.msra.mxu0 %v3068
    %v3070 = vand.u32 %v2761, 4294901760
    %v3071 = vsub.f32 %v2761, %v3070
    %3072 = vmatprep.subr.mxu0 %v3071
    %v3073 = vand.u32 %v2760, 4294901760
    %v3074 = vsub.f32 %v2760, %v3073
    %3075 = vmatpush1.msra.mxu0 %v3074
    %v3076 = vand.u32 %v2765, 4294901760
    %v3077 = vsub.f32 %v2765, %v3076
    %3078 = vmatprep.subr.mxu0 %v3077
    %v3079 = vand.u32 %v2764, 4294901760
    %v3080 = vsub.f32 %v2764, %v3079
    %3081 = vmatpush1.msra.mxu0 %v3080
    %3082 = vmatprep.subr.mxu0 0.0
    %3083 = vmatpush1.msra.mxu0 0.0
    %3084 = vmatprep.subr.mxu0 0.0
    %3085 = vmatpush1.msra.mxu0 0.0
    %3086 = vmatprep.subr.mxu0 0.0
    %3087 = vmatpush1.msra.mxu0 0.0
    %3088 = vmatprep.subr.mxu0 0.0
    %3089 = vmatpush1.msra.mxu0 0.0
    %3090 = vmatprep.subr.mxu0 0.0
    %3091 = vmatpush1.msra.mxu0 0.0
    %3092 = vmatprep.subr.mxu0 0.0
    %3093 = vmatpush1.msra.mxu0 0.0
    %3094 = vmatprep.subr.mxu0 0.0
    %3095 = vmatpush1.msra.mxu0 0.0
    %3096 = vmatprep.subr.mxu0 0.0
    %3097 = vmatpush1.msra.mxu0 0.0
    %3098 = vmatprep.subr.mxu0 0.0
    %3099 = vmatpush1.msra.mxu0 0.0
    %3100 = vmatprep.subr.mxu0 0.0
    %3101 = vmatpush1.msra.mxu0 0.0
    %3102 = vmatprep.subr.mxu0 0.0
    %3103 = vmatpush1.msra.mxu0 0.0
    %3104 = vmatprep.subr.mxu0 0.0
    %3105 = vmatpush1.msra.mxu0 0.0
    %3106 = vmatprep.subr.mxu0 0.0
    %3107 = vmatpush1.msra.mxu0 0.0
    %3108 = vmatprep.subr.mxu0 0.0
    %3109 = vmatpush1.msra.mxu0 0.0
    %3110 = vmatprep.subr.mxu0 0.0
    %3111 = vmatpush1.msra.mxu0 0.0
    %3112 = vmatprep.subr.mxu0 0.0
    %3113 = vmatpush1.msra.mxu0 0.0
    %3114 = vmatprep.subr.mxu0 0.0
    %3115 = vmatpush1.msra.mxu0 0.0
    %3116 = vmatprep.subr.mxu0 0.0
    %3117 = vmatpush1.msra.mxu0 0.0
    %3118 = vmatprep.subr.mxu0 0.0
    %3119 = vmatpush1.msra.mxu0 0.0
    %3120 = vmatprep.subr.mxu0 0.0
    %3121 = vmatpush1.msra.mxu0 0.0
    %3122 = vmatprep.subr.mxu0 0.0
    %3123 = vmatpush1.msra.mxu0 0.0
    %3124 = vmatprep.subr.mxu0 0.0
    %3125 = vmatpush1.msra.mxu0 0.0
    %3126 = vmatprep.subr.mxu0 0.0
    %3127 = vmatpush1.msra.mxu0 0.0
    %3128 = vmatprep.subr.mxu0 0.0
    %3129 = vmatpush1.msra.mxu0 0.0
    %3130 = vmatprep.subr.mxu0 0.0
    %3131 = vmatpush1.msra.mxu0 0.0
    %3132 = vmatprep.subr.mxu0 0.0
    %3133 = vmatpush1.msra.mxu0 0.0
    %3134 = vmatprep.subr.mxu0 0.0
    %3135 = vmatpush1.msra.mxu0 0.0
    %3136 = vmatprep.subr.mxu0 0.0
    %3137 = vmatpush1.msra.mxu0 0.0
    %3138 = vmatprep.mubr.f32.mxu0 0.0
    %v3139 = vand.u32 %v2797, 4294901760
    %v3140 = vsub.f32 %v2797, %v3139
    %3141 = vmatmul.mubr.f32.gmra.mrb[0].mxu0 %v3140
    %v3142 = vpop.f32.mrb[0].mxu0
    %v3143 = vadd.f32 %v3033, %v3142
    %v3144 = vpop.f32.mrb[0].mxu0
    %v3145 = vadd.f32 %v3035, %v3144
    %3146 = vmatprep.mubr.f32.mxu0 0.0
    %v3147 = vand.u32 %v2800, 4294901760
    %v3148 = vsub.f32 %v2800, %v3147
    %3149 = vmatmul.mubr.f32.gmra.mrb[0].mxu0 %v3148
    %v3150 = vpop.f32.mrb[0].mxu0
    %v3151 = vadd.f32 %v3040, %v3150
    %v3152 = vpop.f32.mrb[0].mxu0
    %v3153 = vadd.f32 %v3042, %v3152
    %3154 = vmatprep.mubr.f32.mxu0 0.0
    %v3155 = vand.u32 %v2803, 4294901760
    %v3156 = vsub.f32 %v2803, %v3155
    %3157 = vmatmul.mubr.f32.gmra.mrb[0].mxu0 %v3156
    %v3158 = vpop.f32.mrb[0].mxu0
    %v3159 = vadd.f32 %v3047, %v3158
    %v3160 = vpop.f32.mrb[0].mxu0
    %v3161 = vadd.f32 %v3049, %v3160
    %3162 = vmatprep.mubr.f32.mxu0 0.0
    %v3163 = vand.u32 %v2806, 4294901760
    %v3164 = vsub.f32 %v2806, %v3163
    %3165 = vmatmul.mubr.f32.gmra.mrb[0].mxu0 %v3164
    %v3166 = vpop.f32.mrb[0].mxu0
    %v3167 = vadd.f32 %v3054, %v3166
    %v3168 = vpop.f32.mrb[0].mxu0
    %v3169 = vadd.f32 %v3056, %v3168
    %3170 = vdwg.mxu0
    %v3171 = vand.u32 %v2753, 4294901760
    %3172 = vmatprep.subr.mxu0 %v3171
    %v3173 = vand.u32 %v2752, 4294901760
    %3174 = vmatpush1.msra.mxu0 %v3173
    %v3175 = vand.u32 %v2757, 4294901760
    %3176 = vmatprep.subr.mxu0 %v3175
    %v3177 = vand.u32 %v2756, 4294901760
    %3178 = vmatpush1.msra.mxu0 %v3177
    %v3179 = vand.u32 %v2761, 4294901760
    %3180 = vmatprep.subr.mxu0 %v3179
    %v3181 = vand.u32 %v2760, 4294901760
    %3182 = vmatpush1.msra.mxu0 %v3181
    %v3183 = vand.u32 %v2765, 4294901760
    %3184 = vmatprep.subr.mxu0 %v3183
    %v3185 = vand.u32 %v2764, 4294901760
    %3186 = vmatpush1.msra.mxu0 %v3185
    %3187 = vmatprep.subr.mxu0 0.0
    %3188 = vmatpush1.msra.mxu0 0.0
    %3189 = vmatprep.subr.mxu0 0.0
    %3190 = vmatpush1.msra.mxu0 0.0
    %3191 = vmatprep.subr.mxu0 0.0
    %3192 = vmatpush1.msra.mxu0 0.0
    %3193 = vmatprep.subr.mxu0 0.0
    %3194 = vmatpush1.msra.mxu0 0.0
    %3195 = vmatprep.subr.mxu0 0.0
    %3196 = vmatpush1.msra.mxu0 0.0
    %3197 = vmatprep.subr.mxu0 0.0
    %3198 = vmatpush1.msra.mxu0 0.0
    %3199 = vmatprep.subr.mxu0 0.0
    %3200 = vmatpush1.msra.mxu0 0.0
    %3201 = vmatprep.subr.mxu0 0.0
    %3202 = vmatpush1.msra.mxu0 0.0
    %3203 = vmatprep.subr.mxu0 0.0
    %3204 = vmatpush1.msra.mxu0 0.0
    %3205 = vmatprep.subr.mxu0 0.0
    %3206 = vmatpush1.msra.mxu0 0.0
    %3207 = vmatprep.subr.mxu0 0.0
    %3208 = vmatpush1.msra.mxu0 0.0
    %3209 = vmatprep.subr.mxu0 0.0
    %3210 = vmatpush1.msra.mxu0 0.0
    %3211 = vmatprep.subr.mxu0 0.0
    %3212 = vmatpush1.msra.mxu0 0.0
    %3213 = vmatprep.subr.mxu0 0.0
    %3214 = vmatpush1.msra.mxu0 0.0
    %3215 = vmatprep.subr.mxu0 0.0
    %3216 = vmatpush1.msra.mxu0 0.0
    %3217 = vmatprep.subr.mxu0 0.0
    %3218 = vmatpush1.msra.mxu0 0.0
    %3219 = vmatprep.subr.mxu0 0.0
    %3220 = vmatpush1.msra.mxu0 0.0
    %3221 = vmatprep.subr.mxu0 0.0
    %3222 = vmatpush1.msra.mxu0 0.0
    %3223 = vmatprep.subr.mxu0 0.0
    %3224 = vmatpush1.msra.mxu0 0.0
    %3225 = vmatprep.subr.mxu0 0.0
    %3226 = vmatpush1.msra.mxu0 0.0
    %3227 = vmatprep.subr.mxu0 0.0
    %3228 = vmatpush1.msra.mxu0 0.0
    %3229 = vmatprep.subr.mxu0 0.0
    %3230 = vmatpush1.msra.mxu0 0.0
    %3231 = vmatprep.subr.mxu0 0.0
    %3232 = vmatpush1.msra.mxu0 0.0
    %3233 = vmatprep.subr.mxu0 0.0
    %3234 = vmatpush1.msra.mxu0 0.0
    %3235 = vmatprep.subr.mxu0 0.0
    %3236 = vmatpush1.msra.mxu0 0.0
    %3237 = vmatprep.subr.mxu0 0.0
    %3238 = vmatpush1.msra.mxu0 0.0
    %3239 = vmatprep.subr.mxu0 0.0
    %3240 = vmatpush1.msra.mxu0 0.0
    %3241 = vmatprep.subr.mxu0 0.0
    %3242 = vmatpush1.msra.mxu0 0.0
    %3243 = vmatprep.mubr.f32.mxu0 0.0
    %v3244 = vand.u32 %v2797, 4294901760
    %v3245 = vsub.f32 %v2797, %v3244
    %v3246 = vand.u32 %v3245, 4294901760
    %3247 = vmatmul.mubr.f32.gmra.mrb[0].mxu0 %v3246
    %v3248 = vpop.f32.mrb[0].mxu0
    %v3249 = vadd.f32 %v3143, %v3248
    %v3250 = vpop.f32.mrb[0].mxu0
    %v3251 = vadd.f32 %v3145, %v3250
    %3252 = vmatprep.mubr.f32.mxu0 0.0
    %v3253 = vand.u32 %v2800, 4294901760
    %v3254 = vsub.f32 %v2800, %v3253
    %v3255 = vand.u32 %v3254, 4294901760
    %3256 = vmatmul.mubr.f32.gmra.mrb[0].mxu0 %v3255
    %v3257 = vpop.f32.mrb[0].mxu0
    %v3258 = vadd.f32 %v3151, %v3257
    %v3259 = vpop.f32.mrb[0].mxu0
    %v3260 = vadd.f32 %v3153, %v3259
    %3261 = vmatprep.mubr.f32.mxu0 0.0
    %v3262 = vand.u32 %v2803, 4294901760
    %v3263 = vsub.f32 %v2803, %v3262
    %v3264 = vand.u32 %v3263, 4294901760
    %3265 = vmatmul.mubr.f32.gmra.mrb[0].mxu0 %v3264
    %v3266 = vpop.f32.mrb[0].mxu0
    %v3267 = vadd.f32 %v3159, %v3266
    %v3268 = vpop.f32.mrb[0].mxu0
    %v3269 = vadd.f32 %v3161, %v3268
    %3270 = vmatprep.mubr.f32.mxu0 0.0
    %v3271 = vand.u32 %v2806, 4294901760
    %v3272 = vsub.f32 %v2806, %v3271
    %v3273 = vand.u32 %v3272, 4294901760
    %3274 = vmatmul.mubr.f32.gmra.mrb[0].mxu0 %v3273
    %v3275 = vpop.f32.mrb[0].mxu0
    %v3276 = vadd.f32 %v3167, %v3275
    %v3277 = vpop.f32.mrb[0].mxu0
    %v3278 = vadd.f32 %v3169, %v3277
    %3279 = vdwg.mxu0
    %v3280 = vand.u32 %v2753, 4294901760
    %v3281 = vsub.f32 %v2753, %v3280
    %v3282 = vand.u32 %v3281, 4294901760
    %3283 = vmatprep.subr.mxu0 %v3282
    %v3284 = vand.u32 %v2752, 4294901760
    %v3285 = vsub.f32 %v2752, %v3284
    %v3286 = vand.u32 %v3285, 4294901760
    %3287 = vmatpush1.msra.mxu0 %v3286
    %v3288 = vand.u32 %v2757, 4294901760
    %v3289 = vsub.f32 %v2757, %v3288
    %v3290 = vand.u32 %v3289, 4294901760
    %3291 = vmatprep.subr.mxu0 %v3290
    %v3292 = vand.u32 %v2756, 4294901760
    %v3293 = vsub.f32 %v2756, %v3292
    %v3294 = vand.u32 %v3293, 4294901760
    %3295 = vmatpush1.msra.mxu0 %v3294
    %v3296 = vand.u32 %v2761, 4294901760
    %v3297 = vsub.f32 %v2761, %v3296
    %v3298 = vand.u32 %v3297, 4294901760
    %3299 = vmatprep.subr.mxu0 %v3298
    %v3300 = vand.u32 %v2760, 4294901760
    %v3301 = vsub.f32 %v2760, %v3300
    %v3302 = vand.u32 %v3301, 4294901760
    %3303 = vmatpush1.msra.mxu0 %v3302
    %v3304 = vand.u32 %v2765, 4294901760
    %v3305 = vsub.f32 %v2765, %v3304
    %v3306 = vand.u32 %v3305, 4294901760
    %3307 = vmatprep.subr.mxu0 %v3306
    %v3308 = vand.u32 %v2764, 4294901760
    %v3309 = vsub.f32 %v2764, %v3308
    %v3310 = vand.u32 %v3309, 4294901760
    %3311 = vmatpush1.msra.mxu0 %v3310
    %3312 = vmatprep.subr.mxu0 0.0
    %3313 = vmatpush1.msra.mxu0 0.0
    %3314 = vmatprep.subr.mxu0 0.0
    %3315 = vmatpush1.msra.mxu0 0.0
    %3316 = vmatprep.subr.mxu0 0.0
    %3317 = vmatpush1.msra.mxu0 0.0
    %3318 = vmatprep.subr.mxu0 0.0
    %3319 = vmatpush1.msra.mxu0 0.0
    %3320 = vmatprep.subr.mxu0 0.0
    %3321 = vmatpush1.msra.mxu0 0.0
    %3322 = vmatprep.subr.mxu0 0.0
    %3323 = vmatpush1.msra.mxu0 0.0
    %3324 = vmatprep.subr.mxu0 0.0
    %3325 = vmatpush1.msra.mxu0 0.0
    %3326 = vmatprep.subr.mxu0 0.0
    %3327 = vmatpush1.msra.mxu0 0.0
    %3328 = vmatprep.subr.mxu0 0.0
    %3329 = vmatpush1.msra.mxu0 0.0
    %3330 = vmatprep.subr.mxu0 0.0
    %3331 = vmatpush1.msra.mxu0 0.0
    %3332 = vmatprep.subr.mxu0 0.0
    %3333 = vmatpush1.msra.mxu0 0.0
    %3334 = vmatprep.subr.mxu0 0.0
    %3335 = vmatpush1.msra.mxu0 0.0
    %3336 = vmatprep.subr.mxu0 0.0
    %3337 = vmatpush1.msra.mxu0 0.0
    %3338 = vmatprep.subr.mxu0 0.0
    %3339 = vmatpush1.msra.mxu0 0.0
    %3340 = vmatprep.subr.mxu0 0.0
    %3341 = vmatpush1.msra.mxu0 0.0
    %3342 = vmatprep.subr.mxu0 0.0
    %3343 = vmatpush1.msra.mxu0 0.0
    %3344 = vmatprep.subr.mxu0 0.0
    %3345 = vmatpush1.msra.mxu0 0.0
    %3346 = vmatprep.subr.mxu0 0.0
    %3347 = vmatpush1.msra.mxu0 0.0
    %3348 = vmatprep.subr.mxu0 0.0
    %3349 = vmatpush1.msra.mxu0 0.0
    %3350 = vmatprep.subr.mxu0 0.0
    %3351 = vmatpush1.msra.mxu0 0.0
    %3352 = vmatprep.subr.mxu0 0.0
    %3353 = vmatpush1.msra.mxu0 0.0
    %3354 = vmatprep.subr.mxu0 0.0
    %3355 = vmatpush1.msra.mxu0 0.0
    %3356 = vmatprep.subr.mxu0 0.0
    %3357 = vmatpush1.msra.mxu0 0.0
    %3358 = vmatprep.subr.mxu0 0.0
    %3359 = vmatpush1.msra.mxu0 0.0
    %3360 = vmatprep.subr.mxu0 0.0
    %3361 = vmatpush1.msra.mxu0 0.0
    %3362 = vmatprep.subr.mxu0 0.0
    %3363 = vmatpush1.msra.mxu0 0.0
    %3364 = vmatprep.subr.mxu0 0.0
    %3365 = vmatpush1.msra.mxu0 0.0
    %3366 = vmatprep.subr.mxu0 0.0
    %3367 = vmatpush1.msra.mxu0 0.0
    %3368 = vmatprep.mubr.f32.mxu0 0.0
    %v3369 = vand.u32 %v2797, 4294901760
    %3370 = vmatmul.mubr.f32.gmra.mrb[0].mxu0 %v3369
    %v3371 = vpop.f32.mrb[0].mxu0
    %v3372 = vadd.f32 %v3249, %v3371
    %v3373 = vpop.f32.mrb[0].mxu0
    %v3374 = vadd.f32 %v3251, %v3373
    %3375 = vmatprep.mubr.f32.mxu0 0.0
    %v3376 = vand.u32 %v2800, 4294901760
    %3377 = vmatmul.mubr.f32.gmra.mrb[0].mxu0 %v3376
    %v3378 = vpop.f32.mrb[0].mxu0
    %v3379 = vadd.f32 %v3258, %v3378
    %v3380 = vpop.f32.mrb[0].mxu0
    %v3381 = vadd.f32 %v3260, %v3380
    %3382 = vmatprep.mubr.f32.mxu0 0.0
    %v3383 = vand.u32 %v2803, 4294901760
    %3384 = vmatmul.mubr.f32.gmra.mrb[0].mxu0 %v3383
    %v3385 = vpop.f32.mrb[0].mxu0
    %v3386 = vadd.f32 %v3267, %v3385
    %v3387 = vpop.f32.mrb[0].mxu0
    %v3388 = vadd.f32 %v3269, %v3387
    %3389 = vmatprep.mubr.f32.mxu0 0.0
    %v3390 = vand.u32 %v2806, 4294901760
    %3391 = vmatmul.mubr.f32.gmra.mrb[0].mxu0 %v3390
    %v3392 = vpop.f32.mrb[0].mxu0
    %v3393 = vadd.f32 %v3276, %v3392
    %v3394 = vpop.f32.mrb[0].mxu0
    %v3395 = vadd.f32 %v3278, %v3394
    %3396 = vdwg.mxu0
    %v3397 = vand.u32 %v2753, 4294901760
    %3398 = vmatprep.subr.mxu0 %v3397
    %v3399 = vand.u32 %v2752, 4294901760
    %3400 = vmatpush1.msra.mxu0 %v3399
    %v3401 = vand.u32 %v2757, 4294901760
    %3402 = vmatprep.subr.mxu0 %v3401
    %v3403 = vand.u32 %v2756, 4294901760
    %3404 = vmatpush1.msra.mxu0 %v3403
    %v3405 = vand.u32 %v2761, 4294901760
    %3406 = vmatprep.subr.mxu0 %v3405
    %v3407 = vand.u32 %v2760, 4294901760
    %3408 = vmatpush1.msra.mxu0 %v3407
    %v3409 = vand.u32 %v2765, 4294901760
    %3410 = vmatprep.subr.mxu0 %v3409
    %v3411 = vand.u32 %v2764, 4294901760
    %3412 = vmatpush1.msra.mxu0 %v3411
    %3413 = vmatprep.subr.mxu0 0.0
    %3414 = vmatpush1.msra.mxu0 0.0
    %3415 = vmatprep.subr.mxu0 0.0
    %3416 = vmatpush1.msra.mxu0 0.0
    %3417 = vmatprep.subr.mxu0 0.0
    %3418 = vmatpush1.msra.mxu0 0.0
    %3419 = vmatprep.subr.mxu0 0.0
    %3420 = vmatpush1.msra.mxu0 0.0
    %3421 = vmatprep.subr.mxu0 0.0
    %3422 = vmatpush1.msra.mxu0 0.0
    %3423 = vmatprep.subr.mxu0 0.0
    %3424 = vmatpush1.msra.mxu0 0.0
    %3425 = vmatprep.subr.mxu0 0.0
    %3426 = vmatpush1.msra.mxu0 0.0
    %3427 = vmatprep.subr.mxu0 0.0
    %3428 = vmatpush1.msra.mxu0 0.0
    %3429 = vmatprep.subr.mxu0 0.0
    %3430 = vmatpush1.msra.mxu0 0.0
    %3431 = vmatprep.subr.mxu0 0.0
    %3432 = vmatpush1.msra.mxu0 0.0
    %3433 = vmatprep.subr.mxu0 0.0
    %3434 = vmatpush1.msra.mxu0 0.0
    %3435 = vmatprep.subr.mxu0 0.0
    %3436 = vmatpush1.msra.mxu0 0.0
    %3437 = vmatprep.subr.mxu0 0.0
    %3438 = vmatpush1.msra.mxu0 0.0
    %3439 = vmatprep.subr.mxu0 0.0
    %3440 = vmatpush1.msra.mxu0 0.0
    %3441 = vmatprep.subr.mxu0 0.0
    %3442 = vmatpush1.msra.mxu0 0.0
    %3443 = vmatprep.subr.mxu0 0.0
    %3444 = vmatpush1.msra.mxu0 0.0
    %3445 = vmatprep.subr.mxu0 0.0
    %3446 = vmatpush1.msra.mxu0 0.0
    %3447 = vmatprep.subr.mxu0 0.0
    %3448 = vmatpush1.msra.mxu0 0.0
    %3449 = vmatprep.subr.mxu0 0.0
    %3450 = vmatpush1.msra.mxu0 0.0
    %3451 = vmatprep.subr.mxu0 0.0
    %3452 = vmatpush1.msra.mxu0 0.0
    %3453 = vmatprep.subr.mxu0 0.0
    %3454 = vmatpush1.msra.mxu0 0.0
    %3455 = vmatprep.subr.mxu0 0.0
    %3456 = vmatpush1.msra.mxu0 0.0
    %3457 = vmatprep.subr.mxu0 0.0
    %3458 = vmatpush1.msra.mxu0 0.0
    %3459 = vmatprep.subr.mxu0 0.0
    %3460 = vmatpush1.msra.mxu0 0.0
    %3461 = vmatprep.subr.mxu0 0.0
    %3462 = vmatpush1.msra.mxu0 0.0
    %3463 = vmatprep.subr.mxu0 0.0
    %3464 = vmatpush1.msra.mxu0 0.0
    %3465 = vmatprep.subr.mxu0 0.0
    %3466 = vmatpush1.msra.mxu0 0.0
    %3467 = vmatprep.subr.mxu0 0.0
    %3468 = vmatpush1.msra.mxu0 0.0
    %3469 = vmatprep.mubr.f32.mxu0 0.0
    %v3470 = vand.u32 %v2797, 4294901760
    %3471 = vmatmul.mubr.f32.gmra.mrb[0].mxu0 %v3470
    %v3472 = vpop.f32.mrb[0].mxu0
    %v3473 = vadd.f32 %v3372, %v3472
    %v3474 = vpop.f32.mrb[0].mxu0
    %v3475 = vadd.f32 %v3374, %v3474
    %3476 = vmatprep.mubr.f32.mxu0 0.0
    %v3477 = vand.u32 %v2800, 4294901760
    %3478 = vmatmul.mubr.f32.gmra.mrb[0].mxu0 %v3477
    %v3479 = vpop.f32.mrb[0].mxu0
    %v3480 = vadd.f32 %v3379, %v3479
    %v3481 = vpop.f32.mrb[0].mxu0
    %v3482 = vadd.f32 %v3381, %v3481
    %3483 = vmatprep.mubr.f32.mxu0 0.0
    %v3484 = vand.u32 %v2803, 4294901760
    %3485 = vmatmul.mubr.f32.gmra.mrb[0].mxu0 %v3484
    %v3486 = vpop.f32.mrb[0].mxu0
    %v3487 = vadd.f32 %v3386, %v3486
    %v3488 = vpop.f32.mrb[0].mxu0
    %v3489 = vadd.f32 %v3388, %v3488
    %3490 = vmatprep.mubr.f32.mxu0 0.0
    %v3491 = vand.u32 %v2806, 4294901760
    %3492 = vmatmul.mubr.f32.gmra.mrb[0].mxu0 %v3491
    %v3493 = vpop.f32.mrb[0].mxu0
    %v3494 = vadd.f32 %v3393, %v3493
    %v3495 = vpop.f32.mrb[0].mxu0
    %v3496 = vadd.f32 %v3395, %v3495
    %3497 = vdwg.mxu0
    %v3498 = vand.u32 %v2755, 4294901760
    %3499 = vmatprep.subr.mxu0 %v3498
    %v3500 = vand.u32 %v2754, 4294901760
    %3501 = vmatpush1.msra.mxu0 %v3500
    %v3502 = vand.u32 %v2759, 4294901760
    %3503 = vmatprep.subr.mxu0 %v3502
    %v3504 = vand.u32 %v2758, 4294901760
    %3505 = vmatpush1.msra.mxu0 %v3504
    %v3506 = vand.u32 %v2763, 4294901760
    %3507 = vmatprep.subr.mxu0 %v3506
    %v3508 = vand.u32 %v2762, 4294901760
    %3509 = vmatpush1.msra.mxu0 %v3508
    %v3510 = vand.u32 %v2767, 4294901760
    %3511 = vmatprep.subr.mxu0 %v3510
    %v3512 = vand.u32 %v2766, 4294901760
    %3513 = vmatpush1.msra.mxu0 %v3512
    %3514 = vmatprep.subr.mxu0 0.0
    %3515 = vmatpush1.msra.mxu0 0.0
    %3516 = vmatprep.subr.mxu0 0.0
    %3517 = vmatpush1.msra.mxu0 0.0
    %3518 = vmatprep.subr.mxu0 0.0
    %3519 = vmatpush1.msra.mxu0 0.0
    %3520 = vmatprep.subr.mxu0 0.0
    %3521 = vmatpush1.msra.mxu0 0.0
    %3522 = vmatprep.subr.mxu0 0.0
    %3523 = vmatpush1.msra.mxu0 0.0
    %3524 = vmatprep.subr.mxu0 0.0
    %3525 = vmatpush1.msra.mxu0 0.0
    %3526 = vmatprep.subr.mxu0 0.0
    %3527 = vmatpush1.msra.mxu0 0.0
    %3528 = vmatprep.subr.mxu0 0.0
    %3529 = vmatpush1.msra.mxu0 0.0
    %3530 = vmatprep.subr.mxu0 0.0
    %3531 = vmatpush1.msra.mxu0 0.0
    %3532 = vmatprep.subr.mxu0 0.0
    %3533 = vmatpush1.msra.mxu0 0.0
    %3534 = vmatprep.subr.mxu0 0.0
    %3535 = vmatpush1.msra.mxu0 0.0
    %3536 = vmatprep.subr.mxu0 0.0
    %3537 = vmatpush1.msra.mxu0 0.0
    %3538 = vmatprep.subr.mxu0 0.0
    %3539 = vmatpush1.msra.mxu0 0.0
    %3540 = vmatprep.subr.mxu0 0.0
    %3541 = vmatpush1.msra.mxu0 0.0
    %3542 = vmatprep.subr.mxu0 0.0
    %3543 = vmatpush1.msra.mxu0 0.0
    %3544 = vmatprep.subr.mxu0 0.0
    %3545 = vmatpush1.msra.mxu0 0.0
    %3546 = vmatprep.subr.mxu0 0.0
    %3547 = vmatpush1.msra.mxu0 0.0
    %3548 = vmatprep.subr.mxu0 0.0
    %3549 = vmatpush1.msra.mxu0 0.0
    %3550 = vmatprep.subr.mxu0 0.0
    %3551 = vmatpush1.msra.mxu0 0.0
    %3552 = vmatprep.subr.mxu0 0.0
    %3553 = vmatpush1.msra.mxu0 0.0
    %3554 = vmatprep.subr.mxu0 0.0
    %3555 = vmatpush1.msra.mxu0 0.0
    %3556 = vmatprep.subr.mxu0 0.0
    %3557 = vmatpush1.msra.mxu0 0.0
    %3558 = vmatprep.subr.mxu0 0.0
    %3559 = vmatpush1.msra.mxu0 0.0
    %3560 = vmatprep.subr.mxu0 0.0
    %3561 = vmatpush1.msra.mxu0 0.0
    %3562 = vmatprep.subr.mxu0 0.0
    %3563 = vmatpush1.msra.mxu0 0.0
    %3564 = vmatprep.subr.mxu0 0.0
    %3565 = vmatpush1.msra.mxu0 0.0
    %3566 = vmatprep.subr.mxu0 0.0
    %3567 = vmatpush1.msra.mxu0 0.0
    %3568 = vmatprep.subr.mxu0 0.0
    %3569 = vmatpush1.msra.mxu0 0.0
    %3570 = vmatprep.mubr.f32.mxu0 0.0
    %v3571 = vand.u32 %v2797, 4294901760
    %v3572 = vsub.f32 %v2797, %v3571
    %v3573 = vand.u32 %v3572, 4294901760
    %v3574 = vsub.f32 %v3572, %v3573
    %v3575 = vand.u32 %v3574, 4294901760
    %3576 = vmatmul.mubr.f32.gmra.mrb[0].mxu0 %v3575
    %v3577 = vpop.f32.mrb[0].mxu0
    %v3578 = vadd.f32 %v2779, %v3577
    %v3579 = vpop.f32.mrb[0].mxu0
    %v3580 = vadd.f32 %v2779, %v3579
    %3581 = vmatprep.mubr.f32.mxu0 0.0
    %v3582 = vand.u32 %v2800, 4294901760
    %v3583 = vsub.f32 %v2800, %v3582
    %v3584 = vand.u32 %v3583, 4294901760
    %v3585 = vsub.f32 %v3583, %v3584
    %v3586 = vand.u32 %v3585, 4294901760
    %3587 = vmatmul.mubr.f32.gmra.mrb[0].mxu0 %v3586
    %v3588 = vpop.f32.mrb[0].mxu0
    %v3589 = vadd.f32 %v2784, %v3588
    %v3590 = vpop.f32.mrb[0].mxu0
    %v3591 = vadd.f32 %v2784, %v3590
    %3592 = vmatprep.mubr.f32.mxu0 0.0
    %v3593 = vand.u32 %v2803, 4294901760
    %v3594 = vsub.f32 %v2803, %v3593
    %v3595 = vand.u32 %v3594, 4294901760
    %v3596 = vsub.f32 %v3594, %v3595
    %v3597 = vand.u32 %v3596, 4294901760
    %3598 = vmatmul.mubr.f32.gmra.mrb[0].mxu0 %v3597
    %v3599 = vpop.f32.mrb[0].mxu0
    %v3600 = vadd.f32 %v2789, %v3599
    %v3601 = vpop.f32.mrb[0].mxu0
    %v3602 = vadd.f32 %v2789, %v3601
    %3603 = vmatprep.mubr.f32.mxu0 0.0
    %v3604 = vand.u32 %v2806, 4294901760
    %v3605 = vsub.f32 %v2806, %v3604
    %v3606 = vand.u32 %v3605, 4294901760
    %v3607 = vsub.f32 %v3605, %v3606
    %v3608 = vand.u32 %v3607, 4294901760
    %3609 = vmatmul.mubr.f32.gmra.mrb[0].mxu0 %v3608
    %v3610 = vpop.f32.mrb[0].mxu0
    %v3611 = vadd.f32 %v2794, %v3610
    %v3612 = vpop.f32.mrb[0].mxu0
    %v3613 = vadd.f32 %v2794, %v3612
    %3614 = vdwg.mxu0
    %v3615 = vand.u32 %v2755, 4294901760
    %v3616 = vsub.f32 %v2755, %v3615
    %v3617 = vand.u32 %v3616, 4294901760
    %v3618 = vsub.f32 %v3616, %v3617
    %v3619 = vand.u32 %v3618, 4294901760
    %3620 = vmatprep.subr.mxu0 %v3619
    %v3621 = vand.u32 %v2754, 4294901760
    %v3622 = vsub.f32 %v2754, %v3621
    %v3623 = vand.u32 %v3622, 4294901760
    %v3624 = vsub.f32 %v3622, %v3623
    %v3625 = vand.u32 %v3624, 4294901760
    %3626 = vmatpush1.msra.mxu0 %v3625
    %v3627 = vand.u32 %v2759, 4294901760
    %v3628 = vsub.f32 %v2759, %v3627
    %v3629 = vand.u32 %v3628, 4294901760
    %v3630 = vsub.f32 %v3628, %v3629
    %v3631 = vand.u32 %v3630, 4294901760
    %3632 = vmatprep.subr.mxu0 %v3631
    %v3633 = vand.u32 %v2758, 4294901760
    %v3634 = vsub.f32 %v2758, %v3633
    %v3635 = vand.u32 %v3634, 4294901760
    %v3636 = vsub.f32 %v3634, %v3635
    %v3637 = vand.u32 %v3636, 4294901760
    %3638 = vmatpush1.msra.mxu0 %v3637
    %v3639 = vand.u32 %v2763, 4294901760
    %v3640 = vsub.f32 %v2763, %v3639
    %v3641 = vand.u32 %v3640, 4294901760
    %v3642 = vsub.f32 %v3640, %v3641
    %v3643 = vand.u32 %v3642, 4294901760
    %3644 = vmatprep.subr.mxu0 %v3643
    %v3645 = vand.u32 %v2762, 4294901760
    %v3646 = vsub.f32 %v2762, %v3645
    %v3647 = vand.u32 %v3646, 4294901760
    %v3648 = vsub.f32 %v3646, %v3647
    %v3649 = vand.u32 %v3648, 4294901760
    %3650 = vmatpush1.msra.mxu0 %v3649
    %v3651 = vand.u32 %v2767, 4294901760
    %v3652 = vsub.f32 %v2767, %v3651
    %v3653 = vand.u32 %v3652, 4294901760
    %v3654 = vsub.f32 %v3652, %v3653
    %v3655 = vand.u32 %v3654, 4294901760
    %3656 = vmatprep.subr.mxu0 %v3655
    %v3657 = vand.u32 %v2766, 4294901760
    %v3658 = vsub.f32 %v2766, %v3657
    %v3659 = vand.u32 %v3658, 4294901760
    %v3660 = vsub.f32 %v3658, %v3659
    %v3661 = vand.u32 %v3660, 4294901760
    %3662 = vmatpush1.msra.mxu0 %v3661
    %3663 = vmatprep.subr.mxu0 0.0
    %3664 = vmatpush1.msra.mxu0 0.0
    %3665 = vmatprep.subr.mxu0 0.0
    %3666 = vmatpush1.msra.mxu0 0.0
    %3667 = vmatprep.subr.mxu0 0.0
    %3668 = vmatpush1.msra.mxu0 0.0
    %3669 = vmatprep.subr.mxu0 0.0
    %3670 = vmatpush1.msra.mxu0 0.0
    %3671 = vmatprep.subr.mxu0 0.0
    %3672 = vmatpush1.msra.mxu0 0.0
    %3673 = vmatprep.subr.mxu0 0.0
    %3674 = vmatpush1.msra.mxu0 0.0
    %3675 = vmatprep.subr.mxu0 0.0
    %3676 = vmatpush1.msra.mxu0 0.0
    %3677 = vmatprep.subr.mxu0 0.0
    %3678 = vmatpush1.msra.mxu0 0.0
    %3679 = vmatprep.subr.mxu0 0.0
    %3680 = vmatpush1.msra.mxu0 0.0
    %3681 = vmatprep.subr.mxu0 0.0
    %3682 = vmatpush1.msra.mxu0 0.0
    %3683 = vmatprep.subr.mxu0 0.0
    %3684 = vmatpush1.msra.mxu0 0.0
    %3685 = vmatprep.subr.mxu0 0.0
    %3686 = vmatpush1.msra.mxu0 0.0
    %3687 = vmatprep.subr.mxu0 0.0
    %3688 = vmatpush1.msra.mxu0 0.0
    %3689 = vmatprep.subr.mxu0 0.0
    %3690 = vmatpush1.msra.mxu0 0.0
    %3691 = vmatprep.subr.mxu0 0.0
    %3692 = vmatpush1.msra.mxu0 0.0
    %3693 = vmatprep.subr.mxu0 0.0
    %3694 = vmatpush1.msra.mxu0 0.0
    %3695 = vmatprep.subr.mxu0 0.0
    %3696 = vmatpush1.msra.mxu0 0.0
    %3697 = vmatprep.subr.mxu0 0.0
    %3698 = vmatpush1.msra.mxu0 0.0
    %3699 = vmatprep.subr.mxu0 0.0
    %3700 = vmatpush1.msra.mxu0 0.0
    %3701 = vmatprep.subr.mxu0 0.0
    %3702 = vmatpush1.msra.mxu0 0.0
    %3703 = vmatprep.subr.mxu0 0.0
    %3704 = vmatpush1.msra.mxu0 0.0
    %3705 = vmatprep.subr.mxu0 0.0
    %3706 = vmatpush1.msra.mxu0 0.0
    %3707 = vmatprep.subr.mxu0 0.0
    %3708 = vmatpush1.msra.mxu0 0.0
    %3709 = vmatprep.subr.mxu0 0.0
    %3710 = vmatpush1.msra.mxu0 0.0
    %3711 = vmatprep.subr.mxu0 0.0
    %3712 = vmatpush1.msra.mxu0 0.0
    %3713 = vmatprep.subr.mxu0 0.0
    %3714 = vmatpush1.msra.mxu0 0.0
    %3715 = vmatprep.subr.mxu0 0.0
    %3716 = vmatpush1.msra.mxu0 0.0
    %3717 = vmatprep.subr.mxu0 0.0
    %3718 = vmatpush1.msra.mxu0 0.0
    %3719 = vmatprep.mubr.f32.mxu0 0.0
    %v3720 = vand.u32 %v2797, 4294901760
    %3721 = vmatmul.mubr.f32.gmra.mrb[0].mxu0 %v3720
    %v3722 = vpop.f32.mrb[0].mxu0
    %v3723 = vadd.f32 %v3578, %v3722
    %v3724 = vpop.f32.mrb[0].mxu0
    %v3725 = vadd.f32 %v3580, %v3724
    %3726 = vmatprep.mubr.f32.mxu0 0.0
    %v3727 = vand.u32 %v2800, 4294901760
    %3728 = vmatmul.mubr.f32.gmra.mrb[0].mxu0 %v3727
    %v3729 = vpop.f32.mrb[0].mxu0
    %v3730 = vadd.f32 %v3589, %v3729
    %v3731 = vpop.f32.mrb[0].mxu0
    %v3732 = vadd.f32 %v3591, %v3731
    %3733 = vmatprep.mubr.f32.mxu0 0.0
    %v3734 = vand.u32 %v2803, 4294901760
    %3735 = vmatmul.mubr.f32.gmra.mrb[0].mxu0 %v3734
    %v3736 = vpop.f32.mrb[0].mxu0
    %v3737 = vadd.f32 %v3600, %v3736
    %v3738 = vpop.f32.mrb[0].mxu0
    %v3739 = vadd.f32 %v3602, %v3738
    %3740 = vmatprep.mubr.f32.mxu0 0.0
    %v3741 = vand.u32 %v2806, 4294901760
    %3742 = vmatmul.mubr.f32.gmra.mrb[0].mxu0 %v3741
    %v3743 = vpop.f32.mrb[0].mxu0
    %v3744 = vadd.f32 %v3611, %v3743
    %v3745 = vpop.f32.mrb[0].mxu0
    %v3746 = vadd.f32 %v3613, %v3745
    %3747 = vdwg.mxu0
    %v3748 = vand.u32 %v2755, 4294901760
    %v3749 = vsub.f32 %v2755, %v3748
    %3750 = vmatprep.subr.mxu0 %v3749
    %v3751 = vand.u32 %v2754, 4294901760
    %v3752 = vsub.f32 %v2754, %v3751
    %3753 = vmatpush1.msra.mxu0 %v3752
    %v3754 = vand.u32 %v2759, 4294901760
    %v3755 = vsub.f32 %v2759, %v3754
    %3756 = vmatprep.subr.mxu0 %v3755
    %v3757 = vand.u32 %v2758, 4294901760
    %v3758 = vsub.f32 %v2758, %v3757
    %3759 = vmatpush1.msra.mxu0 %v3758
    %v3760 = vand.u32 %v2763, 4294901760
    %v3761 = vsub.f32 %v2763, %v3760
    %3762 = vmatprep.subr.mxu0 %v3761
    %v3763 = vand.u32 %v2762, 4294901760
    %v3764 = vsub.f32 %v2762, %v3763
    %3765 = vmatpush1.msra.mxu0 %v3764
    %v3766 = vand.u32 %v2767, 4294901760
    %v3767 = vsub.f32 %v2767, %v3766
    %3768 = vmatprep.subr.mxu0 %v3767
    %v3769 = vand.u32 %v2766, 4294901760
    %v3770 = vsub.f32 %v2766, %v3769
    %3771 = vmatpush1.msra.mxu0 %v3770
    %3772 = vmatprep.subr.mxu0 0.0
    %3773 = vmatpush1.msra.mxu0 0.0
    %3774 = vmatprep.subr.mxu0 0.0
    %3775 = vmatpush1.msra.mxu0 0.0
    %3776 = vmatprep.subr.mxu0 0.0
    %3777 = vmatpush1.msra.mxu0 0.0
    %3778 = vmatprep.subr.mxu0 0.0
    %3779 = vmatpush1.msra.mxu0 0.0
    %3780 = vmatprep.subr.mxu0 0.0
    %3781 = vmatpush1.msra.mxu0 0.0
    %3782 = vmatprep.subr.mxu0 0.0
    %3783 = vmatpush1.msra.mxu0 0.0
    %3784 = vmatprep.subr.mxu0 0.0
    %3785 = vmatpush1.msra.mxu0 0.0
    %3786 = vmatprep.subr.mxu0 0.0
    %3787 = vmatpush1.msra.mxu0 0.0
    %3788 = vmatprep.subr.mxu0 0.0
    %3789 = vmatpush1.msra.mxu0 0.0
    %3790 = vmatprep.subr.mxu0 0.0
    %3791 = vmatpush1.msra.mxu0 0.0
    %3792 = vmatprep.subr.mxu0 0.0
    %3793 = vmatpush1.msra.mxu0 0.0
    %3794 = vmatprep.subr.mxu0 0.0
    %3795 = vmatpush1.msra.mxu0 0.0
    %3796 = vmatprep.subr.mxu0 0.0
    %3797 = vmatpush1.msra.mxu0 0.0
    %3798 = vmatprep.subr.mxu0 0.0
    %3799 = vmatpush1.msra.mxu0 0.0
    %3800 = vmatprep.subr.mxu0 0.0
    %3801 = vmatpush1.msra.mxu0 0.0
    %3802 = vmatprep.subr.mxu0 0.0
    %3803 = vmatpush1.msra.mxu0 0.0
    %3804 = vmatprep.subr.mxu0 0.0
    %3805 = vmatpush1.msra.mxu0 0.0
    %3806 = vmatprep.subr.mxu0 0.0
    %3807 = vmatpush1.msra.mxu0 0.0
    %3808 = vmatprep.subr.mxu0 0.0
    %3809 = vmatpush1.msra.mxu0 0.0
    %3810 = vmatprep.subr.mxu0 0.0
    %3811 = vmatpush1.msra.mxu0 0.0
    %3812 = vmatprep.subr.mxu0 0.0
    %3813 = vmatpush1.msra.mxu0 0.0
    %3814 = vmatprep.subr.mxu0 0.0
    %3815 = vmatpush1.msra.mxu0 0.0
    %3816 = vmatprep.subr.mxu0 0.0
    %3817 = vmatpush1.msra.mxu0 0.0
    %3818 = vmatprep.subr.mxu0 0.0
    %3819 = vmatpush1.msra.mxu0 0.0
    %3820 = vmatprep.subr.mxu0 0.0
    %3821 = vmatpush1.msra.mxu0 0.0
    %3822 = vmatprep.subr.mxu0 0.0
    %3823 = vmatpush1.msra.mxu0 0.0
    %3824 = vmatprep.subr.mxu0 0.0
    %3825 = vmatpush1.msra.mxu0 0.0
    %3826 = vmatprep.subr.mxu0 0.0
    %3827 = vmatpush1.msra.mxu0 0.0
    %3828 = vmatprep.mubr.f32.mxu0 0.0
    %v3829 = vand.u32 %v2797, 4294901760
    %v3830 = vsub.f32 %v2797, %v3829
    %3831 = vmatmul.mubr.f32.gmra.mrb[0].mxu0 %v3830
    %v3832 = vpop.f32.mrb[0].mxu0
    %v3833 = vadd.f32 %v3723, %v3832
    %v3834 = vpop.f32.mrb[0].mxu0
    %v3835 = vadd.f32 %v3725, %v3834
    %3836 = vmatprep.mubr.f32.mxu0 0.0
    %v3837 = vand.u32 %v2800, 4294901760
    %v3838 = vsub.f32 %v2800, %v3837
    %3839 = vmatmul.mubr.f32.gmra.mrb[0].mxu0 %v3838
    %v3840 = vpop.f32.mrb[0].mxu0
    %v3841 = vadd.f32 %v3730, %v3840
    %v3842 = vpop.f32.mrb[0].mxu0
    %v3843 = vadd.f32 %v3732, %v3842
    %3844 = vmatprep.mubr.f32.mxu0 0.0
    %v3845 = vand.u32 %v2803, 4294901760
    %v3846 = vsub.f32 %v2803, %v3845
    %3847 = vmatmul.mubr.f32.gmra.mrb[0].mxu0 %v3846
    %v3848 = vpop.f32.mrb[0].mxu0
    %v3849 = vadd.f32 %v3737, %v3848
    %v3850 = vpop.f32.mrb[0].mxu0
    %v3851 = vadd.f32 %v3739, %v3850
    %3852 = vmatprep.mubr.f32.mxu0 0.0
    %v3853 = vand.u32 %v2806, 4294901760
    %v3854 = vsub.f32 %v2806, %v3853
    %3855 = vmatmul.mubr.f32.gmra.mrb[0].mxu0 %v3854
    %v3856 = vpop.f32.mrb[0].mxu0
    %v3857 = vadd.f32 %v3744, %v3856
    %v3858 = vpop.f32.mrb[0].mxu0
    %v3859 = vadd.f32 %v3746, %v3858
    %3860 = vdwg.mxu0
    %v3861 = vand.u32 %v2755, 4294901760
    %3862 = vmatprep.subr.mxu0 %v3861
    %v3863 = vand.u32 %v2754, 4294901760
    %3864 = vmatpush1.msra.mxu0 %v3863
    %v3865 = vand.u32 %v2759, 4294901760
    %3866 = vmatprep.subr.mxu0 %v3865
    %v3867 = vand.u32 %v2758, 4294901760
    %3868 = vmatpush1.msra.mxu0 %v3867
    %v3869 = vand.u32 %v2763, 4294901760
    %3870 = vmatprep.subr.mxu0 %v3869
    %v3871 = vand.u32 %v2762, 4294901760
    %3872 = vmatpush1.msra.mxu0 %v3871
    %v3873 = vand.u32 %v2767, 4294901760
    %3874 = vmatprep.subr.mxu0 %v3873
    %v3875 = vand.u32 %v2766, 4294901760
    %3876 = vmatpush1.msra.mxu0 %v3875
    %3877 = vmatprep.subr.mxu0 0.0
    %3878 = vmatpush1.msra.mxu0 0.0
    %3879 = vmatprep.subr.mxu0 0.0
    %3880 = vmatpush1.msra.mxu0 0.0
    %3881 = vmatprep.subr.mxu0 0.0
    %3882 = vmatpush1.msra.mxu0 0.0
    %3883 = vmatprep.subr.mxu0 0.0
    %3884 = vmatpush1.msra.mxu0 0.0
    %3885 = vmatprep.subr.mxu0 0.0
    %3886 = vmatpush1.msra.mxu0 0.0
    %3887 = vmatprep.subr.mxu0 0.0
    %3888 = vmatpush1.msra.mxu0 0.0
    %3889 = vmatprep.subr.mxu0 0.0
    %3890 = vmatpush1.msra.mxu0 0.0
    %3891 = vmatprep.subr.mxu0 0.0
    %3892 = vmatpush1.msra.mxu0 0.0
    %3893 = vmatprep.subr.mxu0 0.0
    %3894 = vmatpush1.msra.mxu0 0.0
    %3895 = vmatprep.subr.mxu0 0.0
    %3896 = vmatpush1.msra.mxu0 0.0
    %3897 = vmatprep.subr.mxu0 0.0
    %3898 = vmatpush1.msra.mxu0 0.0
    %3899 = vmatprep.subr.mxu0 0.0
    %3900 = vmatpush1.msra.mxu0 0.0
    %3901 = vmatprep.subr.mxu0 0.0
    %3902 = vmatpush1.msra.mxu0 0.0
    %3903 = vmatprep.subr.mxu0 0.0
    %3904 = vmatpush1.msra.mxu0 0.0
    %3905 = vmatprep.subr.mxu0 0.0
    %3906 = vmatpush1.msra.mxu0 0.0
    %3907 = vmatprep.subr.mxu0 0.0
    %3908 = vmatpush1.msra.mxu0 0.0
    %3909 = vmatprep.subr.mxu0 0.0
    %3910 = vmatpush1.msra.mxu0 0.0
    %3911 = vmatprep.subr.mxu0 0.0
    %3912 = vmatpush1.msra.mxu0 0.0
    %3913 = vmatprep.subr.mxu0 0.0
    %3914 = vmatpush1.msra.mxu0 0.0
    %3915 = vmatprep.subr.mxu0 0.0
    %3916 = vmatpush1.msra.mxu0 0.0
    %3917 = vmatprep.subr.mxu0 0.0
    %3918 = vmatpush1.msra.mxu0 0.0
    %3919 = vmatprep.subr.mxu0 0.0
    %3920 = vmatpush1.msra.mxu0 0.0
    %3921 = vmatprep.subr.mxu0 0.0
    %3922 = vmatpush1.msra.mxu0 0.0
    %3923 = vmatprep.subr.mxu0 0.0
    %3924 = vmatpush1.msra.mxu0 0.0
    %3925 = vmatprep.subr.mxu0 0.0
    %3926 = vmatpush1.msra.mxu0 0.0
    %3927 = vmatprep.subr.mxu0 0.0
    %3928 = vmatpush1.msra.mxu0 0.0
    %3929 = vmatprep.subr.mxu0 0.0
    %3930 = vmatpush1.msra.mxu0 0.0
    %3931 = vmatprep.subr.mxu0 0.0
    %3932 = vmatpush1.msra.mxu0 0.0
    %3933 = vmatprep.mubr.f32.mxu0 0.0
    %v3934 = vand.u32 %v2797, 4294901760
    %v3935 = vsub.f32 %v2797, %v3934
    %v3936 = vand.u32 %v3935, 4294901760
    %3937 = vmatmul.mubr.f32.gmra.mrb[0].mxu0 %v3936
    %v3938 = vpop.f32.mrb[0].mxu0
    %v3939 = vadd.f32 %v3833, %v3938
    %v3940 = vpop.f32.mrb[0].mxu0
    %v3941 = vadd.f32 %v3835, %v3940
    %3942 = vmatprep.mubr.f32.mxu0 0.0
    %v3943 = vand.u32 %v2800, 4294901760
    %v3944 = vsub.f32 %v2800, %v3943
    %v3945 = vand.u32 %v3944, 4294901760
    %3946 = vmatmul.mubr.f32.gmra.mrb[0].mxu0 %v3945
    %v3947 = vpop.f32.mrb[0].mxu0
    %v3948 = vadd.f32 %v3841, %v3947
    %v3949 = vpop.f32.mrb[0].mxu0
    %v3950 = vadd.f32 %v3843, %v3949
    %3951 = vmatprep.mubr.f32.mxu0 0.0
    %v3952 = vand.u32 %v2803, 4294901760
    %v3953 = vsub.f32 %v2803, %v3952
    %v3954 = vand.u32 %v3953, 4294901760
    %3955 = vmatmul.mubr.f32.gmra.mrb[0].mxu0 %v3954
    %v3956 = vpop.f32.mrb[0].mxu0
    %v3957 = vadd.f32 %v3849, %v3956
    %v3958 = vpop.f32.mrb[0].mxu0
    %v3959 = vadd.f32 %v3851, %v3958
    %3960 = vmatprep.mubr.f32.mxu0 0.0
    %v3961 = vand.u32 %v2806, 4294901760
    %v3962 = vsub.f32 %v2806, %v3961
    %v3963 = vand.u32 %v3962, 4294901760
    %3964 = vmatmul.mubr.f32.gmra.mrb[0].mxu0 %v3963
    %v3965 = vpop.f32.mrb[0].mxu0
    %v3966 = vadd.f32 %v3857, %v3965
    %v3967 = vpop.f32.mrb[0].mxu0
    %v3968 = vadd.f32 %v3859, %v3967
    %3969 = vdwg.mxu0
    %v3970 = vand.u32 %v2755, 4294901760
    %v3971 = vsub.f32 %v2755, %v3970
    %v3972 = vand.u32 %v3971, 4294901760
    %3973 = vmatprep.subr.mxu0 %v3972
    %v3974 = vand.u32 %v2754, 4294901760
    %v3975 = vsub.f32 %v2754, %v3974
    %v3976 = vand.u32 %v3975, 4294901760
    %3977 = vmatpush1.msra.mxu0 %v3976
    %v3978 = vand.u32 %v2759, 4294901760
    %v3979 = vsub.f32 %v2759, %v3978
    %v3980 = vand.u32 %v3979, 4294901760
    %3981 = vmatprep.subr.mxu0 %v3980
    %v3982 = vand.u32 %v2758, 4294901760
    %v3983 = vsub.f32 %v2758, %v3982
    %v3984 = vand.u32 %v3983, 4294901760
    %3985 = vmatpush1.msra.mxu0 %v3984
    %v3986 = vand.u32 %v2763, 4294901760
    %v3987 = vsub.f32 %v2763, %v3986
    %v3988 = vand.u32 %v3987, 4294901760
    %3989 = vmatprep.subr.mxu0 %v3988
    %v3990 = vand.u32 %v2762, 4294901760
    %v3991 = vsub.f32 %v2762, %v3990
    %v3992 = vand.u32 %v3991, 4294901760
    %3993 = vmatpush1.msra.mxu0 %v3992
    %v3994 = vand.u32 %v2767, 4294901760
    %v3995 = vsub.f32 %v2767, %v3994
    %v3996 = vand.u32 %v3995, 4294901760
    %3997 = vmatprep.subr.mxu0 %v3996
    %v3998 = vand.u32 %v2766, 4294901760
    %v3999 = vsub.f32 %v2766, %v3998
    %v4000 = vand.u32 %v3999, 4294901760
    %4001 = vmatpush1.msra.mxu0 %v4000
    %4002 = vmatprep.subr.mxu0 0.0
    %4003 = vmatpush1.msra.mxu0 0.0
    %4004 = vmatprep.subr.mxu0 0.0
    %4005 = vmatpush1.msra.mxu0 0.0
    %4006 = vmatprep.subr.mxu0 0.0
    %4007 = vmatpush1.msra.mxu0 0.0
    %4008 = vmatprep.subr.mxu0 0.0
    %4009 = vmatpush1.msra.mxu0 0.0
    %4010 = vmatprep.subr.mxu0 0.0
    %4011 = vmatpush1.msra.mxu0 0.0
    %4012 = vmatprep.subr.mxu0 0.0
    %4013 = vmatpush1.msra.mxu0 0.0
    %4014 = vmatprep.subr.mxu0 0.0
    %4015 = vmatpush1.msra.mxu0 0.0
    %4016 = vmatprep.subr.mxu0 0.0
    %4017 = vmatpush1.msra.mxu0 0.0
    %4018 = vmatprep.subr.mxu0 0.0
    %4019 = vmatpush1.msra.mxu0 0.0
    %4020 = vmatprep.subr.mxu0 0.0
    %4021 = vmatpush1.msra.mxu0 0.0
    %4022 = vmatprep.subr.mxu0 0.0
    %4023 = vmatpush1.msra.mxu0 0.0
    %4024 = vmatprep.subr.mxu0 0.0
    %4025 = vmatpush1.msra.mxu0 0.0
    %4026 = vmatprep.subr.mxu0 0.0
    %4027 = vmatpush1.msra.mxu0 0.0
    %4028 = vmatprep.subr.mxu0 0.0
    %4029 = vmatpush1.msra.mxu0 0.0
    %4030 = vmatprep.subr.mxu0 0.0
    %4031 = vmatpush1.msra.mxu0 0.0
    %4032 = vmatprep.subr.mxu0 0.0
    %4033 = vmatpush1.msra.mxu0 0.0
    %4034 = vmatprep.subr.mxu0 0.0
    %4035 = vmatpush1.msra.mxu0 0.0
    %4036 = vmatprep.subr.mxu0 0.0
    %4037 = vmatpush1.msra.mxu0 0.0
    %4038 = vmatprep.subr.mxu0 0.0
    %4039 = vmatpush1.msra.mxu0 0.0
    %4040 = vmatprep.subr.mxu0 0.0
    %4041 = vmatpush1.msra.mxu0 0.0
    %4042 = vmatprep.subr.mxu0 0.0
    %4043 = vmatpush1.msra.mxu0 0.0
    %4044 = vmatprep.subr.mxu0 0.0
    %4045 = vmatpush1.msra.mxu0 0.0
    %4046 = vmatprep.subr.mxu0 0.0
    %4047 = vmatpush1.msra.mxu0 0.0
    %4048 = vmatprep.subr.mxu0 0.0
    %4049 = vmatpush1.msra.mxu0 0.0
    %4050 = vmatprep.subr.mxu0 0.0
    %4051 = vmatpush1.msra.mxu0 0.0
    %4052 = vmatprep.subr.mxu0 0.0
    %4053 = vmatpush1.msra.mxu0 0.0
    %4054 = vmatprep.subr.mxu0 0.0
    %4055 = vmatpush1.msra.mxu0 0.0
    %4056 = vmatprep.subr.mxu0 0.0
    %4057 = vmatpush1.msra.mxu0 0.0
    %4058 = vmatprep.mubr.f32.mxu0 0.0
    %v4059 = vand.u32 %v2797, 4294901760
    %4060 = vmatmul.mubr.f32.gmra.mrb[0].mxu0 %v4059
    %v4061 = vpop.f32.mrb[0].mxu0
    %v4062 = vadd.f32 %v3939, %v4061
    %v4063 = vpop.f32.mrb[0].mxu0
    %v4064 = vadd.f32 %v3941, %v4063
    %4065 = vmatprep.mubr.f32.mxu0 0.0
    %v4066 = vand.u32 %v2800, 4294901760
    %4067 = vmatmul.mubr.f32.gmra.mrb[0].mxu0 %v4066
    %v4068 = vpop.f32.mrb[0].mxu0
    %v4069 = vadd.f32 %v3948, %v4068
    %v4070 = vpop.f32.mrb[0].mxu0
    %v4071 = vadd.f32 %v3950, %v4070
    %4072 = vmatprep.mubr.f32.mxu0 0.0
    %v4073 = vand.u32 %v2803, 4294901760
    %4074 = vmatmul.mubr.f32.gmra.mrb[0].mxu0 %v4073
    %v4075 = vpop.f32.mrb[0].mxu0
    %v4076 = vadd.f32 %v3957, %v4075
    %v4077 = vpop.f32.mrb[0].mxu0
    %v4078 = vadd.f32 %v3959, %v4077
    %4079 = vmatprep.mubr.f32.mxu0 0.0
    %v4080 = vand.u32 %v2806, 4294901760
    %4081 = vmatmul.mubr.f32.gmra.mrb[0].mxu0 %v4080
    %v4082 = vpop.f32.mrb[0].mxu0
    %v4083 = vadd.f32 %v3966, %v4082
    %v4084 = vpop.f32.mrb[0].mxu0
    %v4085 = vadd.f32 %v3968, %v4084
    %4086 = vdwg.mxu0
    %v4087 = vand.u32 %v2755, 4294901760
    %4088 = vmatprep.subr.mxu0 %v4087
    %v4089 = vand.u32 %v2754, 4294901760
    %4090 = vmatpush1.msra.mxu0 %v4089
    %v4091 = vand.u32 %v2759, 4294901760
    %4092 = vmatprep.subr.mxu0 %v4091
    %v4093 = vand.u32 %v2758, 4294901760
    %4094 = vmatpush1.msra.mxu0 %v4093
    %v4095 = vand.u32 %v2763, 4294901760
    %4096 = vmatprep.subr.mxu0 %v4095
    %v4097 = vand.u32 %v2762, 4294901760
    %4098 = vmatpush1.msra.mxu0 %v4097
    %v4099 = vand.u32 %v2767, 4294901760
    %4100 = vmatprep.subr.mxu0 %v4099
    %v4101 = vand.u32 %v2766, 4294901760
    %4102 = vmatpush1.msra.mxu0 %v4101
    %4103 = vmatprep.subr.mxu0 0.0
    %4104 = vmatpush1.msra.mxu0 0.0
    %4105 = vmatprep.subr.mxu0 0.0
    %4106 = vmatpush1.msra.mxu0 0.0
    %4107 = vmatprep.subr.mxu0 0.0
    %4108 = vmatpush1.msra.mxu0 0.0
    %4109 = vmatprep.subr.mxu0 0.0
    %4110 = vmatpush1.msra.mxu0 0.0
    %4111 = vmatprep.subr.mxu0 0.0
    %4112 = vmatpush1.msra.mxu0 0.0
    %4113 = vmatprep.subr.mxu0 0.0
    %4114 = vmatpush1.msra.mxu0 0.0
    %4115 = vmatprep.subr.mxu0 0.0
    %4116 = vmatpush1.msra.mxu0 0.0
    %4117 = vmatprep.subr.mxu0 0.0
    %4118 = vmatpush1.msra.mxu0 0.0
    %4119 = vmatprep.subr.mxu0 0.0
    %4120 = vmatpush1.msra.mxu0 0.0
    %4121 = vmatprep.subr.mxu0 0.0
    %4122 = vmatpush1.msra.mxu0 0.0
    %4123 = vmatprep.subr.mxu0 0.0
    %4124 = vmatpush1.msra.mxu0 0.0
    %4125 = vmatprep.subr.mxu0 0.0
    %4126 = vmatpush1.msra.mxu0 0.0
    %4127 = vmatprep.subr.mxu0 0.0
    %4128 = vmatpush1.msra.mxu0 0.0
    %4129 = vmatprep.subr.mxu0 0.0
    %4130 = vmatpush1.msra.mxu0 0.0
    %4131 = vmatprep.subr.mxu0 0.0
    %4132 = vmatpush1.msra.mxu0 0.0
    %4133 = vmatprep.subr.mxu0 0.0
    %4134 = vmatpush1.msra.mxu0 0.0
    %4135 = vmatprep.subr.mxu0 0.0
    %4136 = vmatpush1.msra.mxu0 0.0
    %4137 = vmatprep.subr.mxu0 0.0
    %4138 = vmatpush1.msra.mxu0 0.0
    %4139 = vmatprep.subr.mxu0 0.0
    %4140 = vmatpush1.msra.mxu0 0.0
    %4141 = vmatprep.subr.mxu0 0.0
    %4142 = vmatpush1.msra.mxu0 0.0
    %4143 = vmatprep.subr.mxu0 0.0
    %4144 = vmatpush1.msra.mxu0 0.0
    %4145 = vmatprep.subr.mxu0 0.0
    %4146 = vmatpush1.msra.mxu0 0.0
    %4147 = vmatprep.subr.mxu0 0.0
    %4148 = vmatpush1.msra.mxu0 0.0
    %4149 = vmatprep.subr.mxu0 0.0
    %4150 = vmatpush1.msra.mxu0 0.0
    %4151 = vmatprep.subr.mxu0 0.0
    %4152 = vmatpush1.msra.mxu0 0.0
    %4153 = vmatprep.subr.mxu0 0.0
    %4154 = vmatpush1.msra.mxu0 0.0
    %4155 = vmatprep.subr.mxu0 0.0
    %4156 = vmatpush1.msra.mxu0 0.0
    %4157 = vmatprep.subr.mxu0 0.0
    %4158 = vmatpush1.msra.mxu0 0.0
    %4159 = vmatprep.mubr.f32.mxu0 0.0
    %v4160 = vand.u32 %v2797, 4294901760
    %4161 = vmatmul.mubr.f32.gmra.mrb[0].mxu0 %v4160
    %v4162 = vpop.f32.mrb[0].mxu0
    %v4163 = vadd.f32 %v4062, %v4162
    %v4164 = vpop.f32.mrb[0].mxu0
    %v4165 = vadd.f32 %v4064, %v4164
    %4166 = vmatprep.mubr.f32.mxu0 0.0
    %v4167 = vand.u32 %v2800, 4294901760
    %4168 = vmatmul.mubr.f32.gmra.mrb[0].mxu0 %v4167
    %v4169 = vpop.f32.mrb[0].mxu0
    %v4170 = vadd.f32 %v4069, %v4169
    %v4171 = vpop.f32.mrb[0].mxu0
    %v4172 = vadd.f32 %v4071, %v4171
    %4173 = vmatprep.mubr.f32.mxu0 0.0
    %v4174 = vand.u32 %v2803, 4294901760
    %4175 = vmatmul.mubr.f32.gmra.mrb[0].mxu0 %v4174
    %v4176 = vpop.f32.mrb[0].mxu0
    %v4177 = vadd.f32 %v4076, %v4176
    %v4178 = vpop.f32.mrb[0].mxu0
    %v4179 = vadd.f32 %v4078, %v4178
    %4180 = vmatprep.mubr.f32.mxu0 0.0
    %v4181 = vand.u32 %v2806, 4294901760
    %4182 = vmatmul.mubr.f32.gmra.mrb[0].mxu0 %v4181
    %v4183 = vpop.f32.mrb[0].mxu0
    %v4184 = vadd.f32 %v4083, %v4183
    %v4185 = vpop.f32.mrb[0].mxu0
    %v4186 = vadd.f32 %v4085, %v4185
    %4187 = vdwg.mxu0
    %v4188 = vtanh.pop %v3473
    %v4189 = vtanh.pop %v3475
    %v4190 = vtanh.pop %v4163
    %v4191 = vtanh.pop %v4165
    %v4192 = vtanh.pop %v3480
    %v4193 = vtanh.pop %v3482
    %v4194 = vtanh.pop %v4170
    %v4195 = vtanh.pop %v4172
    %v4196 = vtanh.pop %v3487
    %v4197 = vtanh.pop %v3489
    %v4198 = vtanh.pop %v4177
    %v4199 = vtanh.pop %v4179
    %v4200 = vtanh.pop %v3494
    %v4201 = vtanh.pop %v3496
    %v4202 = vtanh.pop %v4184
    %v4203 = vtanh.pop %v4186
    %v4204 = vld [vmem:[%s7] sm:$0x1]
    %v4205 = vld [vmem:[#allocation2] sm:$0x1]
    %4207 = vset.pattern.permute.xlu0 0
    %4208 = vperm.xlu0 %4207, %v4205
    %v4209 = vpop.permute.xlu0 %4208
    %v4211 = vlaneseq
    %v4212 = vshrl.u32 %v4211, 7
    %v4213 = vsub.s32 0, %v4212
    %v4214 = vrot.slane %v4209, %v4213
    %v4216 = vsel %vm1359, %v4204, 0
    %v4218 = vand.u32 %v4189, 4294901760
    %4219 = vmatprep.subr.mxu0 %v4218
    %v4220 = vand.u32 %v4188, 4294901760
    %4221 = vmatpush1.msra.mxu0 %v4220
    %v4222 = vand.u32 %v4193, 4294901760
    %4223 = vmatprep.subr.mxu0 %v4222
    %v4224 = vand.u32 %v4192, 4294901760
    %4225 = vmatpush1.msra.mxu0 %v4224
    %v4226 = vand.u32 %v4197, 4294901760
    %4227 = vmatprep.subr.mxu0 %v4226
    %v4228 = vand.u32 %v4196, 4294901760
    %4229 = vmatpush1.msra.mxu0 %v4228
    %v4230 = vand.u32 %v4201, 4294901760
    %4231 = vmatprep.subr.mxu0 %v4230
    %v4232 = vand.u32 %v4200, 4294901760
    %4233 = vmatpush1.msra.mxu0 %v4232
    %4234 = vmatprep.subr.mxu0 0.0
    %4235 = vmatpush1.msra.mxu0 0.0
    %4236 = vmatprep.subr.mxu0 0.0
    %4237 = vmatpush1.msra.mxu0 0.0
    %4238 = vmatprep.subr.mxu0 0.0
    %4239 = vmatpush1.msra.mxu0 0.0
    %4240 = vmatprep.subr.mxu0 0.0
    %4241 = vmatpush1.msra.mxu0 0.0
    %4242 = vmatprep.subr.mxu0 0.0
    %4243 = vmatpush1.msra.mxu0 0.0
    %4244 = vmatprep.subr.mxu0 0.0
    %4245 = vmatpush1.msra.mxu0 0.0
    %4246 = vmatprep.subr.mxu0 0.0
    %4247 = vmatpush1.msra.mxu0 0.0
    %4248 = vmatprep.subr.mxu0 0.0
    %4249 = vmatpush1.msra.mxu0 0.0
    %4250 = vmatprep.subr.mxu0 0.0
    %4251 = vmatpush1.msra.mxu0 0.0
    %4252 = vmatprep.subr.mxu0 0.0
    %4253 = vmatpush1.msra.mxu0 0.0
    %4254 = vmatprep.subr.mxu0 0.0
    %4255 = vmatpush1.msra.mxu0 0.0
    %4256 = vmatprep.subr.mxu0 0.0
    %4257 = vmatpush1.msra.mxu0 0.0
    %4258 = vmatprep.subr.mxu0 0.0
    %4259 = vmatpush1.msra.mxu0 0.0
    %4260 = vmatprep.subr.mxu0 0.0
    %4261 = vmatpush1.msra.mxu0 0.0
    %4262 = vmatprep.subr.mxu0 0.0
    %4263 = vmatpush1.msra.mxu0 0.0
    %4264 = vmatprep.subr.mxu0 0.0
    %4265 = vmatpush1.msra.mxu0 0.0
    %4266 = vmatprep.subr.mxu0 0.0
    %4267 = vmatpush1.msra.mxu0 0.0
    %4268 = vmatprep.subr.mxu0 0.0
    %4269 = vmatpush1.msra.mxu0 0.0
    %4270 = vmatprep.subr.mxu0 0.0
    %4271 = vmatpush1.msra.mxu0 0.0
    %4272 = vmatprep.subr.mxu0 0.0
    %4273 = vmatpush1.msra.mxu0 0.0
    %4274 = vmatprep.subr.mxu0 0.0
    %4275 = vmatpush1.msra.mxu0 0.0
    %4276 = vmatprep.subr.mxu0 0.0
    %4277 = vmatpush1.msra.mxu0 0.0
    %4278 = vmatprep.subr.mxu0 0.0
    %4279 = vmatpush1.msra.mxu0 0.0
    %4280 = vmatprep.subr.mxu0 0.0
    %4281 = vmatpush1.msra.mxu0 0.0
    %4282 = vmatprep.subr.mxu0 0.0
    %4283 = vmatpush1.msra.mxu0 0.0
    %4284 = vmatprep.subr.mxu0 0.0
    %4285 = vmatpush1.msra.mxu0 0.0
    %4286 = vmatprep.subr.mxu0 0.0
    %4287 = vmatpush1.msra.mxu0 0.0
    %4288 = vmatprep.subr.mxu0 0.0
    %4289 = vmatpush1.msra.mxu0 0.0
    %4290 = vmatprep.mubr.f32.mxu0 0.0
    %v4291 = vand.u32 %v4216, 4294901760
    %v4292 = vsub.f32 %v4216, %v4291
    %v4293 = vand.u32 %v4292, 4294901760
    %v4294 = vsub.f32 %v4292, %v4293
    %v4295 = vand.u32 %v4294, 4294901760
    %4296 = vmatmul.mubr.f32.gmra.mrb[0].mxu0 %v4295
    %v4297 = vpop.f32.mrb[0].mxu0
    %v4298 = vadd.f32 %v4214, %v4297
    %v4299 = vpop.f32.mrb[0].mxu0
    %v4300 = vadd.f32 %v4214, %v4299
    %4301 = vdwg.mxu0
    %v4302 = vand.u32 %v4189, 4294901760
    %v4303 = vsub.f32 %v4189, %v4302
    %v4304 = vand.u32 %v4303, 4294901760
    %v4305 = vsub.f32 %v4303, %v4304
    %v4306 = vand.u32 %v4305, 4294901760
    %4307 = vmatprep.subr.mxu0 %v4306
    %v4308 = vand.u32 %v4188, 4294901760
    %v4309 = vsub.f32 %v4188, %v4308
    %v4310 = vand.u32 %v4309, 4294901760
    %v4311 = vsub.f32 %v4309, %v4310
    %v4312 = vand.u32 %v4311, 4294901760
    %4313 = vmatpush1.msra.mxu0 %v4312
    %v4314 = vand.u32 %v4193, 4294901760
    %v4315 = vsub.f32 %v4193, %v4314
    %v4316 = vand.u32 %v4315, 4294901760
    %v4317 = vsub.f32 %v4315, %v4316
    %v4318 = vand.u32 %v4317, 4294901760
    %4319 = vmatprep.subr.mxu0 %v4318
    %v4320 = vand.u32 %v4192, 4294901760
    %v4321 = vsub.f32 %v4192, %v4320
    %v4322 = vand.u32 %v4321, 4294901760
    %v4323 = vsub.f32 %v4321, %v4322
    %v4324 = vand.u32 %v4323, 4294901760
    %4325 = vmatpush1.msra.mxu0 %v4324
    %v4326 = vand.u32 %v4197, 4294901760
    %v4327 = vsub.f32 %v4197, %v4326
    %v4328 = vand.u32 %v4327, 4294901760
    %v4329 = vsub.f32 %v4327, %v4328
    %v4330 = vand.u32 %v4329, 4294901760
    %4331 = vmatprep.subr.mxu0 %v4330
    %v4332 = vand.u32 %v4196, 4294901760
    %v4333 = vsub.f32 %v4196, %v4332
    %v4334 = vand.u32 %v4333, 4294901760
    %v4335 = vsub.f32 %v4333, %v4334
    %v4336 = vand.u32 %v4335, 4294901760
    %4337 = vmatpush1.msra.mxu0 %v4336
    %v4338 = vand.u32 %v4201, 4294901760
    %v4339 = vsub.f32 %v4201, %v4338
    %v4340 = vand.u32 %v4339, 4294901760
    %v4341 = vsub.f32 %v4339, %v4340
    %v4342 = vand.u32 %v4341, 4294901760
    %4343 = vmatprep.subr.mxu0 %v4342
    %v4344 = vand.u32 %v4200, 4294901760
    %v4345 = vsub.f32 %v4200, %v4344
    %v4346 = vand.u32 %v4345, 4294901760
    %v4347 = vsub.f32 %v4345, %v4346
    %v4348 = vand.u32 %v4347, 4294901760
    %4349 = vmatpush1.msra.mxu0 %v4348
    %4350 = vmatprep.subr.mxu0 0.0
    %4351 = vmatpush1.msra.mxu0 0.0
    %4352 = vmatprep.subr.mxu0 0.0
    %4353 = vmatpush1.msra.mxu0 0.0
    %4354 = vmatprep.subr.mxu0 0.0
    %4355 = vmatpush1.msra.mxu0 0.0
    %4356 = vmatprep.subr.mxu0 0.0
    %4357 = vmatpush1.msra.mxu0 0.0
    %4358 = vmatprep.subr.mxu0 0.0
    %4359 = vmatpush1.msra.mxu0 0.0
    %4360 = vmatprep.subr.mxu0 0.0
    %4361 = vmatpush1.msra.mxu0 0.0
    %4362 = vmatprep.subr.mxu0 0.0
    %4363 = vmatpush1.msra.mxu0 0.0
    %4364 = vmatprep.subr.mxu0 0.0
    %4365 = vmatpush1.msra.mxu0 0.0
    %4366 = vmatprep.subr.mxu0 0.0
    %4367 = vmatpush1.msra.mxu0 0.0
    %4368 = vmatprep.subr.mxu0 0.0
    %4369 = vmatpush1.msra.mxu0 0.0
    %4370 = vmatprep.subr.mxu0 0.0
    %4371 = vmatpush1.msra.mxu0 0.0
    %4372 = vmatprep.subr.mxu0 0.0
    %4373 = vmatpush1.msra.mxu0 0.0
    %4374 = vmatprep.subr.mxu0 0.0
    %4375 = vmatpush1.msra.mxu0 0.0
    %4376 = vmatprep.subr.mxu0 0.0
    %4377 = vmatpush1.msra.mxu0 0.0
    %4378 = vmatprep.subr.mxu0 0.0
    %4379 = vmatpush1.msra.mxu0 0.0
    %4380 = vmatprep.subr.mxu0 0.0
    %4381 = vmatpush1.msra.mxu0 0.0
    %4382 = vmatprep.subr.mxu0 0.0
    %4383 = vmatpush1.msra.mxu0 0.0
    %4384 = vmatprep.subr.mxu0 0.0
    %4385 = vmatpush1.msra.mxu0 0.0
    %4386 = vmatprep.subr.mxu0 0.0
    %4387 = vmatpush1.msra.mxu0 0.0
    %4388 = vmatprep.subr.mxu0 0.0
    %4389 = vmatpush1.msra.mxu0 0.0
    %4390 = vmatprep.subr.mxu0 0.0
    %4391 = vmatpush1.msra.mxu0 0.0
    %4392 = vmatprep.subr.mxu0 0.0
    %4393 = vmatpush1.msra.mxu0 0.0
    %4394 = vmatprep.subr.mxu0 0.0
    %4395 = vmatpush1.msra.mxu0 0.0
    %4396 = vmatprep.subr.mxu0 0.0
    %4397 = vmatpush1.msra.mxu0 0.0
    %4398 = vmatprep.subr.mxu0 0.0
    %4399 = vmatpush1.msra.mxu0 0.0
    %4400 = vmatprep.subr.mxu0 0.0
    %4401 = vmatpush1.msra.mxu0 0.0
    %4402 = vmatprep.subr.mxu0 0.0
    %4403 = vmatpush1.msra.mxu0 0.0
    %4404 = vmatprep.subr.mxu0 0.0
    %4405 = vmatpush1.msra.mxu0 0.0
    %4406 = vmatprep.mubr.f32.mxu0 0.0
    %v4407 = vand.u32 %v4216, 4294901760
    %4408 = vmatmul.mubr.f32.gmra.mrb[0].mxu0 %v4407
    %v4409 = vpop.f32.mrb[0].mxu0
    %v4410 = vadd.f32 %v4298, %v4409
    %v4411 = vpop.f32.mrb[0].mxu0
    %v4412 = vadd.f32 %v4300, %v4411
    %4413 = vdwg.mxu0
    %v4414 = vand.u32 %v4189, 4294901760
    %v4415 = vsub.f32 %v4189, %v4414
    %4416 = vmatprep.subr.mxu0 %v4415
    %v4417 = vand.u32 %v4188, 4294901760
    %v4418 = vsub.f32 %v4188, %v4417
    %4419 = vmatpush1.msra.mxu0 %v4418
    %v4420 = vand.u32 %v4193, 4294901760
    %v4421 = vsub.f32 %v4193, %v4420
    %4422 = vmatprep.subr.mxu0 %v4421
    %v4423 = vand.u32 %v4192, 4294901760
    %v4424 = vsub.f32 %v4192, %v4423
    %4425 = vmatpush1.msra.mxu0 %v4424
    %v4426 = vand.u32 %v4197, 4294901760
    %v4427 = vsub.f32 %v4197, %v4426
    %4428 = vmatprep.subr.mxu0 %v4427
    %v4429 = vand.u32 %v4196, 4294901760
    %v4430 = vsub.f32 %v4196, %v4429
    %4431 = vmatpush1.msra.mxu0 %v4430
    %v4432 = vand.u32 %v4201, 4294901760
    %v4433 = vsub.f32 %v4201, %v4432
    %4434 = vmatprep.subr.mxu0 %v4433
    %v4435 = vand.u32 %v4200, 4294901760
    %v4436 = vsub.f32 %v4200, %v4435
    %4437 = vmatpush1.msra.mxu0 %v4436
    %4438 = vmatprep.subr.mxu0 0.0
    %4439 = vmatpush1.msra.mxu0 0.0
    %4440 = vmatprep.subr.mxu0 0.0
    %4441 = vmatpush1.msra.mxu0 0.0
    %4442 = vmatprep.subr.mxu0 0.0
    %4443 = vmatpush1.msra.mxu0 0.0
    %4444 = vmatprep.subr.mxu0 0.0
    %4445 = vmatpush1.msra.mxu0 0.0
    %4446 = vmatprep.subr.mxu0 0.0
    %4447 = vmatpush1.msra.mxu0 0.0
    %4448 = vmatprep.subr.mxu0 0.0
    %4449 = vmatpush1.msra.mxu0 0.0
    %4450 = vmatprep.subr.mxu0 0.0
    %4451 = vmatpush1.msra.mxu0 0.0
    %4452 = vmatprep.subr.mxu0 0.0
    %4453 = vmatpush1.msra.mxu0 0.0
    %4454 = vmatprep.subr.mxu0 0.0
    %4455 = vmatpush1.msra.mxu0 0.0
    %4456 = vmatprep.subr.mxu0 0.0
    %4457 = vmatpush1.msra.mxu0 0.0
    %4458 = vmatprep.subr.mxu0 0.0
    %4459 = vmatpush1.msra.mxu0 0.0
    %4460 = vmatprep.subr.mxu0 0.0
    %4461 = vmatpush1.msra.mxu0 0.0
    %4462 = vmatprep.subr.mxu0 0.0
    %4463 = vmatpush1.msra.mxu0 0.0
    %4464 = vmatprep.subr.mxu0 0.0
    %4465 = vmatpush1.msra.mxu0 0.0
    %4466 = vmatprep.subr.mxu0 0.0
    %4467 = vmatpush1.msra.mxu0 0.0
    %4468 = vmatprep.subr.mxu0 0.0
    %4469 = vmatpush1.msra.mxu0 0.0
    %4470 = vmatprep.subr.mxu0 0.0
    %4471 = vmatpush1.msra.mxu0 0.0
    %4472 = vmatprep.subr.mxu0 0.0
    %4473 = vmatpush1.msra.mxu0 0.0
    %4474 = vmatprep.subr.mxu0 0.0
    %4475 = vmatpush1.msra.mxu0 0.0
    %4476 = vmatprep.subr.mxu0 0.0
    %4477 = vmatpush1.msra.mxu0 0.0
    %4478 = vmatprep.subr.mxu0 0.0
    %4479 = vmatpush1.msra.mxu0 0.0
    %4480 = vmatprep.subr.mxu0 0.0
    %4481 = vmatpush1.msra.mxu0 0.0
    %4482 = vmatprep.subr.mxu0 0.0
    %4483 = vmatpush1.msra.mxu0 0.0
    %4484 = vmatprep.subr.mxu0 0.0
    %4485 = vmatpush1.msra.mxu0 0.0
    %4486 = vmatprep.subr.mxu0 0.0
    %4487 = vmatpush1.msra.mxu0 0.0
    %4488 = vmatprep.subr.mxu0 0.0
    %4489 = vmatpush1.msra.mxu0 0.0
    %4490 = vmatprep.subr.mxu0 0.0
    %4491 = vmatpush1.msra.mxu0 0.0
    %4492 = vmatprep.subr.mxu0 0.0
    %4493 = vmatpush1.msra.mxu0 0.0
    %4494 = vmatprep.mubr.f32.mxu0 0.0
    %v4495 = vand.u32 %v4216, 4294901760
    %v4496 = vsub.f32 %v4216, %v4495
    %4497 = vmatmul.mubr.f32.gmra.mrb[0].mxu0 %v4496
    %v4498 = vpop.f32.mrb[0].mxu0
    %v4499 = vadd.f32 %v4410, %v4498
    %v4500 = vpop.f32.mrb[0].mxu0
    %v4501 = vadd.f32 %v4412, %v4500
    %4502 = vdwg.mxu0
    %v4503 = vand.u32 %v4189, 4294901760
    %4504 = vmatprep.subr.mxu0 %v4503
    %v4505 = vand.u32 %v4188, 4294901760
    %4506 = vmatpush1.msra.mxu0 %v4505
    %v4507 = vand.u32 %v4193, 4294901760
    %4508 = vmatprep.subr.mxu0 %v4507
    %v4509 = vand.u32 %v4192, 4294901760
    %4510 = vmatpush1.msra.mxu0 %v4509
    %v4511 = vand.u32 %v4197, 4294901760
    %4512 = vmatprep.subr.mxu0 %v4511
    %v4513 = vand.u32 %v4196, 4294901760
    %4514 = vmatpush1.msra.mxu0 %v4513
    %v4515 = vand.u32 %v4201, 4294901760
    %4516 = vmatprep.subr.mxu0 %v4515
    %v4517 = vand.u32 %v4200, 4294901760
    %4518 = vmatpush1.msra.mxu0 %v4517
    %4519 = vmatprep.subr.mxu0 0.0
    %4520 = vmatpush1.msra.mxu0 0.0
    %4521 = vmatprep.subr.mxu0 0.0
    %4522 = vmatpush1.msra.mxu0 0.0
    %4523 = vmatprep.subr.mxu0 0.0
    %4524 = vmatpush1.msra.mxu0 0.0
    %4525 = vmatprep.subr.mxu0 0.0
    %4526 = vmatpush1.msra.mxu0 0.0
    %4527 = vmatprep.subr.mxu0 0.0
    %4528 = vmatpush1.msra.mxu0 0.0
    %4529 = vmatprep.subr.mxu0 0.0
    %4530 = vmatpush1.msra.mxu0 0.0
    %4531 = vmatprep.subr.mxu0 0.0
    %4532 = vmatpush1.msra.mxu0 0.0
    %4533 = vmatprep.subr.mxu0 0.0
    %4534 = vmatpush1.msra.mxu0 0.0
    %4535 = vmatprep.subr.mxu0 0.0
    %4536 = vmatpush1.msra.mxu0 0.0
    %4537 = vmatprep.subr.mxu0 0.0
    %4538 = vmatpush1.msra.mxu0 0.0
    %4539 = vmatprep.subr.mxu0 0.0
    %4540 = vmatpush1.msra.mxu0 0.0
    %4541 = vmatprep.subr.mxu0 0.0
    %4542 = vmatpush1.msra.mxu0 0.0
    %4543 = vmatprep.subr.mxu0 0.0
    %4544 = vmatpush1.msra.mxu0 0.0
    %4545 = vmatprep.subr.mxu0 0.0
    %4546 = vmatpush1.msra.mxu0 0.0
    %4547 = vmatprep.subr.mxu0 0.0
    %4548 = vmatpush1.msra.mxu0 0.0
    %4549 = vmatprep.subr.mxu0 0.0
    %4550 = vmatpush1.msra.mxu0 0.0
    %4551 = vmatprep.subr.mxu0 0.0
    %4552 = vmatpush1.msra.mxu0 0.0
    %4553 = vmatprep.subr.mxu0 0.0
    %4554 = vmatpush1.msra.mxu0 0.0
    %4555 = vmatprep.subr.mxu0 0.0
    %4556 = vmatpush1.msra.mxu0 0.0
    %4557 = vmatprep.subr.mxu0 0.0
    %4558 = vmatpush1.msra.mxu0 0.0
    %4559 = vmatprep.subr.mxu0 0.0
    %4560 = vmatpush1.msra.mxu0 0.0
    %4561 = vmatprep.subr.mxu0 0.0
    %4562 = vmatpush1.msra.mxu0 0.0
    %4563 = vmatprep.subr.mxu0 0.0
    %4564 = vmatpush1.msra.mxu0 0.0
    %4565 = vmatprep.subr.mxu0 0.0
    %4566 = vmatpush1.msra.mxu0 0.0
    %4567 = vmatprep.subr.mxu0 0.0
    %4568 = vmatpush1.msra.mxu0 0.0
    %4569 = vmatprep.subr.mxu0 0.0
    %4570 = vmatpush1.msra.mxu0 0.0
    %4571 = vmatprep.subr.mxu0 0.0
    %4572 = vmatpush1.msra.mxu0 0.0
    %4573 = vmatprep.subr.mxu0 0.0
    %4574 = vmatpush1.msra.mxu0 0.0
    %4575 = vmatprep.mubr.f32.mxu0 0.0
    %v4576 = vand.u32 %v4216, 4294901760
    %v4577 = vsub.f32 %v4216, %v4576
    %v4578 = vand.u32 %v4577, 4294901760
    %4579 = vmatmul.mubr.f32.gmra.mrb[0].mxu0 %v4578
    %v4580 = vpop.f32.mrb[0].mxu0
    %v4581 = vadd.f32 %v4499, %v4580
    %v4582 = vpop.f32.mrb[0].mxu0
    %v4583 = vadd.f32 %v4501, %v4582
    %4584 = vdwg.mxu0
    %v4585 = vand.u32 %v4189, 4294901760
    %v4586 = vsub.f32 %v4189, %v4585
    %v4587 = vand.u32 %v4586, 4294901760
    %4588 = vmatprep.subr.mxu0 %v4587
    %v4589 = vand.u32 %v4188, 4294901760
    %v4590 = vsub.f32 %v4188, %v4589
    %v4591 = vand.u32 %v4590, 4294901760
    %4592 = vmatpush1.msra.mxu0 %v4591
    %v4593 = vand.u32 %v4193, 4294901760
    %v4594 = vsub.f32 %v4193, %v4593
    %v4595 = vand.u32 %v4594, 4294901760
    %4596 = vmatprep.subr.mxu0 %v4595
    %v4597 = vand.u32 %v4192, 4294901760
    %v4598 = vsub.f32 %v4192, %v4597
    %v4599 = vand.u32 %v4598, 4294901760
    %4600 = vmatpush1.msra.mxu0 %v4599
    %v4601 = vand.u32 %v4197, 4294901760
    %v4602 = vsub.f32 %v4197, %v4601
    %v4603 = vand.u32 %v4602, 4294901760
    %4604 = vmatprep.subr.mxu0 %v4603
    %v4605 = vand.u32 %v4196, 4294901760
    %v4606 = vsub.f32 %v4196, %v4605
    %v4607 = vand.u32 %v4606, 4294901760
    %4608 = vmatpush1.msra.mxu0 %v4607
    %v4609 = vand.u32 %v4201, 4294901760
    %v4610 = vsub.f32 %v4201, %v4609
    %v4611 = vand.u32 %v4610, 4294901760
    %4612 = vmatprep.subr.mxu0 %v4611
    %v4613 = vand.u32 %v4200, 4294901760
    %v4614 = vsub.f32 %v4200, %v4613
    %v4615 = vand.u32 %v4614, 4294901760
    %4616 = vmatpush1.msra.mxu0 %v4615
    %4617 = vmatprep.subr.mxu0 0.0
    %4618 = vmatpush1.msra.mxu0 0.0
    %4619 = vmatprep.subr.mxu0 0.0
    %4620 = vmatpush1.msra.mxu0 0.0
    %4621 = vmatprep.subr.mxu0 0.0
    %4622 = vmatpush1.msra.mxu0 0.0
    %4623 = vmatprep.subr.mxu0 0.0
    %4624 = vmatpush1.msra.mxu0 0.0
    %4625 = vmatprep.subr.mxu0 0.0
    %4626 = vmatpush1.msra.mxu0 0.0
    %4627 = vmatprep.subr.mxu0 0.0
    %4628 = vmatpush1.msra.mxu0 0.0
    %4629 = vmatprep.subr.mxu0 0.0
    %4630 = vmatpush1.msra.mxu0 0.0
    %4631 = vmatprep.subr.mxu0 0.0
    %4632 = vmatpush1.msra.mxu0 0.0
    %4633 = vmatprep.subr.mxu0 0.0
    %4634 = vmatpush1.msra.mxu0 0.0
    %4635 = vmatprep.subr.mxu0 0.0
    %4636 = vmatpush1.msra.mxu0 0.0
    %4637 = vmatprep.subr.mxu0 0.0
    %4638 = vmatpush1.msra.mxu0 0.0
    %4639 = vmatprep.subr.mxu0 0.0
    %4640 = vmatpush1.msra.mxu0 0.0
    %4641 = vmatprep.subr.mxu0 0.0
    %4642 = vmatpush1.msra.mxu0 0.0
    %4643 = vmatprep.subr.mxu0 0.0
    %4644 = vmatpush1.msra.mxu0 0.0
    %4645 = vmatprep.subr.mxu0 0.0
    %4646 = vmatpush1.msra.mxu0 0.0
    %4647 = vmatprep.subr.mxu0 0.0
    %4648 = vmatpush1.msra.mxu0 0.0
    %4649 = vmatprep.subr.mxu0 0.0
    %4650 = vmatpush1.msra.mxu0 0.0
    %4651 = vmatprep.subr.mxu0 0.0
    %4652 = vmatpush1.msra.mxu0 0.0
    %4653 = vmatprep.subr.mxu0 0.0
    %4654 = vmatpush1.msra.mxu0 0.0
    %4655 = vmatprep.subr.mxu0 0.0
    %4656 = vmatpush1.msra.mxu0 0.0
    %4657 = vmatprep.subr.mxu0 0.0
    %4658 = vmatpush1.msra.mxu0 0.0
    %4659 = vmatprep.subr.mxu0 0.0
    %4660 = vmatpush1.msra.mxu0 0.0
    %4661 = vmatprep.subr.mxu0 0.0
    %4662 = vmatpush1.msra.mxu0 0.0
    %4663 = vmatprep.subr.mxu0 0.0
    %4664 = vmatpush1.msra.mxu0 0.0
    %4665 = vmatprep.subr.mxu0 0.0
    %4666 = vmatpush1.msra.mxu0 0.0
    %4667 = vmatprep.subr.mxu0 0.0
    %4668 = vmatpush1.msra.mxu0 0.0
    %4669 = vmatprep.subr.mxu0 0.0
    %4670 = vmatpush1.msra.mxu0 0.0
    %4671 = vmatprep.subr.mxu0 0.0
    %4672 = vmatpush1.msra.mxu0 0.0
    %4673 = vmatprep.mubr.f32.mxu0 0.0
    %v4674 = vand.u32 %v4216, 4294901760
    %4675 = vmatmul.mubr.f32.gmra.mrb[0].mxu0 %v4674
    %v4676 = vpop.f32.mrb[0].mxu0
    %v4677 = vadd.f32 %v4581, %v4676
    %v4678 = vpop.f32.mrb[0].mxu0
    %v4679 = vadd.f32 %v4583, %v4678
    %4680 = vdwg.mxu0
    %v4681 = vand.u32 %v4189, 4294901760
    %4682 = vmatprep.subr.mxu0 %v4681
    %v4683 = vand.u32 %v4188, 4294901760
    %4684 = vmatpush1.msra.mxu0 %v4683
    %v4685 = vand.u32 %v4193, 4294901760
    %4686 = vmatprep.subr.mxu0 %v4685
    %v4687 = vand.u32 %v4192, 4294901760
    %4688 = vmatpush1.msra.mxu0 %v4687
    %v4689 = vand.u32 %v4197, 4294901760
    %4690 = vmatprep.subr.mxu0 %v4689
    %v4691 = vand.u32 %v4196, 4294901760
    %4692 = vmatpush1.msra.mxu0 %v4691
    %v4693 = vand.u32 %v4201, 4294901760
    %4694 = vmatprep.subr.mxu0 %v4693
    %v4695 = vand.u32 %v4200, 4294901760
    %4696 = vmatpush1.msra.mxu0 %v4695
    %4697 = vmatprep.subr.mxu0 0.0
    %4698 = vmatpush1.msra.mxu0 0.0
    %4699 = vmatprep.subr.mxu0 0.0
    %4700 = vmatpush1.msra.mxu0 0.0
    %4701 = vmatprep.subr.mxu0 0.0
    %4702 = vmatpush1.msra.mxu0 0.0
    %4703 = vmatprep.subr.mxu0 0.0
    %4704 = vmatpush1.msra.mxu0 0.0
    %4705 = vmatprep.subr.mxu0 0.0
    %4706 = vmatpush1.msra.mxu0 0.0
    %4707 = vmatprep.subr.mxu0 0.0
    %4708 = vmatpush1.msra.mxu0 0.0
    %4709 = vmatprep.subr.mxu0 0.0
    %4710 = vmatpush1.msra.mxu0 0.0
    %4711 = vmatprep.subr.mxu0 0.0
    %4712 = vmatpush1.msra.mxu0 0.0
    %4713 = vmatprep.subr.mxu0 0.0
    %4714 = vmatpush1.msra.mxu0 0.0
    %4715 = vmatprep.subr.mxu0 0.0
    %4716 = vmatpush1.msra.mxu0 0.0
    %4717 = vmatprep.subr.mxu0 0.0
    %4718 = vmatpush1.msra.mxu0 0.0
    %4719 = vmatprep.subr.mxu0 0.0
    %4720 = vmatpush1.msra.mxu0 0.0
    %4721 = vmatprep.subr.mxu0 0.0
    %4722 = vmatpush1.msra.mxu0 0.0
    %4723 = vmatprep.subr.mxu0 0.0
    %4724 = vmatpush1.msra.mxu0 0.0
    %4725 = vmatprep.subr.mxu0 0.0
    %4726 = vmatpush1.msra.mxu0 0.0
    %4727 = vmatprep.subr.mxu0 0.0
    %4728 = vmatpush1.msra.mxu0 0.0
    %4729 = vmatprep.subr.mxu0 0.0
    %4730 = vmatpush1.msra.mxu0 0.0
    %4731 = vmatprep.subr.mxu0 0.0
    %4732 = vmatpush1.msra.mxu0 0.0
    %4733 = vmatprep.subr.mxu0 0.0
    %4734 = vmatpush1.msra.mxu0 0.0
    %4735 = vmatprep.subr.mxu0 0.0
    %4736 = vmatpush1.msra.mxu0 0.0
    %4737 = vmatprep.subr.mxu0 0.0
    %4738 = vmatpush1.msra.mxu0 0.0
    %4739 = vmatprep.subr.mxu0 0.0
    %4740 = vmatpush1.msra.mxu0 0.0
    %4741 = vmatprep.subr.mxu0 0.0
    %4742 = vmatpush1.msra.mxu0 0.0
    %4743 = vmatprep.subr.mxu0 0.0
    %4744 = vmatpush1.msra.mxu0 0.0
    %4745 = vmatprep.subr.mxu0 0.0
    %4746 = vmatpush1.msra.mxu0 0.0
    %4747 = vmatprep.subr.mxu0 0.0
    %4748 = vmatpush1.msra.mxu0 0.0
    %4749 = vmatprep.subr.mxu0 0.0
    %4750 = vmatpush1.msra.mxu0 0.0
    %4751 = vmatprep.subr.mxu0 0.0
    %4752 = vmatpush1.msra.mxu0 0.0
    %4753 = vmatprep.mubr.f32.mxu0 0.0
    %v4754 = vand.u32 %v4216, 4294901760
    %4755 = vmatmul.mubr.f32.gmra.mrb[0].mxu0 %v4754
    %v4756 = vpop.f32.mrb[0].mxu0
    %v4757 = vadd.f32 %v4677, %v4756
    %v4758 = vpop.f32.mrb[0].mxu0
    %v4759 = vadd.f32 %v4679, %v4758
    %4760 = vdwg.mxu0
    %v4761 = vand.u32 %v4191, 4294901760
    %4762 = vmatprep.subr.mxu0 %v4761
    %v4763 = vand.u32 %v4190, 4294901760
    %4764 = vmatpush1.msra.mxu0 %v4763
    %v4765 = vand.u32 %v4195, 4294901760
    %4766 = vmatprep.subr.mxu0 %v4765
    %v4767 = vand.u32 %v4194, 4294901760
    %4768 = vmatpush1.msra.mxu0 %v4767
    %v4769 = vand.u32 %v4199, 4294901760
    %4770 = vmatprep.subr.mxu0 %v4769
    %v4771 = vand.u32 %v4198, 4294901760
    %4772 = vmatpush1.msra.mxu0 %v4771
    %v4773 = vand.u32 %v4203, 4294901760
    %4774 = vmatprep.subr.mxu0 %v4773
    %v4775 = vand.u32 %v4202, 4294901760
    %4776 = vmatpush1.msra.mxu0 %v4775
    %4777 = vmatprep.subr.mxu0 0.0
    %4778 = vmatpush1.msra.mxu0 0.0
    %4779 = vmatprep.subr.mxu0 0.0
    %4780 = vmatpush1.msra.mxu0 0.0
    %4781 = vmatprep.subr.mxu0 0.0
    %4782 = vmatpush1.msra.mxu0 0.0
    %4783 = vmatprep.subr.mxu0 0.0
    %4784 = vmatpush1.msra.mxu0 0.0
    %4785 = vmatprep.subr.mxu0 0.0
    %4786 = vmatpush1.msra.mxu0 0.0
    %4787 = vmatprep.subr.mxu0 0.0
    %4788 = vmatpush1.msra.mxu0 0.0
    %4789 = vmatprep.subr.mxu0 0.0
    %4790 = vmatpush1.msra.mxu0 0.0
    %4791 = vmatprep.subr.mxu0 0.0
    %4792 = vmatpush1.msra.mxu0 0.0
    %4793 = vmatprep.subr.mxu0 0.0
    %4794 = vmatpush1.msra.mxu0 0.0
    %4795 = vmatprep.subr.mxu0 0.0
    %4796 = vmatpush1.msra.mxu0 0.0
    %4797 = vmatprep.subr.mxu0 0.0
    %4798 = vmatpush1.msra.mxu0 0.0
    %4799 = vmatprep.subr.mxu0 0.0
    %4800 = vmatpush1.msra.mxu0 0.0
    %4801 = vmatprep.subr.mxu0 0.0
    %4802 = vmatpush1.msra.mxu0 0.0
    %4803 = vmatprep.subr.mxu0 0.0
    %4804 = vmatpush1.msra.mxu0 0.0
    %4805 = vmatprep.subr.mxu0 0.0
    %4806 = vmatpush1.msra.mxu0 0.0
    %4807 = vmatprep.subr.mxu0 0.0
    %4808 = vmatpush1.msra.mxu0 0.0
    %4809 = vmatprep.subr.mxu0 0.0
    %4810 = vmatpush1.msra.mxu0 0.0
    %4811 = vmatprep.subr.mxu0 0.0
    %4812 = vmatpush1.msra.mxu0 0.0
    %4813 = vmatprep.subr.mxu0 0.0
    %4814 = vmatpush1.msra.mxu0 0.0
    %4815 = vmatprep.subr.mxu0 0.0
    %4816 = vmatpush1.msra.mxu0 0.0
    %4817 = vmatprep.subr.mxu0 0.0
    %4818 = vmatpush1.msra.mxu0 0.0
    %4819 = vmatprep.subr.mxu0 0.0
    %4820 = vmatpush1.msra.mxu0 0.0
    %4821 = vmatprep.subr.mxu0 0.0
    %4822 = vmatpush1.msra.mxu0 0.0
    %4823 = vmatprep.subr.mxu0 0.0
    %4824 = vmatpush1.msra.mxu0 0.0
    %4825 = vmatprep.subr.mxu0 0.0
    %4826 = vmatpush1.msra.mxu0 0.0
    %4827 = vmatprep.subr.mxu0 0.0
    %4828 = vmatpush1.msra.mxu0 0.0
    %4829 = vmatprep.subr.mxu0 0.0
    %4830 = vmatpush1.msra.mxu0 0.0
    %4831 = vmatprep.subr.mxu0 0.0
    %4832 = vmatpush1.msra.mxu0 0.0
    %4833 = vmatprep.mubr.f32.mxu0 0.0
    %v4834 = vand.u32 %v4216, 4294901760
    %v4835 = vsub.f32 %v4216, %v4834
    %v4836 = vand.u32 %v4835, 4294901760
    %v4837 = vsub.f32 %v4835, %v4836
    %v4838 = vand.u32 %v4837, 4294901760
    %4839 = vmatmul.mubr.f32.gmra.mrb[0].mxu0 %v4838
    %v4840 = vpop.f32.mrb[0].mxu0
    %v4841 = vadd.f32 %v4214, %v4840
    %v4842 = vpop.f32.mrb[0].mxu0
    %v4843 = vadd.f32 %v4214, %v4842
    %4844 = vdwg.mxu0
    %v4845 = vand.u32 %v4191, 4294901760
    %v4846 = vsub.f32 %v4191, %v4845
    %v4847 = vand.u32 %v4846, 4294901760
    %v4848 = vsub.f32 %v4846, %v4847
    %v4849 = vand.u32 %v4848, 4294901760
    %4850 = vmatprep.subr.mxu0 %v4849
    %v4851 = vand.u32 %v4190, 4294901760
    %v4852 = vsub.f32 %v4190, %v4851
    %v4853 = vand.u32 %v4852, 4294901760
    %v4854 = vsub.f32 %v4852, %v4853
    %v4855 = vand.u32 %v4854, 4294901760
    %4856 = vmatpush1.msra.mxu0 %v4855
    %v4857 = vand.u32 %v4195, 4294901760
    %v4858 = vsub.f32 %v4195, %v4857
    %v4859 = vand.u32 %v4858, 4294901760
    %v4860 = vsub.f32 %v4858, %v4859
    %v4861 = vand.u32 %v4860, 4294901760
    %4862 = vmatprep.subr.mxu0 %v4861
    %v4863 = vand.u32 %v4194, 4294901760
    %v4864 = vsub.f32 %v4194, %v4863
    %v4865 = vand.u32 %v4864, 4294901760
    %v4866 = vsub.f32 %v4864, %v4865
    %v4867 = vand.u32 %v4866, 4294901760
    %4868 = vmatpush1.msra.mxu0 %v4867
    %v4869 = vand.u32 %v4199, 4294901760
    %v4870 = vsub.f32 %v4199, %v4869
    %v4871 = vand.u32 %v4870, 4294901760
    %v4872 = vsub.f32 %v4870, %v4871
    %v4873 = vand.u32 %v4872, 4294901760
    %4874 = vmatprep.subr.mxu0 %v4873
    %v4875 = vand.u32 %v4198, 4294901760
    %v4876 = vsub.f32 %v4198, %v4875
    %v4877 = vand.u32 %v4876, 4294901760
    %v4878 = vsub.f32 %v4876, %v4877
    %v4879 = vand.u32 %v4878, 4294901760
    %4880 = vmatpush1.msra.mxu0 %v4879
    %v4881 = vand.u32 %v4203, 4294901760
    %v4882 = vsub.f32 %v4203, %v4881
    %v4883 = vand.u32 %v4882, 4294901760
    %v4884 = vsub.f32 %v4882, %v4883
    %v4885 = vand.u32 %v4884, 4294901760
    %4886 = vmatprep.subr.mxu0 %v4885
    %v4887 = vand.u32 %v4202, 4294901760
    %v4888 = vsub.f32 %v4202, %v4887
    %v4889 = vand.u32 %v4888, 4294901760
    %v4890 = vsub.f32 %v4888, %v4889
    %v4891 = vand.u32 %v4890, 4294901760
    %4892 = vmatpush1.msra.mxu0 %v4891
    %4893 = vmatprep.subr.mxu0 0.0
    %4894 = vmatpush1.msra.mxu0 0.0
    %4895 = vmatprep.subr.mxu0 0.0
    %4896 = vmatpush1.msra.mxu0 0.0
    %4897 = vmatprep.subr.mxu0 0.0
    %4898 = vmatpush1.msra.mxu0 0.0
    %4899 = vmatprep.subr.mxu0 0.0
    %4900 = vmatpush1.msra.mxu0 0.0
    %4901 = vmatprep.subr.mxu0 0.0
    %4902 = vmatpush1.msra.mxu0 0.0
    %4903 = vmatprep.subr.mxu0 0.0
    %4904 = vmatpush1.msra.mxu0 0.0
    %4905 = vmatprep.subr.mxu0 0.0
    %4906 = vmatpush1.msra.mxu0 0.0
    %4907 = vmatprep.subr.mxu0 0.0
    %4908 = vmatpush1.msra.mxu0 0.0
    %4909 = vmatprep.subr.mxu0 0.0
    %4910 = vmatpush1.msra.mxu0 0.0
    %4911 = vmatprep.subr.mxu0 0.0
    %4912 = vmatpush1.msra.mxu0 0.0
    %4913 = vmatprep.subr.mxu0 0.0
    %4914 = vmatpush1.msra.mxu0 0.0
    %4915 = vmatprep.subr.mxu0 0.0
    %4916 = vmatpush1.msra.mxu0 0.0
    %4917 = vmatprep.subr.mxu0 0.0
    %4918 = vmatpush1.msra.mxu0 0.0
    %4919 = vmatprep.subr.mxu0 0.0
    %4920 = vmatpush1.msra.mxu0 0.0
    %4921 = vmatprep.subr.mxu0 0.0
    %4922 = vmatpush1.msra.mxu0 0.0
    %4923 = vmatprep.subr.mxu0 0.0
    %4924 = vmatpush1.msra.mxu0 0.0
    %4925 = vmatprep.subr.mxu0 0.0
    %4926 = vmatpush1.msra.mxu0 0.0
    %4927 = vmatprep.subr.mxu0 0.0
    %4928 = vmatpush1.msra.mxu0 0.0
    %4929 = vmatprep.subr.mxu0 0.0
    %4930 = vmatpush1.msra.mxu0 0.0
    %4931 = vmatprep.subr.mxu0 0.0
    %4932 = vmatpush1.msra.mxu0 0.0
    %4933 = vmatprep.subr.mxu0 0.0
    %4934 = vmatpush1.msra.mxu0 0.0
    %4935 = vmatprep.subr.mxu0 0.0
    %4936 = vmatpush1.msra.mxu0 0.0
    %4937 = vmatprep.subr.mxu0 0.0
    %4938 = vmatpush1.msra.mxu0 0.0
    %4939 = vmatprep.subr.mxu0 0.0
    %4940 = vmatpush1.msra.mxu0 0.0
    %4941 = vmatprep.subr.mxu0 0.0
    %4942 = vmatpush1.msra.mxu0 0.0
    %4943 = vmatprep.subr.mxu0 0.0
    %4944 = vmatpush1.msra.mxu0 0.0
    %4945 = vmatprep.subr.mxu0 0.0
    %4946 = vmatpush1.msra.mxu0 0.0
    %4947 = vmatprep.subr.mxu0 0.0
    %4948 = vmatpush1.msra.mxu0 0.0
    %4949 = vmatprep.mubr.f32.mxu0 0.0
    %v4950 = vand.u32 %v4216, 4294901760
    %4951 = vmatmul.mubr.f32.gmra.mrb[0].mxu0 %v4950
    %v4952 = vpop.f32.mrb[0].mxu0
    %v4953 = vadd.f32 %v4841, %v4952
    %v4954 = vpop.f32.mrb[0].mxu0
    %v4955 = vadd.f32 %v4843, %v4954
    %4956 = vdwg.mxu0
    %v4957 = vand.u32 %v4191, 4294901760
    %v4958 = vsub.f32 %v4191, %v4957
    %4959 = vmatprep.subr.mxu0 %v4958
    %v4960 = vand.u32 %v4190, 4294901760
    %v4961 = vsub.f32 %v4190, %v4960
    %4962 = vmatpush1.msra.mxu0 %v4961
    %v4963 = vand.u32 %v4195, 4294901760
    %v4964 = vsub.f32 %v4195, %v4963
    %4965 = vmatprep.subr.mxu0 %v4964
    %v4966 = vand.u32 %v4194, 4294901760
    %v4967 = vsub.f32 %v4194, %v4966
    %4968 = vmatpush1.msra.mxu0 %v4967
    %v4969 = vand.u32 %v4199, 4294901760
    %v4970 = vsub.f32 %v4199, %v4969
    %4971 = vmatprep.subr.mxu0 %v4970
    %v4972 = vand.u32 %v4198, 4294901760
    %v4973 = vsub.f32 %v4198, %v4972
    %4974 = vmatpush1.msra.mxu0 %v4973
    %v4975 = vand.u32 %v4203, 4294901760
    %v4976 = vsub.f32 %v4203, %v4975
    %4977 = vmatprep.subr.mxu0 %v4976
    %v4978 = vand.u32 %v4202, 4294901760
    %v4979 = vsub.f32 %v4202, %v4978
    %4980 = vmatpush1.msra.mxu0 %v4979
    %4981 = vmatprep.subr.mxu0 0.0
    %4982 = vmatpush1.msra.mxu0 0.0
    %4983 = vmatprep.subr.mxu0 0.0
    %4984 = vmatpush1.msra.mxu0 0.0
    %4985 = vmatprep.subr.mxu0 0.0
    %4986 = vmatpush1.msra.mxu0 0.0
    %4987 = vmatprep.subr.mxu0 0.0
    %4988 = vmatpush1.msra.mxu0 0.0
    %4989 = vmatprep.subr.mxu0 0.0
    %4990 = vmatpush1.msra.mxu0 0.0
    %4991 = vmatprep.subr.mxu0 0.0
    %4992 = vmatpush1.msra.mxu0 0.0
    %4993 = vmatprep.subr.mxu0 0.0
    %4994 = vmatpush1.msra.mxu0 0.0
    %4995 = vmatprep.subr.mxu0 0.0
    %4996 = vmatpush1.msra.mxu0 0.0
    %4997 = vmatprep.subr.mxu0 0.0
    %4998 = vmatpush1.msra.mxu0 0.0
    %4999 = vmatprep.subr.mxu0 0.0
    %5000 = vmatpush1.msra.mxu0 0.0
    %5001 = vmatprep.subr.mxu0 0.0
    %5002 = vmatpush1.msra.mxu0 0.0
    %5003 = vmatprep.subr.mxu0 0.0
    %5004 = vmatpush1.msra.mxu0 0.0
    %5005 = vmatprep.subr.mxu0 0.0
    %5006 = vmatpush1.msra.mxu0 0.0
    %5007 = vmatprep.subr.mxu0 0.0
    %5008 = vmatpush1.msra.mxu0 0.0
    %5009 = vmatprep.subr.mxu0 0.0
    %5010 = vmatpush1.msra.mxu0 0.0
    %5011 = vmatprep.subr.mxu0 0.0
    %5012 = vmatpush1.msra.mxu0 0.0
    %5013 = vmatprep.subr.mxu0 0.0
    %5014 = vmatpush1.msra.mxu0 0.0
    %5015 = vmatprep.subr.mxu0 0.0
    %5016 = vmatpush1.msra.mxu0 0.0
    %5017 = vmatprep.subr.mxu0 0.0
    %5018 = vmatpush1.msra.mxu0 0.0
    %5019 = vmatprep.subr.mxu0 0.0
    %5020 = vmatpush1.msra.mxu0 0.0
    %5021 = vmatprep.subr.mxu0 0.0
    %5022 = vmatpush1.msra.mxu0 0.0
    %5023 = vmatprep.subr.mxu0 0.0
    %5024 = vmatpush1.msra.mxu0 0.0
    %5025 = vmatprep.subr.mxu0 0.0
    %5026 = vmatpush1.msra.mxu0 0.0
    %5027 = vmatprep.subr.mxu0 0.0
    %5028 = vmatpush1.msra.mxu0 0.0
    %5029 = vmatprep.subr.mxu0 0.0
    %5030 = vmatpush1.msra.mxu0 0.0
    %5031 = vmatprep.subr.mxu0 0.0
    %5032 = vmatpush1.msra.mxu0 0.0
    %5033 = vmatprep.subr.mxu0 0.0
    %5034 = vmatpush1.msra.mxu0 0.0
    %5035 = vmatprep.subr.mxu0 0.0
    %5036 = vmatpush1.msra.mxu0 0.0
    %5037 = vmatprep.mubr.f32.mxu0 0.0
    %v5038 = vand.u32 %v4216, 4294901760
    %v5039 = vsub.f32 %v4216, %v5038
    %5040 = vmatmul.mubr.f32.gmra.mrb[0].mxu0 %v5039
    %v5041 = vpop.f32.mrb[0].mxu0
    %v5042 = vadd.f32 %v4953, %v5041
    %v5043 = vpop.f32.mrb[0].mxu0
    %v5044 = vadd.f32 %v4955, %v5043
    %5045 = vdwg.mxu0
    %v5046 = vand.u32 %v4191, 4294901760
    %5047 = vmatprep.subr.mxu0 %v5046
    %v5048 = vand.u32 %v4190, 4294901760
    %5049 = vmatpush1.msra.mxu0 %v5048
    %v5050 = vand.u32 %v4195, 4294901760
    %5051 = vmatprep.subr.mxu0 %v5050
    %v5052 = vand.u32 %v4194, 4294901760
    %5053 = vmatpush1.msra.mxu0 %v5052
    %v5054 = vand.u32 %v4199, 4294901760
    %5055 = vmatprep.subr.mxu0 %v5054
    %v5056 = vand.u32 %v4198, 4294901760
    %5057 = vmatpush1.msra.mxu0 %v5056
    %v5058 = vand.u32 %v4203, 4294901760
    %5059 = vmatprep.subr.mxu0 %v5058
    %v5060 = vand.u32 %v4202, 4294901760
    %5061 = vmatpush1.msra.mxu0 %v5060
    %5062 = vmatprep.subr.mxu0 0.0
    %5063 = vmatpush1.msra.mxu0 0.0
    %5064 = vmatprep.subr.mxu0 0.0
    %5065 = vmatpush1.msra.mxu0 0.0
    %5066 = vmatprep.subr.mxu0 0.0
    %5067 = vmatpush1.msra.mxu0 0.0
    %5068 = vmatprep.subr.mxu0 0.0
    %5069 = vmatpush1.msra.mxu0 0.0
    %5070 = vmatprep.subr.mxu0 0.0
    %5071 = vmatpush1.msra.mxu0 0.0
    %5072 = vmatprep.subr.mxu0 0.0
    %5073 = vmatpush1.msra.mxu0 0.0
    %5074 = vmatprep.subr.mxu0 0.0
    %5075 = vmatpush1.msra.mxu0 0.0
    %5076 = vmatprep.subr.mxu0 0.0
    %5077 = vmatpush1.msra.mxu0 0.0
    %5078 = vmatprep.subr.mxu0 0.0
    %5079 = vmatpush1.msra.mxu0 0.0
    %5080 = vmatprep.subr.mxu0 0.0
    %5081 = vmatpush1.msra.mxu0 0.0
    %5082 = vmatprep.subr.mxu0 0.0
    %5083 = vmatpush1.msra.mxu0 0.0
    %5084 = vmatprep.subr.mxu0 0.0
    %5085 = vmatpush1.msra.mxu0 0.0
    %5086 = vmatprep.subr.mxu0 0.0
    %5087 = vmatpush1.msra.mxu0 0.0
    %5088 = vmatprep.subr.mxu0 0.0
    %5089 = vmatpush1.msra.mxu0 0.0
    %5090 = vmatprep.subr.mxu0 0.0
    %5091 = vmatpush1.msra.mxu0 0.0
    %5092 = vmatprep.subr.mxu0 0.0
    %5093 = vmatpush1.msra.mxu0 0.0
    %5094 = vmatprep.subr.mxu0 0.0
    %5095 = vmatpush1.msra.mxu0 0.0
    %5096 = vmatprep.subr.mxu0 0.0
    %5097 = vmatpush1.msra.mxu0 0.0
    %5098 = vmatprep.subr.mxu0 0.0
    %5099 = vmatpush1.msra.mxu0 0.0
    %5100 = vmatprep.subr.mxu0 0.0
    %5101 = vmatpush1.msra.mxu0 0.0
    %5102 = vmatprep.subr.mxu0 0.0
    %5103 = vmatpush1.msra.mxu0 0.0
    %5104 = vmatprep.subr.mxu0 0.0
    %5105 = vmatpush1.msra.mxu0 0.0
    %5106 = vmatprep.subr.mxu0 0.0
    %5107 = vmatpush1.msra.mxu0 0.0
    %5108 = vmatprep.subr.mxu0 0.0
    %5109 = vmatpush1.msra.mxu0 0.0
    %5110 = vmatprep.subr.mxu0 0.0
    %5111 = vmatpush1.msra.mxu0 0.0
    %5112 = vmatprep.subr.mxu0 0.0
    %5113 = vmatpush1.msra.mxu0 0.0
    %5114 = vmatprep.subr.mxu0 0.0
    %5115 = vmatpush1.msra.mxu0 0.0
    %5116 = vmatprep.subr.mxu0 0.0
    %5117 = vmatpush1.msra.mxu0 0.0
    %5118 = vmatprep.mubr.f32.mxu0 0.0
    %v5119 = vand.u32 %v4216, 4294901760
    %v5120 = vsub.f32 %v4216, %v5119
    %v5121 = vand.u32 %v5120, 4294901760
    %5122 = vmatmul.mubr.f32.gmra.mrb[0].mxu0 %v5121
    %v5123 = vpop.f32.mrb[0].mxu0
    %v5124 = vadd.f32 %v5042, %v5123
    %v5125 = vpop.f32.mrb[0].mxu0
    %v5126 = vadd.f32 %v5044, %v5125
    %5127 = vdwg.mxu0
    %v5128 = vand.u32 %v4191, 4294901760
    %v5129 = vsub.f32 %v4191, %v5128
    %v5130 = vand.u32 %v5129, 4294901760
    %5131 = vmatprep.subr.mxu0 %v5130
    %v5132 = vand.u32 %v4190, 4294901760
    %v5133 = vsub.f32 %v4190, %v5132
    %v5134 = vand.u32 %v5133, 4294901760
    %5135 = vmatpush1.msra.mxu0 %v5134
    %v5136 = vand.u32 %v4195, 4294901760
    %v5137 = vsub.f32 %v4195, %v5136
    %v5138 = vand.u32 %v5137, 4294901760
    %5139 = vmatprep.subr.mxu0 %v5138
    %v5140 = vand.u32 %v4194, 4294901760
    %v5141 = vsub.f32 %v4194, %v5140
    %v5142 = vand.u32 %v5141, 4294901760
    %5143 = vmatpush1.msra.mxu0 %v5142
    %v5144 = vand.u32 %v4199, 4294901760
    %v5145 = vsub.f32 %v4199, %v5144
    %v5146 = vand.u32 %v5145, 4294901760
    %5147 = vmatprep.subr.mxu0 %v5146
    %v5148 = vand.u32 %v4198, 4294901760
    %v5149 = vsub.f32 %v4198, %v5148
    %v5150 = vand.u32 %v5149, 4294901760
    %5151 = vmatpush1.msra.mxu0 %v5150
    %v5152 = vand.u32 %v4203, 4294901760
    %v5153 = vsub.f32 %v4203, %v5152
    %v5154 = vand.u32 %v5153, 4294901760
    %5155 = vmatprep.subr.mxu0 %v5154
    %v5156 = vand.u32 %v4202, 4294901760
    %v5157 = vsub.f32 %v4202, %v5156
    %v5158 = vand.u32 %v5157, 4294901760
    %5159 = vmatpush1.msra.mxu0 %v5158
    %5160 = vmatprep.subr.mxu0 0.0
    %5161 = vmatpush1.msra.mxu0 0.0
    %5162 = vmatprep.subr.mxu0 0.0
    %5163 = vmatpush1.msra.mxu0 0.0
    %5164 = vmatprep.subr.mxu0 0.0
    %5165 = vmatpush1.msra.mxu0 0.0
    %5166 = vmatprep.subr.mxu0 0.0
    %5167 = vmatpush1.msra.mxu0 0.0
    %5168 = vmatprep.subr.mxu0 0.0
    %5169 = vmatpush1.msra.mxu0 0.0
    %5170 = vmatprep.subr.mxu0 0.0
    %5171 = vmatpush1.msra.mxu0 0.0
    %5172 = vmatprep.subr.mxu0 0.0
    %5173 = vmatpush1.msra.mxu0 0.0
    %5174 = vmatprep.subr.mxu0 0.0
    %5175 = vmatpush1.msra.mxu0 0.0
    %5176 = vmatprep.subr.mxu0 0.0
    %5177 = vmatpush1.msra.mxu0 0.0
    %5178 = vmatprep.subr.mxu0 0.0
    %5179 = vmatpush1.msra.mxu0 0.0
    %5180 = vmatprep.subr.mxu0 0.0
    %5181 = vmatpush1.msra.mxu0 0.0
    %5182 = vmatprep.subr.mxu0 0.0
    %5183 = vmatpush1.msra.mxu0 0.0
    %5184 = vmatprep.subr.mxu0 0.0
    %5185 = vmatpush1.msra.mxu0 0.0
    %5186 = vmatprep.subr.mxu0 0.0
    %5187 = vmatpush1.msra.mxu0 0.0
    %5188 = vmatprep.subr.mxu0 0.0
    %5189 = vmatpush1.msra.mxu0 0.0
    %5190 = vmatprep.subr.mxu0 0.0
    %5191 = vmatpush1.msra.mxu0 0.0
    %5192 = vmatprep.subr.mxu0 0.0
    %5193 = vmatpush1.msra.mxu0 0.0
    %5194 = vmatprep.subr.mxu0 0.0
    %5195 = vmatpush1.msra.mxu0 0.0
    %5196 = vmatprep.subr.mxu0 0.0
    %5197 = vmatpush1.msra.mxu0 0.0
    %5198 = vmatprep.subr.mxu0 0.0
    %5199 = vmatpush1.msra.mxu0 0.0
    %5200 = vmatprep.subr.mxu0 0.0
    %5201 = vmatpush1.msra.mxu0 0.0
    %5202 = vmatprep.subr.mxu0 0.0
    %5203 = vmatpush1.msra.mxu0 0.0
    %5204 = vmatprep.subr.mxu0 0.0
    %5205 = vmatpush1.msra.mxu0 0.0
    %5206 = vmatprep.subr.mxu0 0.0
    %5207 = vmatpush1.msra.mxu0 0.0
    %5208 = vmatprep.subr.mxu0 0.0
    %5209 = vmatpush1.msra.mxu0 0.0
    %5210 = vmatprep.subr.mxu0 0.0
    %5211 = vmatpush1.msra.mxu0 0.0
    %5212 = vmatprep.subr.mxu0 0.0
    %5213 = vmatpush1.msra.mxu0 0.0
    %5214 = vmatprep.subr.mxu0 0.0
    %5215 = vmatpush1.msra.mxu0 0.0
    %5216 = vmatprep.mubr.f32.mxu0 0.0
    %v5217 = vand.u32 %v4216, 4294901760
    %5218 = vmatmul.mubr.f32.gmra.mrb[0].mxu0 %v5217
    %v5219 = vpop.f32.mrb[0].mxu0
    %v5220 = vadd.f32 %v5124, %v5219
    %v5221 = vpop.f32.mrb[0].mxu0
    %v5222 = vadd.f32 %v5126, %v5221
    %5223 = vdwg.mxu0
    %v5224 = vand.u32 %v4191, 4294901760
    %5225 = vmatprep.subr.mxu0 %v5224
    %v5226 = vand.u32 %v4190, 4294901760
    %5227 = vmatpush1.msra.mxu0 %v5226
    %v5228 = vand.u32 %v4195, 4294901760
    %5229 = vmatprep.subr.mxu0 %v5228
    %v5230 = vand.u32 %v4194, 4294901760
    %5231 = vmatpush1.msra.mxu0 %v5230
    %v5232 = vand.u32 %v4199, 4294901760
    %5233 = vmatprep.subr.mxu0 %v5232
    %v5234 = vand.u32 %v4198, 4294901760
    %5235 = vmatpush1.msra.mxu0 %v5234
    %v5236 = vand.u32 %v4203, 4294901760
    %5237 = vmatprep.subr.mxu0 %v5236
    %v5238 = vand.u32 %v4202, 4294901760
    %5239 = vmatpush1.msra.mxu0 %v5238
    %5240 = vmatprep.subr.mxu0 0.0
    %5241 = vmatpush1.msra.mxu0 0.0
    %5242 = vmatprep.subr.mxu0 0.0
    %5243 = vmatpush1.msra.mxu0 0.0
    %5244 = vmatprep.subr.mxu0 0.0
    %5245 = vmatpush1.msra.mxu0 0.0
    %5246 = vmatprep.subr.mxu0 0.0
    %5247 = vmatpush1.msra.mxu0 0.0
    %5248 = vmatprep.subr.mxu0 0.0
    %5249 = vmatpush1.msra.mxu0 0.0
    %5250 = vmatprep.subr.mxu0 0.0
    %5251 = vmatpush1.msra.mxu0 0.0
    %5252 = vmatprep.subr.mxu0 0.0
    %5253 = vmatpush1.msra.mxu0 0.0
    %5254 = vmatprep.subr.mxu0 0.0
    %5255 = vmatpush1.msra.mxu0 0.0
    %5256 = vmatprep.subr.mxu0 0.0
    %5257 = vmatpush1.msra.mxu0 0.0
    %5258 = vmatprep.subr.mxu0 0.0
    %5259 = vmatpush1.msra.mxu0 0.0
    %5260 = vmatprep.subr.mxu0 0.0
    %5261 = vmatpush1.msra.mxu0 0.0
    %5262 = vmatprep.subr.mxu0 0.0
    %5263 = vmatpush1.msra.mxu0 0.0
    %5264 = vmatprep.subr.mxu0 0.0
    %5265 = vmatpush1.msra.mxu0 0.0
    %5266 = vmatprep.subr.mxu0 0.0
    %5267 = vmatpush1.msra.mxu0 0.0
    %5268 = vmatprep.subr.mxu0 0.0
    %5269 = vmatpush1.msra.mxu0 0.0
    %5270 = vmatprep.subr.mxu0 0.0
    %5271 = vmatpush1.msra.mxu0 0.0
    %5272 = vmatprep.subr.mxu0 0.0
    %5273 = vmatpush1.msra.mxu0 0.0
    %5274 = vmatprep.subr.mxu0 0.0
    %5275 = vmatpush1.msra.mxu0 0.0
    %5276 = vmatprep.subr.mxu0 0.0
    %5277 = vmatpush1.msra.mxu0 0.0
    %5278 = vmatprep.subr.mxu0 0.0
    %5279 = vmatpush1.msra.mxu0 0.0
    %5280 = vmatprep.subr.mxu0 0.0
    %5281 = vmatpush1.msra.mxu0 0.0
    %5282 = vmatprep.subr.mxu0 0.0
    %5283 = vmatpush1.msra.mxu0 0.0
    %5284 = vmatprep.subr.mxu0 0.0
    %5285 = vmatpush1.msra.mxu0 0.0
    %5286 = vmatprep.subr.mxu0 0.0
    %5287 = vmatpush1.msra.mxu0 0.0
    %5288 = vmatprep.subr.mxu0 0.0
    %5289 = vmatpush1.msra.mxu0 0.0
    %5290 = vmatprep.subr.mxu0 0.0
    %5291 = vmatpush1.msra.mxu0 0.0
    %5292 = vmatprep.subr.mxu0 0.0
    %5293 = vmatpush1.msra.mxu0 0.0
    %5294 = vmatprep.subr.mxu0 0.0
    %5295 = vmatpush1.msra.mxu0 0.0
    %5296 = vmatprep.mubr.f32.mxu0 0.0
    %v5297 = vand.u32 %v4216, 4294901760
    %5298 = vmatmul.mubr.f32.gmra.mrb[0].mxu0 %v5297
    %v5299 = vpop.f32.mrb[0].mxu0
    %v5300 = vadd.f32 %v5220, %v5299
    %v5301 = vpop.f32.mrb[0].mxu0
    %v5302 = vadd.f32 %v5222, %v5301
    %5303 = vdwg.mxu0
    %v5308 = vcombine.low %v4757, %v4759
    %v5309 = vcombine.low %v5300, %v5302
    %v5311 = vunpack.c.l.s4 1966171168
    %v5312 = vunpack.c.0.s8 %v5311
    %v5313 = vlaneseq
    %v5314 = vshrl.u32 %v5313, 7
    %v5315 = vsub.s32 %v5312, %v5314
    %v5316 = vrot.slane %v5308, %v5315
    %v5318 = vunpack.c.l.s4 1966171168
    %v5319 = vunpack.c.0.s8 %v5318
    %v5320 = vlaneseq
    %v5321 = vshrl.u32 %v5320, 7
    %v5322 = vsub.s32 %v5319, %v5321
    %v5323 = vrot.slane %v5309, %v5322
    %v5324 = vcombine.low %v5316, %v5323
    %v5326 = vunpack.c.l.s4 1966171168
    %v5327 = vunpack.c.0.s8 %v5326
    %v5328 = vlaneseq
    %v5329 = vshrl.u32 %v5328, 7
    %v5330 = vsub.s32 %v5327, %v5329
    %v5331 = vrot.slane %v5324, %v5330
    %v5333 = vlaneseq
    %vm5334 = vcmp.ge.s32.totalorder %v5333, 0
    %vm5335 = vcmp.lt.s32.totalorder %v5333, 512
    %vm5336 = vmand %vm5334, %vm5335
    %5337 = vst.msk [vmem:[#allocation3] sm:$0xf] %vm5336, %v5331
    // Predicated region
    $region38: #{tpu_custom_call.1} parent=1 // pred_check
      _
    $region39: #{tpu_custom_call.1} parent=1 // pred_check_branch
      %5339 = sbr.rel (0) target = $region41
    $region40: #{tpu_custom_call.1} parent=1 // pred_region
      %s5341 = ssub.s32 64, 64
      %5342 = vsyncadd [#allocation4], %s5341
      %s5344 = sshll.u32 [#allocation3], 4
      %s5345 = int_to_ptr.vmem [resolvable:$true] %s5344
      %5347 = dma.vmem_to_hbm [thread:$0]  %s5345, 64, %s9, [#allocation4]
    $region41: #{tpu_custom_call.1} parent=1 // pred_fallthru
      _
    // Predicated region
    $region42: #{tpu_custom_call.1} parent=1 // pred_check
      _
    $region43: #{tpu_custom_call.1} parent=1 // pred_check_branch
      %5349 = sbr.rel (0) target = $region45
    $region44: #{tpu_custom_call.1} parent=1 // pred_region
      %5350 = dma.done [#allocation4], 64
    $region45: #{tpu_custom_call.1} parent=1 // pred_fallthru
      _
    %5351 = vsyncpa [#allocation4], 1

</llo_original>
